<compile_context>
chip_gen: v7x
topology: tpu7x:2x2x1
jax: 0.10.0
libtpu: 0.0.40
codegen_flags: <defaults>
</compile_context>

<pallas_src>
import random

import jax
import jax.numpy as jnp
from jax.experimental import pallas as pl
from jax.experimental.pallas import tpu as pltpu

VOCAB = 6351           # 73 * 87 grid cells
VPAD = 6400            # 50 * 128 -> lane-aligned vocab width
GRID_Y = 87            # x = n // 87, y = n % 87 (as in the PyTorch forward)
TILE_V = 1280          # 10 * 128 -> vocab tile for projection + running argmax
NEG_BIG = -1e30        # bias value for padded vocab columns


def _pad8(n):
    return -(-n // 8) * 8


# ----------------------------------------------------------------------------
# Fused encoder + decode-loop kernel (grid = decode steps)
# ----------------------------------------------------------------------------
def fused_decoder_kernel(tf_ref, obs_ref,                       # scalar prefetch (SMEM)
                         src_ref, featps_ref, obsval_ref, trg_ref,
                         we_ref, be_ref,
                         wfi_ref, wfp_ref, wc_ref, wh_ref, bh_ref,
                         wo_ref, bo_ref,
                         logits_ref, cell_ref,
                         enc_scr, hid_scr, din_scr):
    """One grid step == one decode step t (t = program_id + 1 in the reference).

    All inputs except the per-step logits output have constant block indices, so
    they are DMA'd into VMEM once and stay resident across the whole grid.
    enc / dec_hidden / dec_input live in VMEM scratch across steps.
    """
    t = pl.program_id(0)
    B = src_ref.shape[0]
    L = src_ref.shape[1]
    H = we_ref.shape[1]

    # --- prologue at the first decode step: run the encoder, init carried state ---
    @pl.when(t == 0)
    def _():
        src = src_ref[...]                                       # (B, L, 2)
        w0 = we_ref[0:1, :][None, :, :]                          # (1, 1, H)
        w1 = we_ref[1:2, :][None, :, :]                          # (1, 1, H)
        be = be_ref[...][None, :, :]                             # (1, 1, H)
        enc = jnp.tanh(src[:, :, 0:1] * w0 + src[:, :, 1:2] * w1 + be)   # (B, L, H)
        enc_scr[...] = enc
        hid_scr[...] = enc[:, L - 1, :]                          # s_m = enc_output[:, -1, :]
        din_scr[...] = src[:, 0, :]                              # dec_input = src[:, 0, :]

    hid = hid_scr[...]                                           # (B, H)
    dec_input = din_scr[...]                                     # (B, 2)
    enc = enc_scr[...]                                           # (B, L, H)

    # --- dot-product attention on the VPU (tiny L/H; keeps MXU slot for Wo) ---
    scores = jnp.sum(hid[:, None, :] * enc, axis=-1)             # (B, L)
    scores = scores - jnp.max(scores, axis=-1, keepdims=True)
    w = jnp.exp(scores)
    w = w / jnp.sum(w, axis=-1, keepdims=True)                   # exact divide
    ctx = jnp.sum(w[:, :, None] * enc, axis=1)                   # (B, H)

    # --- hidden update:  feat = [dec_input | src_pre | src_suc] ---
    featps = featps_ref[t]                                       # (B, 4)  [pre | suc]
    pre_act = (jnp.dot(dec_input, wfi_ref[...], preferred_element_type=jnp.float32)
               + jnp.dot(featps, wfp_ref[...], preferred_element_type=jnp.float32)
               + jnp.dot(ctx, wc_ref[...], preferred_element_type=jnp.float32)
               + jnp.dot(hid, wh_ref[...], preferred_element_type=jnp.float32)
               + bh_ref[...])
    new_hid = jnp.tanh(pre_act)                                  # (B, H)

    # --- output projection (bf16 MXU, f32 accum), tiled vocab + running argmax ---
    hid_bf = new_hid.astype(jnp.bfloat16)
    lane = jax.lax.broadcasted_iota(jnp.int32, (B, TILE_V), 1)   # hoisted out of loop
    run_max = jnp.full((B, 1), -jnp.inf, jnp.float32)
    run_idx = jnp.zeros((B, 1), jnp.int32)
    for lo in range(0, VPAD, TILE_V):
        wo_t = wo_ref[:, lo:lo + TILE_V]                         # (H, TILE_V) bf16 view
        logit_t = (jnp.dot(hid_bf, wo_t, preferred_element_type=jnp.float32)
                   + bo_ref[:, lo:lo + TILE_V])                  # (B, TILE_V) f32
        logits_ref[0, :, lo:lo + TILE_V] = logit_t
        tmax = jnp.max(logit_t, axis=-1, keepdims=True)          # (B, 1)
        tidx = jnp.min(jnp.where(logit_t == tmax, lane, TILE_V),
                       axis=-1, keepdims=True) + lo              # (B, 1)
        better = tmax > run_max                                  # strict -> first occurrence
        run_idx = jnp.where(better, tidx, run_idx)
        run_max = jnp.where(better, tmax, run_max)

    # --- argmax -> (x, y) grid cell via reciprocal-multiply (no int div/mod) ---
    idx_f = run_idx.astype(jnp.float32)
    q = jnp.floor(idx_f * (1.0 / GRID_Y))
    r = idx_f - GRID_Y * q
    over = r >= float(GRID_Y)
    q = jnp.where(over, q + 1.0, q)
    r = jnp.where(over, r - float(GRID_Y), r)
    under = r < 0.0
    q = jnp.where(under, q - 1.0, q)
    r = jnp.where(under, r + float(GRID_Y), r)
    cell_pred = jnp.concatenate([q, r], axis=-1)                 # (B, 2)

    # --- observed-timestamp override (mask precomputed on host, SMEM scalar) ---
    obs_f = (obs_ref[t] == 1).astype(jnp.float32)
    cell_t = obs_f * obsval_ref[t] + (1.0 - obs_f) * cell_pred   # (B, 2)
    cell_ref[t] = cell_t                                         # resident output row

    # --- carry state to the next step (teacher-forcing flag from SMEM) ---
    tf_f = (tf_ref[t] == 1).astype(jnp.float32)
    hid_scr[...] = new_hid
    din_scr[...] = tf_f * trg_ref[t] + (1.0 - tf_f) * cell_t


# ----------------------------------------------------------------------------
# pallas_call wrapper
# ----------------------------------------------------------------------------
def make_fused_decoder_call(batch, src_len, trg_len, hidden):
    bp = _pad8(batch)                                            # sublane-padded batch
    steps = trg_len - 1

    grid_spec = pltpu.PrefetchScalarGridSpec(
        num_scalar_prefetch=2,                                   # tf_flags, obs_mask
        grid=(steps,),
        in_specs=[
            # all per-sequence / per-step data is small -> fully VMEM-resident
            pl.BlockSpec((bp, src_len, 2), lambda i, tf, ob: (0, 0, 0)),    # src
            pl.BlockSpec((steps, bp, 4), lambda i, tf, ob: (0, 0, 0)),      # pre/suc feats
            pl.BlockSpec((steps, bp, 2), lambda i, tf, ob: (0, 0, 0)),      # obs cell values
            pl.BlockSpec((steps, bp, 2), lambda i, tf, ob: (0, 0, 0)),      # trg[:, 1:, :]
            # weights: constant index maps -> DMA'd once, resident
            pl.BlockSpec((2, hidden), lambda i, tf, ob: (0, 0)),            # We
            pl.BlockSpec((1, hidden), lambda i, tf, ob: (0, 0)),            # be
            pl.BlockSpec((2, hidden), lambda i, tf, ob: (0, 0)),            # Wf (input part)
            pl.BlockSpec((4, hidden), lambda i, tf, ob: (0, 0)),            # Wf (pre/suc part)
            pl.BlockSpec((hidden, hidden), lambda i, tf, ob: (0, 0)),       # Wc
            pl.BlockSpec((hidden, hidden), lambda i, tf, ob: (0, 0)),       # Wh
            pl.BlockSpec((1, hidden), lambda i, tf, ob: (0, 0)),            # bh
            pl.BlockSpec((hidden, VPAD), lambda i, tf, ob: (0, 0)),         # Wo (bf16, padded)
            pl.BlockSpec((1, VPAD), lambda i, tf, ob: (0, 0)),              # bo (padded)
        ],
        out_specs=(
            pl.BlockSpec((1, bp, VPAD), lambda i, tf, ob: (i, 0, 0)),       # logits (per step)
            pl.BlockSpec((steps, bp, 2), lambda i, tf, ob: (0, 0, 0)),      # cell (resident)
        ),
        scratch_shapes=[
            pltpu.VMEM((bp, src_len, hidden), jnp.float32),      # enc_output (resident)
            pltpu.VMEM((bp, hidden), jnp.float32),               # dec_hidden carry
            pltpu.VMEM((bp, 2), jnp.float32),                    # dec_input carry
        ],
    )

    flops = steps * (2 * bp * hidden * VPAD                      # output projection
                     + 4 * bp * src_len * hidden                 # attention
                     + 2 * bp * hidden * (2 * hidden + 6))       # hidden update
    transcendentals = steps * bp * (hidden + src_len) + bp * src_len * hidden
    bytes_accessed = (2 * hidden * VPAD                          # bf16 Wo (once)
                      + 4 * (VPAD + 2 * hidden * hidden + 9 * hidden
                             + bp * src_len * 2 + steps * bp * 8
                             + steps * bp * (VPAD + 2)))
    cost = pl.CostEstimate(flops=flops,
                           transcendentals=transcendentals,
                           bytes_accessed=bytes_accessed)

    call = pl.pallas_call(
        fused_decoder_kernel,
        out_shape=(
            jax.ShapeDtypeStruct((steps, bp, VPAD), jnp.float32),
            jax.ShapeDtypeStruct((steps, bp, 2), jnp.float32),
        ),
        grid_spec=grid_spec,
        compiler_params=pltpu.CompilerParams(
            dimension_semantics=("arbitrary",),                  # carried state over time
            vmem_limit_bytes=32 * 1024 * 1024),                  # resident footprint ~1.5 MB
        cost_estimate=cost,
    )
    return jax.jit(call)


# ----------------------------------------------------------------------------
# Host-side glue (matches the PyTorch forward semantics)
# ----------------------------------------------------------------------------
# TODO(synk): get_pre_suc is not defined in the reference file; implemented the
# standard DHTR precursor/successor lookup (nearest observed sample <= t / >= t).
def get_pre_suc(timestamp, trg_len):
    pre_index, suc_index = [], []
    for t in range(trg_len):
        pre = 0
        for i, ts in enumerate(timestamp):
            if ts <= t:
                pre = i
        suc = len(timestamp) - 1
        for i in range(len(timestamp) - 1, -1, -1):
            if timestamp[i] >= t:
                suc = i
        pre_index.append(pre)
        suc_index.append(suc)
    return pre_index, suc_index


def dhtr_forward(src, trg, timestamp, params, decoder_call,
                 teacher_forcing_ratio=0.5):
    batch_size, src_len, _ = src.shape
    trg_len = trg.shape[1]
    bp = _pad8(batch_size)

    pre_index, suc_index = get_pre_suc(timestamp, trg_len)

    # --- pad batch to the 8-sublane width (sliced back after the kernel) ---
    pad = bp - batch_size
    if pad:
        src_p = jnp.concatenate(
            [src, jnp.zeros((pad, src_len, 2), src.dtype)], axis=0)
        trg_p = jnp.concatenate(
            [trg, jnp.zeros((pad, trg_len, 2), trg.dtype)], axis=0)
    else:
        src_p, trg_p = src, trg

    # --- per-step host bookkeeping, handed to the fused kernel ---
    featps = jnp.stack(
        [jnp.concatenate([src_p[:, pre_index[t], :], src_p[:, suc_index[t], :]],
                         axis=-1)
         for t in range(1, trg_len)], axis=0)                    # (T-1, Bp, 4)

    obs_mask, obs_vals = [], []
    for t in range(1, trg_len):
        if timestamp.count(t) > 0:
            obs_mask.append(1)
            obs_vals.append(src_p[:, timestamp.index(t), :])
        else:
            obs_mask.append(0)
            obs_vals.append(jnp.zeros((bp, 2), jnp.float32))
    obs_mask = jnp.asarray(obs_mask, jnp.int32)                  # (T-1,)
    obs_vals = jnp.stack(obs_vals, axis=0)                       # (T-1, Bp, 2)

    # One random.random() per decode step, in the same order as the original
    # in-loop draws -> identical stream, precomputed so the loop can be fused.
    tf_flags = jnp.asarray(
        [1 if random.random() < teacher_forcing_ratio else 0
         for _ in range(1, trg_len)], jnp.int32)                 # (T-1,)

    trg_steps = jnp.transpose(trg_p[:, 1:, :], (1, 0, 2))        # (T-1, Bp, 2)

    # --- single fused Pallas call: encoder prologue + all decode steps ---
    logits_steps, cell_steps = decoder_call(
        tf_flags, obs_mask,
        src_p, featps, obs_vals, trg_steps,
        params["We"], params["be"],
        params["Wf"][:2, :], params["Wf"][2:, :],
        params["Wc"], params["Wh"], params["bh"],
        params["Wo_pad"], params["bo_pad"])

    # --- assemble (t = 0 row is zeros / src[:, 0, :], as in the reference) ---
    logits_b = jnp.transpose(logits_steps, (1, 0, 2))[:batch_size, :, :VOCAB]
    outputs = jnp.concatenate(
        [jnp.zeros((batch_size, 1, VOCAB), jnp.float32), logits_b], axis=1)
    cell_b = jnp.transpose(cell_steps, (1, 0, 2))[:batch_size]
    cell_res = jnp.concatenate([src[:, :1, :], cell_b], axis=1)
    return outputs, cell_res


# ----------------------------------------------------------------------------
# Main
# ----------------------------------------------------------------------------
if __name__ == "__main__":
    random.seed(0)

    B, SRC_LEN, TRG_LEN, H = 2, 4, 8, 32
    timestamp = [0, 2, 5, 7]                 # observed sample times (len == SRC_LEN)

    key = jax.random.PRNGKey(0)
    ks = jax.random.split(key, 10)

    # Deterministic synthetic parameters.
    Wo = jax.random.normal(ks[4], (H, VOCAB), jnp.float32) * 0.1
    params = {
        "We": jax.random.normal(ks[0], (2, H), jnp.float32) * 0.1,
        "be": jnp.zeros((1, H), jnp.float32),
        "Wf": jax.random.normal(ks[1], (6, H), jnp.float32) * 0.1,
        "Wc": jax.random.normal(ks[2], (H, H), jnp.float32) * 0.1,
        "Wh": jax.random.normal(ks[3], (H, H), jnp.float32) * 0.1,
        "bh": jnp.zeros((1, H), jnp.float32),
        # vocab padded to 6400 (50*128); padded bias columns get -1e30 so the
        # on-chip argmax can never select them.  Wo stored in bf16 for the MXU
        # (f32 accumulation + f32 bias add inside the kernel).
        "Wo_pad": jnp.concatenate(
            [Wo, jnp.zeros((H, VPAD - VOCAB), jnp.float32)],
            axis=1).astype(jnp.bfloat16),
        "bo_pad": jnp.concatenate(
            [jnp.zeros((1, VOCAB), jnp.float32),
             jnp.full((1, VPAD - VOCAB), NEG_BIG, jnp.float32)], axis=1),
    }

    # Trajectories of (x, y) grid cells, x in [0, 73), y in [0, 87).
    src = jnp.stack(
        [jax.random.randint(ks[5], (B, SRC_LEN), 0, VOCAB // GRID_Y),
         jax.random.randint(ks[6], (B, SRC_LEN), 0, GRID_Y)],
        axis=-1).astype(jnp.float32)
    trg = jnp.stack(
        [jax.random.randint(ks[7], (B, TRG_LEN), 0, VOCAB // GRID_Y),
         jax.random.randint(ks[8], (B, TRG_LEN), 0, GRID_Y)],
        axis=-1).astype(jnp.float32)

    decoder_call = make_fused_decoder_call(B, SRC_LEN, TRG_LEN, H)

    outputs, cell_res = dhtr_forward(src, trg, timestamp, params, decoder_call,
                                     teacher_forcing_ratio=0.5)
    jax.block_until_ready((outputs, cell_res))

    assert outputs.shape == (B, TRG_LEN, VOCAB)
    assert cell_res.shape == (B, TRG_LEN, 2)
    print("KERNEL_OK")
</pallas_src>

<mosaic_0001>
module attributes {stable_mosaic.version = 11 : i64} {
  func.func @fused_decoder_kernel(%arg0: i32, %arg1: memref<7xi32, #tpu.memory_space<smem>>, %arg2: memref<7xi32, #tpu.memory_space<smem>>, %arg3: memref<8x4x2xf32, #tpu.memory_space<vmem>>, %arg4: memref<7x8x4xf32, #tpu.memory_space<vmem>>, %arg5: memref<7x8x2xf32, #tpu.memory_space<vmem>>, %arg6: memref<7x8x2xf32, #tpu.memory_space<vmem>>, %arg7: memref<2x32xf32, #tpu.memory_space<vmem>>, %arg8: memref<1x32xf32, #tpu.memory_space<vmem>>, %arg9: memref<2x32xf32, #tpu.memory_space<vmem>>, %arg10: memref<4x32xf32, #tpu.memory_space<vmem>>, %arg11: memref<32x32xf32, #tpu.memory_space<vmem>>, %arg12: memref<32x32xf32, #tpu.memory_space<vmem>>, %arg13: memref<1x32xf32, #tpu.memory_space<vmem>>, %arg14: memref<32x6400xbf16, #tpu.memory_space<vmem>>, %arg15: memref<1x6400xf32, #tpu.memory_space<vmem>>, %arg16: memref<1x8x6400xf32, #tpu.memory_space<vmem>>, %arg17: memref<7x8x2xf32, #tpu.memory_space<vmem>>, %arg18: memref<8x4x32xf32, #tpu.memory_space<vmem>>, %arg19: memref<8x32xf32, #tpu.memory_space<vmem>>, %arg20: memref<8x2xf32, #tpu.memory_space<vmem>>) attributes {dimension_semantics = [#tpu.dimension_semantics<arbitrary>], iteration_bounds = array<i64: 7>, scalar_prefetch = 2 : i64, scratch_operands = 3 : i64, tpu.core_type = #tpu.core_type<tc>, window_params = [{pipeline_mode = #tpu.pipeline_mode<synchronous>, transform_indices = @transform_0, window_bounds = array<i64: 8, 4, 2>}, {pipeline_mode = #tpu.pipeline_mode<synchronous>, transform_indices = @transform_1, window_bounds = array<i64: 7, 8, 4>}, {pipeline_mode = #tpu.pipeline_mode<synchronous>, transform_indices = @transform_2, window_bounds = array<i64: 7, 8, 2>}, {pipeline_mode = #tpu.pipeline_mode<synchronous>, transform_indices = @transform_3, window_bounds = array<i64: 7, 8, 2>}, {pipeline_mode = #tpu.pipeline_mode<synchronous>, transform_indices = @transform_4, window_bounds = array<i64: 2, 32>}, {pipeline_mode = #tpu.pipeline_mode<synchronous>, transform_indices = @transform_5, window_bounds = array<i64: 1, 32>}, {pipeline_mode = #tpu.pipeline_mode<synchronous>, transform_indices = @transform_6, window_bounds = array<i64: 2, 32>}, {pipeline_mode = #tpu.pipeline_mode<synchronous>, transform_indices = @transform_7, window_bounds = array<i64: 4, 32>}, {pipeline_mode = #tpu.pipeline_mode<synchronous>, transform_indices = @transform_8, window_bounds = array<i64: 32, 32>}, {pipeline_mode = #tpu.pipeline_mode<synchronous>, transform_indices = @transform_9, window_bounds = array<i64: 32, 32>}, {pipeline_mode = #tpu.pipeline_mode<synchronous>, transform_indices = @transform_10, window_bounds = array<i64: 1, 32>}, {pipeline_mode = #tpu.pipeline_mode<synchronous>, transform_indices = @transform_11, window_bounds = array<i64: 32, 6400>}, {pipeline_mode = #tpu.pipeline_mode<synchronous>, transform_indices = @transform_12, window_bounds = array<i64: 1, 6400>}, {transform_indices = @transform_13, window_bounds = array<i64: 1, 8, 6400>}, {pipeline_mode = #tpu.pipeline_mode<synchronous>, transform_indices = @transform_14, window_bounds = array<i64: 7, 8, 2>}]} {
    %c0_i32 = arith.constant 0 : i32
    %0 = arith.cmpi eq, %arg0, %c0_i32 : i32
    %1 = arith.extui %0 : i1 to i32
    %c0_i32_0 = arith.constant 0 : i32
    %2 = arith.cmpi ne, %1, %c0_i32_0 : i32
    scf.if %2 {
      %c0_101 = arith.constant 0 : index
      %c0_102 = arith.constant 0 : index
      %c0_103 = arith.constant 0 : index
      %207 = vector.load %arg3[%c0_101, %c0_102, %c0_103] : memref<8x4x2xf32, #tpu.memory_space<vmem>>, vector<8x4x2xf32>
      %c0_104 = arith.constant 0 : index
      %c0_105 = arith.constant 0 : index
      %208 = vector.load %arg7[%c0_104, %c0_105] : memref<2x32xf32, #tpu.memory_space<vmem>>, vector<1x32xf32>
      %209 = vector.shape_cast %208 : vector<1x32xf32> to vector<1x1x32xf32>
      %c1 = arith.constant 1 : index
      %c0_106 = arith.constant 0 : index
      %210 = vector.load %arg7[%c1, %c0_106] : memref<2x32xf32, #tpu.memory_space<vmem>>, vector<1x32xf32>
      %211 = vector.shape_cast %210 : vector<1x32xf32> to vector<1x1x32xf32>
      %c0_107 = arith.constant 0 : index
      %c0_108 = arith.constant 0 : index
      %212 = vector.load %arg8[%c0_107, %c0_108] : memref<1x32xf32, #tpu.memory_space<vmem>>, vector<1x32xf32>
      %213 = vector.shape_cast %212 : vector<1x32xf32> to vector<1x1x32xf32>
      %214 = vector.extract_strided_slice %207 {offsets = [0, 0, 0], sizes = [8, 4, 1], strides = [1, 1, 1]} : vector<8x4x2xf32> to vector<8x4x1xf32>
      %215 = vector.broadcast %214 : vector<8x4x1xf32> to vector<8x4x32xf32>
      %216 = vector.broadcast %209 : vector<1x1x32xf32> to vector<8x4x32xf32>
      %217 = arith.mulf %215, %216 : vector<8x4x32xf32>
      %218 = vector.extract_strided_slice %207 {offsets = [0, 0, 1], sizes = [8, 4, 1], strides = [1, 1, 1]} : vector<8x4x2xf32> to vector<8x4x1xf32>
      %219 = vector.broadcast %218 : vector<8x4x1xf32> to vector<8x4x32xf32>
      %220 = vector.broadcast %211 : vector<1x1x32xf32> to vector<8x4x32xf32>
      %221 = arith.mulf %219, %220 : vector<8x4x32xf32>
      %222 = arith.addf %217, %221 : vector<8x4x32xf32>
      %223 = vector.broadcast %213 : vector<1x1x32xf32> to vector<8x4x32xf32>
      %224 = arith.addf %222, %223 : vector<8x4x32xf32>
      %225 = math.tanh %224 : vector<8x4x32xf32>
      %c0_109 = arith.constant 0 : index
      %c0_110 = arith.constant 0 : index
      %c0_111 = arith.constant 0 : index
      %226 = vector.load %arg18[%c0_109, %c0_110, %c0_111] : memref<8x4x32xf32, #tpu.memory_space<vmem>>, vector<8x4x32xf32>
      tpu.vector_store %arg18[%c0_109, %c0_110, %c0_111], %225 {strides = array<i32>} : memref<8x4x32xf32, #tpu.memory_space<vmem>>, vector<8x4x32xf32>,
      %227 = vector.extract_strided_slice %225 {offsets = [0, 3, 0], sizes = [8, 1, 32], strides = [1, 1, 1]} : vector<8x4x32xf32> to vector<8x1x32xf32>
      %228 = vector.shape_cast %227 : vector<8x1x32xf32> to vector<8x32xf32>
      %c0_112 = arith.constant 0 : index
      %c0_113 = arith.constant 0 : index
      %229 = vector.load %arg19[%c0_112, %c0_113] : memref<8x32xf32, #tpu.memory_space<vmem>>, vector<8x32xf32>
      tpu.vector_store %arg19[%c0_112, %c0_113], %228 {strides = array<i32>} : memref<8x32xf32, #tpu.memory_space<vmem>>, vector<8x32xf32>,
      %230 = vector.extract_strided_slice %207 {offsets = [0, 0, 0], sizes = [8, 1, 2], strides = [1, 1, 1]} : vector<8x4x2xf32> to vector<8x1x2xf32>
      %231 = vector.shape_cast %230 : vector<8x1x2xf32> to vector<8x2xf32>
      %c0_114 = arith.constant 0 : index
      %c0_115 = arith.constant 0 : index
      %232 = vector.load %arg20[%c0_114, %c0_115] : memref<8x2xf32, #tpu.memory_space<vmem>>, vector<8x2xf32>
      tpu.vector_store %arg20[%c0_114, %c0_115], %231 {strides = array<i32>} : memref<8x2xf32, #tpu.memory_space<vmem>>, vector<8x2xf32>,
    } else {
    }
    %c0 = arith.constant 0 : index
    %c0_1 = arith.constant 0 : index
    %3 = vector.load %arg19[%c0, %c0_1] : memref<8x32xf32, #tpu.memory_space<vmem>>, vector<8x32xf32>
    %c0_2 = arith.constant 0 : index
    %c0_3 = arith.constant 0 : index
    %4 = vector.load %arg20[%c0_2, %c0_3] : memref<8x2xf32, #tpu.memory_space<vmem>>, vector<8x2xf32>
    %c0_4 = arith.constant 0 : index
    %c0_5 = arith.constant 0 : index
    %c0_6 = arith.constant 0 : index
    %5 = vector.load %arg18[%c0_4, %c0_5, %c0_6] : memref<8x4x32xf32, #tpu.memory_space<vmem>>, vector<8x4x32xf32>
    %6 = vector.shape_cast %3 : vector<8x32xf32> to vector<8x1x32xf32>
    %7 = vector.broadcast %6 : vector<8x1x32xf32> to vector<8x4x32xf32>
    %8 = arith.mulf %7, %5 : vector<8x4x32xf32>
    %cst = arith.constant dense<0.000000e+00> : vector<8x4xf32>
    %9 = vector.multi_reduction <add>, %8, %cst [2] : vector<8x4x32xf32> to vector<8x4xf32>
    %cst_7 = arith.constant dense<0xFF800000> : vector<8xf32>
    %10 = vector.multi_reduction <maximumf>, %9, %cst_7 [1] : vector<8x4xf32> to vector<8xf32>
    %11 = vector.shape_cast %10 : vector<8xf32> to vector<8x1xf32>
    %12 = vector.broadcast %11 : vector<8x1xf32> to vector<8x4xf32>
    %13 = arith.subf %9, %12 : vector<8x4xf32>
    %14 = math.exp %13 : vector<8x4xf32>
    %cst_8 = arith.constant dense<0.000000e+00> : vector<8xf32>
    %15 = vector.multi_reduction <add>, %14, %cst_8 [1] : vector<8x4xf32> to vector<8xf32>
    %16 = vector.shape_cast %15 : vector<8xf32> to vector<8x1xf32>
    %17 = vector.broadcast %16 : vector<8x1xf32> to vector<8x4xf32>
    %18 = arith.divf %14, %17 : vector<8x4xf32>
    %19 = vector.shape_cast %18 : vector<8x4xf32> to vector<8x4x1xf32>
    %20 = vector.broadcast %19 : vector<8x4x1xf32> to vector<8x4x32xf32>
    %21 = arith.mulf %20, %5 : vector<8x4x32xf32>
    %cst_9 = arith.constant dense<0.000000e+00> : vector<8x32xf32>
    %22 = vector.multi_reduction <add>, %21, %cst_9 [1] : vector<8x4x32xf32> to vector<8x32xf32>
    %23 = arith.index_cast %arg0 : i32 to index
    %c0_10 = arith.constant 0 : index
    %c0_11 = arith.constant 0 : index
    %24 = vector.load %arg4[%23, %c0_10, %c0_11] : memref<7x8x4xf32, #tpu.memory_space<vmem>>, vector<1x8x4xf32>
    %25 = vector.shape_cast %24 : vector<1x8x4xf32> to vector<8x4xf32>
    %c0_12 = arith.constant 0 : index
    %c0_13 = arith.constant 0 : index
    %26 = vector.load %arg9[%c0_12, %c0_13] : memref<2x32xf32, #tpu.memory_space<vmem>>, vector<2x32xf32>
    %cst_14 = arith.constant dense<0.000000e+00> : vector<8x32xf32>
    %27 = tpu.matmul %4, %26, %cst_14 {dimension_numbers = #tpu.dot_dimension_numbers<[1], [0], [0], [1], [0, 0, 1, 1], [], []>} : vector<8x2xf32>, vector<2x32xf32>, vector<8x32xf32> -> vector<8x32xf32>
    %c0_15 = arith.constant 0 : index
    %c0_16 = arith.constant 0 : index
    %28 = vector.load %arg10[%c0_15, %c0_16] : memref<4x32xf32, #tpu.memory_space<vmem>>, vector<4x32xf32>
    %cst_17 = arith.constant dense<0.000000e+00> : vector<8x32xf32>
    %29 = tpu.matmul %25, %28, %cst_17 {dimension_numbers = #tpu.dot_dimension_numbers<[1], [0], [0], [1], [0, 0, 1, 1], [], []>} : vector<8x4xf32>, vector<4x32xf32>, vector<8x32xf32> -> vector<8x32xf32>
    %30 = arith.addf %27, %29 : vector<8x32xf32>
    %c0_18 = arith.constant 0 : index
    %c0_19 = arith.constant 0 : index
    %31 = vector.load %arg11[%c0_18, %c0_19] : memref<32x32xf32, #tpu.memory_space<vmem>>, vector<32x32xf32>
    %cst_20 = arith.constant dense<0.000000e+00> : vector<8x32xf32>
    %32 = tpu.matmul %22, %31, %cst_20 {dimension_numbers = #tpu.dot_dimension_numbers<[1], [0], [0], [1], [0, 0, 1, 1], [], []>} : vector<8x32xf32>, vector<32x32xf32>, vector<8x32xf32> -> vector<8x32xf32>
    %33 = arith.addf %30, %32 : vector<8x32xf32>
    %c0_21 = arith.constant 0 : index
    %c0_22 = arith.constant 0 : index
    %34 = vector.load %arg12[%c0_21, %c0_22] : memref<32x32xf32, #tpu.memory_space<vmem>>, vector<32x32xf32>
    %cst_23 = arith.constant dense<0.000000e+00> : vector<8x32xf32>
    %35 = tpu.matmul %3, %34, %cst_23 {dimension_numbers = #tpu.dot_dimension_numbers<[1], [0], [0], [1], [0, 0, 1, 1], [], []>} : vector<8x32xf32>, vector<32x32xf32>, vector<8x32xf32> -> vector<8x32xf32>
    %36 = arith.addf %33, %35 : vector<8x32xf32>
    %c0_24 = arith.constant 0 : index
    %c0_25 = arith.constant 0 : index
    %37 = vector.load %arg13[%c0_24, %c0_25] : memref<1x32xf32, #tpu.memory_space<vmem>>, vector<1x32xf32>
    %38 = vector.broadcast %37 : vector<1x32xf32> to vector<8x32xf32>
    %39 = arith.addf %36, %38 : vector<8x32xf32>
    %40 = math.tanh %39 : vector<8x32xf32>
    %41 = arith.truncf %40 : vector<8x32xf32> to vector<8x32xbf16>
    %42 = tpu.iota {dimensions = array<i32: 1>} : vector<8x1280xi32>
    %cst_26 = arith.constant 0xFF800000 : f32
    %43 = vector.broadcast %cst_26 : f32 to vector<8x1xf32>
    %c0_i32_27 = arith.constant 0 : i32
    %44 = vector.broadcast %c0_i32_27 : i32 to vector<8x1xi32>
    %c0_28 = arith.constant 0 : index
    %c0_29 = arith.constant 0 : index
    %45 = vector.load %arg14[%c0_28, %c0_29] : memref<32x6400xbf16, #tpu.memory_space<vmem>>, vector<32x1280xbf16>
    %cst_30 = arith.constant dense<0.000000e+00> : vector<8x1280xf32>
    %46 = tpu.matmul %41, %45, %cst_30 {dimension_numbers = #tpu.dot_dimension_numbers<[1], [0], [0], [1], [0, 0, 1, 1], [], []>} : vector<8x32xbf16>, vector<32x1280xbf16>, vector<8x1280xf32> -> vector<8x1280xf32>
    %c0_31 = arith.constant 0 : index
    %c0_32 = arith.constant 0 : index
    %47 = vector.load %arg15[%c0_31, %c0_32] : memref<1x6400xf32, #tpu.memory_space<vmem>>, vector<1x1280xf32>
    %48 = vector.broadcast %47 : vector<1x1280xf32> to vector<8x1280xf32>
    %49 = arith.addf %46, %48 : vector<8x1280xf32>
    %c0_33 = arith.constant 0 : index
    %c0_34 = arith.constant 0 : index
    %c0_35 = arith.constant 0 : index
    %50 = vector.load %arg16[%c0_33, %c0_34, %c0_35] : memref<1x8x6400xf32, #tpu.memory_space<vmem>>, vector<1x8x1280xf32>
    %51 = vector.shape_cast %50 : vector<1x8x1280xf32> to vector<8x1280xf32>
    %52 = vector.shape_cast %49 : vector<8x1280xf32> to vector<1x8x1280xf32>
    tpu.vector_store %arg16[%c0_33, %c0_34, %c0_35], %52 {strides = array<i32>} : memref<1x8x6400xf32, #tpu.memory_space<vmem>>, vector<1x8x1280xf32>,
    %cst_36 = arith.constant dense<0xFF800000> : vector<8xf32>
    %53 = vector.multi_reduction <maximumf>, %49, %cst_36 [1] : vector<8x1280xf32> to vector<8xf32>
    %54 = vector.shape_cast %53 : vector<8xf32> to vector<8x1xf32>
    %55 = vector.broadcast %54 : vector<8x1xf32> to vector<8x1280xf32>
    %56 = arith.cmpf oeq, %49, %55 : vector<8x1280xf32>
    %c1280_i32 = arith.constant 1280 : i32
    %57 = vector.broadcast %c1280_i32 : i32 to vector<8x1280xi32>
    %58 = arith.select %56, %42, %57 : vector<8x1280xi1>, vector<8x1280xi32>
    %cst_37 = arith.constant dense<2147483647> : vector<8xi32>
    %59 = vector.multi_reduction <minsi>, %58, %cst_37 [1] : vector<8x1280xi32> to vector<8xi32>
    %60 = vector.shape_cast %59 : vector<8xi32> to vector<8x1xi32>
    %c0_i32_38 = arith.constant 0 : i32
    %61 = vector.broadcast %c0_i32_38 : i32 to vector<8x1xi32>
    %62 = arith.addi %60, %61 : vector<8x1xi32>
    %63 = arith.cmpf ogt, %54, %43 : vector<8x1xf32>
    %64 = arith.select %63, %62, %44 : vector<8x1xi1>, vector<8x1xi32>
    %65 = arith.select %63, %54, %43 : vector<8x1xi1>, vector<8x1xf32>
    %c0_39 = arith.constant 0 : index
    %c1280 = arith.constant 1280 : index
    %66 = vector.load %arg14[%c0_39, %c1280] : memref<32x6400xbf16, #tpu.memory_space<vmem>>, vector<32x1280xbf16>
    %cst_40 = arith.constant dense<0.000000e+00> : vector<8x1280xf32>
    %67 = tpu.matmul %41, %66, %cst_40 {dimension_numbers = #tpu.dot_dimension_numbers<[1], [0], [0], [1], [0, 0, 1, 1], [], []>} : vector<8x32xbf16>, vector<32x1280xbf16>, vector<8x1280xf32> -> vector<8x1280xf32>
    %c0_41 = arith.constant 0 : index
    %c1280_42 = arith.constant 1280 : index
    %68 = vector.load %arg15[%c0_41, %c1280_42] : memref<1x6400xf32, #tpu.memory_space<vmem>>, vector<1x1280xf32>
    %69 = vector.broadcast %68 : vector<1x1280xf32> to vector<8x1280xf32>
    %70 = arith.addf %67, %69 : vector<8x1280xf32>
    %c0_43 = arith.constant 0 : index
    %c0_44 = arith.constant 0 : index
    %c1280_45 = arith.constant 1280 : index
    %71 = vector.load %arg16[%c0_43, %c0_44, %c1280_45] : memref<1x8x6400xf32, #tpu.memory_space<vmem>>, vector<1x8x1280xf32>
    %72 = vector.shape_cast %71 : vector<1x8x1280xf32> to vector<8x1280xf32>
    %73 = vector.shape_cast %70 : vector<8x1280xf32> to vector<1x8x1280xf32>
    tpu.vector_store %arg16[%c0_43, %c0_44, %c1280_45], %73 {strides = array<i32>} : memref<1x8x6400xf32, #tpu.memory_space<vmem>>, vector<1x8x1280xf32>,
    %cst_46 = arith.constant dense<0xFF800000> : vector<8xf32>
    %74 = vector.multi_reduction <maximumf>, %70, %cst_46 [1] : vector<8x1280xf32> to vector<8xf32>
    %75 = vector.shape_cast %74 : vector<8xf32> to vector<8x1xf32>
    %76 = vector.broadcast %75 : vector<8x1xf32> to vector<8x1280xf32>
    %77 = arith.cmpf oeq, %70, %76 : vector<8x1280xf32>
    %c1280_i32_47 = arith.constant 1280 : i32
    %78 = vector.broadcast %c1280_i32_47 : i32 to vector<8x1280xi32>
    %79 = arith.select %77, %42, %78 : vector<8x1280xi1>, vector<8x1280xi32>
    %cst_48 = arith.constant dense<2147483647> : vector<8xi32>
    %80 = vector.multi_reduction <minsi>, %79, %cst_48 [1] : vector<8x1280xi32> to vector<8xi32>
    %81 = vector.shape_cast %80 : vector<8xi32> to vector<8x1xi32>
    %c1280_i32_49 = arith.constant 1280 : i32
    %82 = vector.broadcast %c1280_i32_49 : i32 to vector<8x1xi32>
    %83 = arith.addi %81, %82 : vector<8x1xi32>
    %84 = arith.cmpf ogt, %75, %65 : vector<8x1xf32>
    %85 = arith.select %84, %83, %64 : vector<8x1xi1>, vector<8x1xi32>
    %86 = arith.select %84, %75, %65 : vector<8x1xi1>, vector<8x1xf32>
    %c0_50 = arith.constant 0 : index
    %c2560 = arith.constant 2560 : index
    %87 = vector.load %arg14[%c0_50, %c2560] : memref<32x6400xbf16, #tpu.memory_space<vmem>>, vector<32x1280xbf16>
    %cst_51 = arith.constant dense<0.000000e+00> : vector<8x1280xf32>
    %88 = tpu.matmul %41, %87, %cst_51 {dimension_numbers = #tpu.dot_dimension_numbers<[1], [0], [0], [1], [0, 0, 1, 1], [], []>} : vector<8x32xbf16>, vector<32x1280xbf16>, vector<8x1280xf32> -> vector<8x1280xf32>
    %c0_52 = arith.constant 0 : index
    %c2560_53 = arith.constant 2560 : index
    %89 = vector.load %arg15[%c0_52, %c2560_53] : memref<1x6400xf32, #tpu.memory_space<vmem>>, vector<1x1280xf32>
    %90 = vector.broadcast %89 : vector<1x1280xf32> to vector<8x1280xf32>
    %91 = arith.addf %88, %90 : vector<8x1280xf32>
    %c0_54 = arith.constant 0 : index
    %c0_55 = arith.constant 0 : index
    %c2560_56 = arith.constant 2560 : index
    %92 = vector.load %arg16[%c0_54, %c0_55, %c2560_56] : memref<1x8x6400xf32, #tpu.memory_space<vmem>>, vector<1x8x1280xf32>
    %93 = vector.shape_cast %92 : vector<1x8x1280xf32> to vector<8x1280xf32>
    %94 = vector.shape_cast %91 : vector<8x1280xf32> to vector<1x8x1280xf32>
    tpu.vector_store %arg16[%c0_54, %c0_55, %c2560_56], %94 {strides = array<i32>} : memref<1x8x6400xf32, #tpu.memory_space<vmem>>, vector<1x8x1280xf32>,
    %cst_57 = arith.constant dense<0xFF800000> : vector<8xf32>
    %95 = vector.multi_reduction <maximumf>, %91, %cst_57 [1] : vector<8x1280xf32> to vector<8xf32>
    %96 = vector.shape_cast %95 : vector<8xf32> to vector<8x1xf32>
    %97 = vector.broadcast %96 : vector<8x1xf32> to vector<8x1280xf32>
    %98 = arith.cmpf oeq, %91, %97 : vector<8x1280xf32>
    %c1280_i32_58 = arith.constant 1280 : i32
    %99 = vector.broadcast %c1280_i32_58 : i32 to vector<8x1280xi32>
    %100 = arith.select %98, %42, %99 : vector<8x1280xi1>, vector<8x1280xi32>
    %cst_59 = arith.constant dense<2147483647> : vector<8xi32>
    %101 = vector.multi_reduction <minsi>, %100, %cst_59 [1] : vector<8x1280xi32> to vector<8xi32>
    %102 = vector.shape_cast %101 : vector<8xi32> to vector<8x1xi32>
    %c2560_i32 = arith.constant 2560 : i32
    %103 = vector.broadcast %c2560_i32 : i32 to vector<8x1xi32>
    %104 = arith.addi %102, %103 : vector<8x1xi32>
    %105 = arith.cmpf ogt, %96, %86 : vector<8x1xf32>
    %106 = arith.select %105, %104, %85 : vector<8x1xi1>, vector<8x1xi32>
    %107 = arith.select %105, %96, %86 : vector<8x1xi1>, vector<8x1xf32>
    %c0_60 = arith.constant 0 : index
    %c3840 = arith.constant 3840 : index
    %108 = vector.load %arg14[%c0_60, %c3840] : memref<32x6400xbf16, #tpu.memory_space<vmem>>, vector<32x1280xbf16>
    %cst_61 = arith.constant dense<0.000000e+00> : vector<8x1280xf32>
    %109 = tpu.matmul %41, %108, %cst_61 {dimension_numbers = #tpu.dot_dimension_numbers<[1], [0], [0], [1], [0, 0, 1, 1], [], []>} : vector<8x32xbf16>, vector<32x1280xbf16>, vector<8x1280xf32> -> vector<8x1280xf32>
    %c0_62 = arith.constant 0 : index
    %c3840_63 = arith.constant 3840 : index
    %110 = vector.load %arg15[%c0_62, %c3840_63] : memref<1x6400xf32, #tpu.memory_space<vmem>>, vector<1x1280xf32>
    %111 = vector.broadcast %110 : vector<1x1280xf32> to vector<8x1280xf32>
    %112 = arith.addf %109, %111 : vector<8x1280xf32>
    %c0_64 = arith.constant 0 : index
    %c0_65 = arith.constant 0 : index
    %c3840_66 = arith.constant 3840 : index
    %113 = vector.load %arg16[%c0_64, %c0_65, %c3840_66] : memref<1x8x6400xf32, #tpu.memory_space<vmem>>, vector<1x8x1280xf32>
    %114 = vector.shape_cast %113 : vector<1x8x1280xf32> to vector<8x1280xf32>
    %115 = vector.shape_cast %112 : vector<8x1280xf32> to vector<1x8x1280xf32>
    tpu.vector_store %arg16[%c0_64, %c0_65, %c3840_66], %115 {strides = array<i32>} : memref<1x8x6400xf32, #tpu.memory_space<vmem>>, vector<1x8x1280xf32>,
    %cst_67 = arith.constant dense<0xFF800000> : vector<8xf32>
    %116 = vector.multi_reduction <maximumf>, %112, %cst_67 [1] : vector<8x1280xf32> to vector<8xf32>
    %117 = vector.shape_cast %116 : vector<8xf32> to vector<8x1xf32>
    %118 = vector.broadcast %117 : vector<8x1xf32> to vector<8x1280xf32>
    %119 = arith.cmpf oeq, %112, %118 : vector<8x1280xf32>
    %c1280_i32_68 = arith.constant 1280 : i32
    %120 = vector.broadcast %c1280_i32_68 : i32 to vector<8x1280xi32>
    %121 = arith.select %119, %42, %120 : vector<8x1280xi1>, vector<8x1280xi32>
    %cst_69 = arith.constant dense<2147483647> : vector<8xi32>
    %122 = vector.multi_reduction <minsi>, %121, %cst_69 [1] : vector<8x1280xi32> to vector<8xi32>
    %123 = vector.shape_cast %122 : vector<8xi32> to vector<8x1xi32>
    %c3840_i32 = arith.constant 3840 : i32
    %124 = vector.broadcast %c3840_i32 : i32 to vector<8x1xi32>
    %125 = arith.addi %123, %124 : vector<8x1xi32>
    %126 = arith.cmpf ogt, %117, %107 : vector<8x1xf32>
    %127 = arith.select %126, %125, %106 : vector<8x1xi1>, vector<8x1xi32>
    %128 = arith.select %126, %117, %107 : vector<8x1xi1>, vector<8x1xf32>
    %c0_70 = arith.constant 0 : index
    %c5120 = arith.constant 5120 : index
    %129 = vector.load %arg14[%c0_70, %c5120] : memref<32x6400xbf16, #tpu.memory_space<vmem>>, vector<32x1280xbf16>
    %cst_71 = arith.constant dense<0.000000e+00> : vector<8x1280xf32>
    %130 = tpu.matmul %41, %129, %cst_71 {dimension_numbers = #tpu.dot_dimension_numbers<[1], [0], [0], [1], [0, 0, 1, 1], [], []>} : vector<8x32xbf16>, vector<32x1280xbf16>, vector<8x1280xf32> -> vector<8x1280xf32>
    %c0_72 = arith.constant 0 : index
    %c5120_73 = arith.constant 5120 : index
    %131 = vector.load %arg15[%c0_72, %c5120_73] : memref<1x6400xf32, #tpu.memory_space<vmem>>, vector<1x1280xf32>
    %132 = vector.broadcast %131 : vector<1x1280xf32> to vector<8x1280xf32>
    %133 = arith.addf %130, %132 : vector<8x1280xf32>
    %c0_74 = arith.constant 0 : index
    %c0_75 = arith.constant 0 : index
    %c5120_76 = arith.constant 5120 : index
    %134 = vector.load %arg16[%c0_74, %c0_75, %c5120_76] : memref<1x8x6400xf32, #tpu.memory_space<vmem>>, vector<1x8x1280xf32>
    %135 = vector.shape_cast %134 : vector<1x8x1280xf32> to vector<8x1280xf32>
    %136 = vector.shape_cast %133 : vector<8x1280xf32> to vector<1x8x1280xf32>
    tpu.vector_store %arg16[%c0_74, %c0_75, %c5120_76], %136 {strides = array<i32>} : memref<1x8x6400xf32, #tpu.memory_space<vmem>>, vector<1x8x1280xf32>,
    %cst_77 = arith.constant dense<0xFF800000> : vector<8xf32>
    %137 = vector.multi_reduction <maximumf>, %133, %cst_77 [1] : vector<8x1280xf32> to vector<8xf32>
    %138 = vector.shape_cast %137 : vector<8xf32> to vector<8x1xf32>
    %139 = vector.broadcast %138 : vector<8x1xf32> to vector<8x1280xf32>
    %140 = arith.cmpf oeq, %133, %139 : vector<8x1280xf32>
    %c1280_i32_78 = arith.constant 1280 : i32
    %141 = vector.broadcast %c1280_i32_78 : i32 to vector<8x1280xi32>
    %142 = arith.select %140, %42, %141 : vector<8x1280xi1>, vector<8x1280xi32>
    %cst_79 = arith.constant dense<2147483647> : vector<8xi32>
    %143 = vector.multi_reduction <minsi>, %142, %cst_79 [1] : vector<8x1280xi32> to vector<8xi32>
    %144 = vector.shape_cast %143 : vector<8xi32> to vector<8x1xi32>
    %c5120_i32 = arith.constant 5120 : i32
    %145 = vector.broadcast %c5120_i32 : i32 to vector<8x1xi32>
    %146 = arith.addi %144, %145 : vector<8x1xi32>
    %147 = arith.cmpf ogt, %138, %128 : vector<8x1xf32>
    %148 = arith.select %147, %146, %127 : vector<8x1xi1>, vector<8x1xi32>
    %149 = arith.sitofp %148 : vector<8x1xi32> to vector<8x1xf32>
    %cst_80 = arith.constant 0.0114942528 : f32
    %150 = vector.broadcast %cst_80 : f32 to vector<8x1xf32>
    %151 = arith.mulf %149, %150 : vector<8x1xf32>
    %152 = math.floor %151 : vector<8x1xf32>
    %cst_81 = arith.constant 8.700000e+01 : f32
    %153 = vector.broadcast %cst_81 : f32 to vector<8x1xf32>
    %154 = arith.mulf %153, %152 : vector<8x1xf32>
    %155 = arith.subf %149, %154 : vector<8x1xf32>
    %cst_82 = arith.constant 8.700000e+01 : f32
    %156 = vector.broadcast %cst_82 : f32 to vector<8x1xf32>
    %157 = arith.cmpf oge, %155, %156 : vector<8x1xf32>
    %cst_83 = arith.constant 1.000000e+00 : f32
    %158 = vector.broadcast %cst_83 : f32 to vector<8x1xf32>
    %159 = arith.addf %152, %158 : vector<8x1xf32>
    %160 = arith.select %157, %159, %152 : vector<8x1xi1>, vector<8x1xf32>
    %cst_84 = arith.constant 8.700000e+01 : f32
    %161 = vector.broadcast %cst_84 : f32 to vector<8x1xf32>
    %162 = arith.subf %155, %161 : vector<8x1xf32>
    %163 = arith.select %157, %162, %155 : vector<8x1xi1>, vector<8x1xf32>
    %cst_85 = arith.constant 0.000000e+00 : f32
    %164 = vector.broadcast %cst_85 : f32 to vector<8x1xf32>
    %165 = arith.cmpf olt, %163, %164 : vector<8x1xf32>
    %cst_86 = arith.constant 1.000000e+00 : f32
    %166 = vector.broadcast %cst_86 : f32 to vector<8x1xf32>
    %167 = arith.subf %160, %166 : vector<8x1xf32>
    %168 = arith.select %165, %167, %160 : vector<8x1xi1>, vector<8x1xf32>
    %cst_87 = arith.constant 8.700000e+01 : f32
    %169 = vector.broadcast %cst_87 : f32 to vector<8x1xf32>
    %170 = arith.addf %163, %169 : vector<8x1xf32>
    %171 = arith.select %165, %170, %163 : vector<8x1xi1>, vector<8x1xf32>
    %172 = tpu.concatenate %168, %171 in 1 : vector<8x1xf32>, vector<8x1xf32> -> vector<8x2xf32>
    %173 = arith.index_cast %arg0 : i32 to index
    %174 = memref.load %arg2[%173] : memref<7xi32, #tpu.memory_space<smem>>
    %c1_i32 = arith.constant 1 : i32
    %175 = arith.cmpi eq, %174, %c1_i32 : i32
    %176 = arith.extui %175 : i1 to i32
    %177 = arith.sitofp %176 : i32 to f32
    %178 = arith.index_cast %arg0 : i32 to index
    %c0_88 = arith.constant 0 : index
    %c0_89 = arith.constant 0 : index
    %179 = vector.load %arg5[%178, %c0_88, %c0_89] : memref<7x8x2xf32, #tpu.memory_space<vmem>>, vector<1x8x2xf32>
    %180 = vector.shape_cast %179 : vector<1x8x2xf32> to vector<8x2xf32>
    %181 = vector.broadcast %177 : f32 to vector<8x2xf32>
    %182 = arith.mulf %181, %180 : vector<8x2xf32>
    %cst_90 = arith.constant 1.000000e+00 : f32
    %183 = arith.subf %cst_90, %177 : f32
    %184 = vector.broadcast %183 : f32 to vector<8x2xf32>
    %185 = arith.mulf %184, %172 : vector<8x2xf32>
    %186 = arith.addf %182, %185 : vector<8x2xf32>
    %187 = arith.index_cast %arg0 : i32 to index
    %c0_91 = arith.constant 0 : index
    %c0_92 = arith.constant 0 : index
    %188 = vector.load %arg17[%187, %c0_91, %c0_92] : memref<7x8x2xf32, #tpu.memory_space<vmem>>, vector<1x8x2xf32>
    %189 = vector.shape_cast %188 : vector<1x8x2xf32> to vector<8x2xf32>
    %190 = vector.shape_cast %186 : vector<8x2xf32> to vector<1x8x2xf32>
    tpu.vector_store %arg17[%187, %c0_91, %c0_92], %190 {strides = array<i32>} : memref<7x8x2xf32, #tpu.memory_space<vmem>>, vector<1x8x2xf32>,
    %191 = arith.index_cast %arg0 : i32 to index
    %192 = memref.load %arg1[%191] : memref<7xi32, #tpu.memory_space<smem>>
    %c1_i32_93 = arith.constant 1 : i32
    %193 = arith.cmpi eq, %192, %c1_i32_93 : i32
    %194 = arith.extui %193 : i1 to i32
    %195 = arith.sitofp %194 : i32 to f32
    %c0_94 = arith.constant 0 : index
    %c0_95 = arith.constant 0 : index
    %196 = vector.load %arg19[%c0_94, %c0_95] : memref<8x32xf32, #tpu.memory_space<vmem>>, vector<8x32xf32>
    tpu.vector_store %arg19[%c0_94, %c0_95], %40 {strides = array<i32>} : memref<8x32xf32, #tpu.memory_space<vmem>>, vector<8x32xf32>,
    %197 = arith.index_cast %arg0 : i32 to index
    %c0_96 = arith.constant 0 : index
    %c0_97 = arith.constant 0 : index
    %198 = vector.load %arg6[%197, %c0_96, %c0_97] : memref<7x8x2xf32, #tpu.memory_space<vmem>>, vector<1x8x2xf32>
    %199 = vector.shape_cast %198 : vector<1x8x2xf32> to vector<8x2xf32>
    %200 = vector.broadcast %195 : f32 to vector<8x2xf32>
    %201 = arith.mulf %200, %199 : vector<8x2xf32>
    %cst_98 = arith.constant 1.000000e+00 : f32
    %202 = arith.subf %cst_98, %195 : f32
    %203 = vector.broadcast %202 : f32 to vector<8x2xf32>
    %204 = arith.mulf %203, %186 : vector<8x2xf32>
    %205 = arith.addf %201, %204 : vector<8x2xf32>
    %c0_99 = arith.constant 0 : index
    %c0_100 = arith.constant 0 : index
    %206 = vector.load %arg20[%c0_99, %c0_100] : memref<8x2xf32, #tpu.memory_space<vmem>>, vector<8x2xf32>
    tpu.vector_store %arg20[%c0_99, %c0_100], %205 {strides = array<i32>} : memref<8x2xf32, #tpu.memory_space<vmem>>, vector<8x2xf32>,
    return
  }
  func.func @transform_0(%arg0: i32, %arg1: memref<7xi32, #tpu.memory_space<smem>>, %arg2: memref<7xi32, #tpu.memory_space<smem>>) -> (i32, i32, i32) {
    %c0_i32 = arith.constant 0 : i32
    %c0_i32_0 = arith.constant 0 : i32
    %c0_i32_1 = arith.constant 0 : i32
    %c0_i32_2 = arith.constant 0 : i32
    return %c0_i32, %c0_i32_0, %c0_i32_1 : i32, i32, i32
  }
  func.func @transform_1(%arg0: i32, %arg1: memref<7xi32, #tpu.memory_space<smem>>, %arg2: memref<7xi32, #tpu.memory_space<smem>>) -> (i32, i32, i32) {
    %c0_i32 = arith.constant 0 : i32
    %c0_i32_0 = arith.constant 0 : i32
    %c0_i32_1 = arith.constant 0 : i32
    %c0_i32_2 = arith.constant 0 : i32
    return %c0_i32, %c0_i32_0, %c0_i32_1 : i32, i32, i32
  }
  func.func @transform_2(%arg0: i32, %arg1: memref<7xi32, #tpu.memory_space<smem>>, %arg2: memref<7xi32, #tpu.memory_space<smem>>) -> (i32, i32, i32) {
    %c0_i32 = arith.constant 0 : i32
    %c0_i32_0 = arith.constant 0 : i32
    %c0_i32_1 = arith.constant 0 : i32
    %c0_i32_2 = arith.constant 0 : i32
    return %c0_i32, %c0_i32_0, %c0_i32_1 : i32, i32, i32
  }
  func.func @transform_3(%arg0: i32, %arg1: memref<7xi32, #tpu.memory_space<smem>>, %arg2: memref<7xi32, #tpu.memory_space<smem>>) -> (i32, i32, i32) {
    %c0_i32 = arith.constant 0 : i32
    %c0_i32_0 = arith.constant 0 : i32
    %c0_i32_1 = arith.constant 0 : i32
    %c0_i32_2 = arith.constant 0 : i32
    return %c0_i32, %c0_i32_0, %c0_i32_1 : i32, i32, i32
  }
  func.func @transform_4(%arg0: i32, %arg1: memref<7xi32, #tpu.memory_space<smem>>, %arg2: memref<7xi32, #tpu.memory_space<smem>>) -> (i32, i32) {
    %c0_i32 = arith.constant 0 : i32
    %c0_i32_0 = arith.constant 0 : i32
    %c0_i32_1 = arith.constant 0 : i32
    return %c0_i32, %c0_i32_0 : i32, i32
  }
  func.func @transform_5(%arg0: i32, %arg1: memref<7xi32, #tpu.memory_space<smem>>, %arg2: memref<7xi32, #tpu.memory_space<smem>>) -> (i32, i32) {
    %c0_i32 = arith.constant 0 : i32
    %c0_i32_0 = arith.constant 0 : i32
    %c0_i32_1 = arith.constant 0 : i32
    return %c0_i32, %c0_i32_0 : i32, i32
  }
  func.func @transform_6(%arg0: i32, %arg1: memref<7xi32, #tpu.memory_space<smem>>, %arg2: memref<7xi32, #tpu.memory_space<smem>>) -> (i32, i32) {
    %c0_i32 = arith.constant 0 : i32
    %c0_i32_0 = arith.constant 0 : i32
    %c0_i32_1 = arith.constant 0 : i32
    return %c0_i32, %c0_i32_0 : i32, i32
  }
  func.func @transform_7(%arg0: i32, %arg1: memref<7xi32, #tpu.memory_space<smem>>, %arg2: memref<7xi32, #tpu.memory_space<smem>>) -> (i32, i32) {
    %c0_i32 = arith.constant 0 : i32
    %c0_i32_0 = arith.constant 0 : i32
    %c0_i32_1 = arith.constant 0 : i32
    return %c0_i32, %c0_i32_0 : i32, i32
  }
  func.func @transform_8(%arg0: i32, %arg1: memref<7xi32, #tpu.memory_space<smem>>, %arg2: memref<7xi32, #tpu.memory_space<smem>>) -> (i32, i32) {
    %c0_i32 = arith.constant 0 : i32
    %c0_i32_0 = arith.constant 0 : i32
    %c0_i32_1 = arith.constant 0 : i32
    return %c0_i32, %c0_i32_0 : i32, i32
  }
  func.func @transform_9(%arg0: i32, %arg1: memref<7xi32, #tpu.memory_space<smem>>, %arg2: memref<7xi32, #tpu.memory_space<smem>>) -> (i32, i32) {
    %c0_i32 = arith.constant 0 : i32
    %c0_i32_0 = arith.constant 0 : i32
    %c0_i32_1 = arith.constant 0 : i32
    return %c0_i32, %c0_i32_0 : i32, i32
  }
  func.func @transform_10(%arg0: i32, %arg1: memref<7xi32, #tpu.memory_space<smem>>, %arg2: memref<7xi32, #tpu.memory_space<smem>>) -> (i32, i32) {
    %c0_i32 = arith.constant 0 : i32
    %c0_i32_0 = arith.constant 0 : i32
    %c0_i32_1 = arith.constant 0 : i32
    return %c0_i32, %c0_i32_0 : i32, i32
  }
  func.func @transform_11(%arg0: i32, %arg1: memref<7xi32, #tpu.memory_space<smem>>, %arg2: memref<7xi32, #tpu.memory_space<smem>>) -> (i32, i32) {
    %c0_i32 = arith.constant 0 : i32
    %c0_i32_0 = arith.constant 0 : i32
    %c0_i32_1 = arith.constant 0 : i32
    return %c0_i32, %c0_i32_0 : i32, i32
  }
  func.func @transform_12(%arg0: i32, %arg1: memref<7xi32, #tpu.memory_space<smem>>, %arg2: memref<7xi32, #tpu.memory_space<smem>>) -> (i32, i32) {
    %c0_i32 = arith.constant 0 : i32
    %c0_i32_0 = arith.constant 0 : i32
    %c0_i32_1 = arith.constant 0 : i32
    return %c0_i32, %c0_i32_0 : i32, i32
  }
  func.func @transform_13(%arg0: i32, %arg1: memref<7xi32, #tpu.memory_space<smem>>, %arg2: memref<7xi32, #tpu.memory_space<smem>>) -> (i32, i32, i32) {
    %c0_i32 = arith.constant 0 : i32
    %c0_i32_0 = arith.constant 0 : i32
    %c0_i32_1 = arith.constant 0 : i32
    return %arg0, %c0_i32, %c0_i32_0 : i32, i32, i32
  }
  func.func @transform_14(%arg0: i32, %arg1: memref<7xi32, #tpu.memory_space<smem>>, %arg2: memref<7xi32, #tpu.memory_space<smem>>) -> (i32, i32, i32) {
    %c0_i32 = arith.constant 0 : i32
    %c0_i32_0 = arith.constant 0 : i32
    %c0_i32_1 = arith.constant 0 : i32
    %c0_i32_2 = arith.constant 0 : i32
    return %c0_i32, %c0_i32_0, %c0_i32_1 : i32, i32, i32
  }
}

</mosaic_0001>

<llo_original>
// kernel: tpu_custom_call.1
$region0: #{tpu_custom_call.1}
  #allocation0 [shape = 'u32[]', space=smem, size = 0x4, offset = 0x4, fixed_abs, tag = 'smem constant byte address 0x4 - core index']
  #allocation1 [shape = 'u32[144,128]{1,0:T(1,128)}', space=vmem, size = 0x12000, scoped, tag = 'internal scratch']
  #allocation2 [shape = 'f32[8,4,32]{2,1,0:T(4,128)}', space=vmem, size = 0x4000, scoped, tag = 'scratch operand']
  #allocation3 [shape = 'f32[8,32]{1,0:T(8,128)}', space=vmem, size = 0x1000, scoped, tag = 'scratch operand']
  #allocation4 [shape = 'f32[8,2]{1,0:T(8,128)}', space=vmem, size = 0x1000, scoped, tag = 'scratch operand']
  #allocation5 [shape = 's32[1]{0}', space=sflag, size = 0x4, scoped, tag = 'scoped memory for tpu_custom_call.1']
  #allocation6 [shape = 'u8[512]{0}', space=smem, size = 0x200, scoped, tag = 'prefetched SMEM operand 0']
  #allocation7 [shape = 'u8[512]{0}', space=smem, size = 0x200, scoped, tag = 'prefetched SMEM operand 1']
  %s0 = inlined_call_operand.hbm [shape: s32[7], index: 0, kind: input, shape index: {}]
  %s1 = inlined_call_operand.hbm [shape: s32[7], index: 1, kind: input, shape index: {}]
  %s2 = inlined_call_operand.vmem [shape: f32[8,4,2], index: 2, kind: input, shape index: {}]
  %s3 = inlined_call_operand.vmem [shape: f32[7,8,4], index: 3, kind: input, shape index: {}]
  %s4 = inlined_call_operand.vmem [shape: f32[7,8,2], index: 4, kind: input, shape index: {}]
  %s5 = inlined_call_operand.vmem [shape: f32[7,8,2], index: 5, kind: input, shape index: {}]
  %s6 = inlined_call_operand.hbm [shape: f32[2,32], index: 6, kind: input, shape index: {}]
  %s7 = inlined_call_operand.hbm [shape: f32[1,32], index: 7, kind: input, shape index: {}]
  %s8 = inlined_call_operand.hbm [shape: f32[2,32], index: 8, kind: input, shape index: {}]
  %s9 = inlined_call_operand.hbm [shape: f32[4,32], index: 9, kind: input, shape index: {}]
  %s10 = inlined_call_operand.hbm [shape: f32[32,32], index: 10, kind: input, shape index: {}]
  %s11 = inlined_call_operand.hbm [shape: f32[32,32], index: 11, kind: input, shape index: {}]
  %s12 = inlined_call_operand.hbm [shape: f32[1,32], index: 12, kind: input, shape index: {}]
  %s13 = inlined_call_operand.hbm [shape: bf16[32,6400], index: 13, kind: input, shape index: {}]
  %s14 = inlined_call_operand.hbm [shape: f32[1,6400], index: 14, kind: input, shape index: {}]
  %s15 = inlined_call_operand.hbm [shape: f32[7,8,6400], index: 15, kind: output, shape index: {0}]
  %s16 = inlined_call_operand.vmem [shape: f32[7,8,2], index: 16, kind: output, shape index: {1}]
  %17 = xla_tuple %s15, %s16
  %s18 = sld [smem:[#allocation0]]
  $region133: #{tpu_custom_call.1} parent=0
    _
  %s20 = ssub.s32 1, %s18
  %s21 = scalar_select 0, %s20, %s18
  %23 = dma.hbm_to_smem %s0, 16, [#allocation6], [#allocation5]
  %25 = dma.hbm_to_smem %s1, 16, [#allocation7], [#allocation5]
  %26 = dma.done [#allocation5], 32
  %27 = sfence
  $region1: #{tpu_custom_call.1} parent=0
    #allocation8 [shape = 'u8[1024]{0}', space=vmem, size = 0x400, scoped, tag = 'input window, operand 6, single buffered']
    #allocation9 [shape = 's32[2]{0}', space=sflag, size = 0x8, scoped, tag = 'scoped memory for tpu_custom_call.1']
    #allocation10 [shape = 's32[2]{0}', space=sflag, size = 0x8, scoped, tag = 'scoped memory for tpu_custom_call.1']
    #allocation11 [shape = 'u8[512]{0}', space=vmem, size = 0x400, scoped, tag = 'input window, operand 7, single buffered']
    #allocation12 [shape = 's32[1]{0}', space=sflag, size = 0x4, scoped, tag = 'scoped memory for tpu_custom_call.1']
    #allocation13 [shape = 'u8[1024]{0}', space=vmem, size = 0x400, scoped, tag = 'input window, operand 8, single buffered']
    #allocation14 [shape = 'u8[2048]{0}', space=vmem, size = 0x800, scoped, tag = 'input window, operand 9, single buffered']
    #allocation15 [shape = 's32[1]{0}', space=sflag, size = 0x4, scoped, tag = 'scoped memory for tpu_custom_call.1']
    #allocation16 [shape = 'u8[16384]{0}', space=vmem, size = 0x4000, scoped, tag = 'input window, operand 10, single buffered']
    #allocation17 [shape = 'u8[16384]{0}', space=vmem, size = 0x4000, scoped, tag = 'input window, operand 11, single buffered']
    #allocation18 [shape = 's32[1]{0}', space=sflag, size = 0x4, scoped, tag = 'scoped memory for tpu_custom_call.1']
    #allocation19 [shape = 'u8[512]{0}', space=vmem, size = 0x400, scoped, tag = 'input window, operand 12, single buffered']
    #allocation20 [shape = 'u8[409600]{0}', space=vmem, size = 0x64000, scoped, tag = 'input window, operand 13, single buffered']
    #allocation21 [shape = 's32[1]{0}', space=sflag, size = 0x4, scoped, tag = 'scoped memory for tpu_custom_call.1']
    #allocation22 [shape = 'u8[25600]{0}', space=vmem, size = 0x6400, scoped, tag = 'input window, operand 14, single buffered']
    #allocation23 [shape = 'u8[409600]{0}', space=vmem, size = 0x64000, scoped, tag = 'output window, operand 0']
    %28 = vsyncpa [#allocation9], 0
    %29 = vsyncpa [#allocation12], 0
    %30 = vsyncpa [#allocation15], 0
    %31 = vsyncpa [#allocation18], 0
    %32 = vsyncpa [#allocation21], 0
    %33 = vsyncpa [#allocation10], 0
    %s34 = scalar_lea.sflag [#allocation10], 1
    %35 = vsyncpa %s34, 0
    loop: start=0, step=1, limit=9
    $region2: #{tpu_custom_call.1} parent=1 // loop_pre_header
      _
    $region3: #{tpu_custom_call.1} parent=1 // loop_header
      %s37 = sphi 0, %s41
      %p38 = scmp.ge.s32.totalorder %s37, 9
      %s45 = sphi 0, %s45
      %s47 = sphi 0, %s45
      %s48 = sphi 0, %s47
      %s62 = sphi 0, %s48
      %s66 = sphi 0, %s66
      %s68 = sphi 0, %s66
      %s69 = sphi 0, %s68
      %s83 = sphi 0, %s69
      %s87 = sphi 0, %s87
      %s89 = sphi 0, %s87
      %s90 = sphi 0, %s89
      %s104 = sphi 0, %s90
      %s108 = sphi 0, %s108
      %s110 = sphi 0, %s108
      %s111 = sphi 0, %s110
      %s125 = sphi 0, %s111
      %s129 = sphi 0, %s129
      %s131 = sphi 0, %s129
      %s132 = sphi 0, %s131
      %s146 = sphi 0, %s132
      %s150 = sphi 0, %s150
      %s152 = sphi 0, %s150
      %s153 = sphi 0, %s152
      %s167 = sphi 0, %s153
      %s171 = sphi 0, %s171
      %s173 = sphi 0, %s171
      %s174 = sphi 0, %s173
      %s188 = sphi 0, %s174
      %s192 = sphi 0, %s192
      %s194 = sphi 0, %s192
      %s195 = sphi 0, %s194
      %s209 = sphi 0, %s195
      %s213 = sphi 0, %s213
      %s215 = sphi 0, %s213
      %s216 = sphi 0, %s215
      %s230 = sphi 0, %s216
      %s234 = sphi 0, %s234
      %s236 = sphi 0, %s234
      %s237 = sphi 0, %s236
      %s251 = sphi 0, %s237
      %s255 = sphi 0, %s255
      %s257 = sphi 0, %s255
      %s258 = sphi 0, %s257
      %s272 = sphi 0, %s258
      %s276 = sphi 0, %s276
      %s278 = sphi 0, %s276
      %s279 = sphi 0, %s278
      %s293 = sphi 0, %s279
      %s297 = sphi 0, %s297
      %s299 = sphi 0, %s297
      %s300 = sphi 0, %s299
      %s314 = sphi 0, %s300
      %s320 = sphi 0, %s322
      %s323 = sphi 0, %s320
      %s324 = sphi 0, %s323
      %s340 = sphi 0, %s324
      %s344 = sphi 0, %s344
      %s346 = sphi 0, %s344
      %s347 = sphi 0, %s346
      %s361 = sphi 0, %s347
    $region4: #{tpu_custom_call.1} parent=1 // loop_header_branch
      %40 = sbr.rel (%p38) target = $region8
    $region5: #{tpu_custom_call.1} parent=1 // loop_body
      %s42 = ssub.s32 %s37, 1
      %s43 = ssub.s32 %s37, 2
      %s44 = sadd.s32 %s37, 1
      %s46 = sadd.s32 %s45, 1
      %p49 = scmp.eq.s32.totalorder %s37, 6
      %p50 = scmp.ne.s32.totalorder %s45, %s47
      %p51 = scmp.eq.s32.totalorder %s37, 0
      %p52 = por %p50, %p51
      %p53 = scmp.ne.s32.totalorder %s45, %s47
      %p54 = scmp.eq.s32.totalorder %s42, 6
      %p55 = por %p53, %p54
      %p56 = scmp.ne.s32.totalorder %s47, %s48
      %p57 = scmp.eq.s32.totalorder %s42, 0
      %p58 = por %p56, %p57
      %p59 = scmp.ne.s32.totalorder %s47, %s48
      %p60 = scmp.eq.s32.totalorder %s43, 6
      %p61 = por %p59, %p60
      %p63 = scmp.ne.s32.totalorder %s48, %s62
      %p64 = scmp.eq.s32.totalorder %s43, 0
      %p65 = por %p63, %p64
      %s67 = sadd.s32 %s66, 1
      %p70 = scmp.eq.s32.totalorder %s37, 6
      %p71 = scmp.ne.s32.totalorder %s66, %s68
      %p72 = scmp.eq.s32.totalorder %s37, 0
      %p73 = por %p71, %p72
      %p74 = scmp.ne.s32.totalorder %s66, %s68
      %p75 = scmp.eq.s32.totalorder %s42, 6
      %p76 = por %p74, %p75
      %p77 = scmp.ne.s32.totalorder %s68, %s69
      %p78 = scmp.eq.s32.totalorder %s42, 0
      %p79 = por %p77, %p78
      %p80 = scmp.ne.s32.totalorder %s68, %s69
      %p81 = scmp.eq.s32.totalorder %s43, 6
      %p82 = por %p80, %p81
      %p84 = scmp.ne.s32.totalorder %s69, %s83
      %p85 = scmp.eq.s32.totalorder %s43, 0
      %p86 = por %p84, %p85
      %s88 = sadd.s32 %s87, 1
      %p91 = scmp.eq.s32.totalorder %s37, 6
      %p92 = scmp.ne.s32.totalorder %s87, %s89
      %p93 = scmp.eq.s32.totalorder %s37, 0
      %p94 = por %p92, %p93
      %p95 = scmp.ne.s32.totalorder %s87, %s89
      %p96 = scmp.eq.s32.totalorder %s42, 6
      %p97 = por %p95, %p96
      %p98 = scmp.ne.s32.totalorder %s89, %s90
      %p99 = scmp.eq.s32.totalorder %s42, 0
      %p100 = por %p98, %p99
      %p101 = scmp.ne.s32.totalorder %s89, %s90
      %p102 = scmp.eq.s32.totalorder %s43, 6
      %p103 = por %p101, %p102
      %p105 = scmp.ne.s32.totalorder %s90, %s104
      %p106 = scmp.eq.s32.totalorder %s43, 0
      %p107 = por %p105, %p106
      %s109 = sadd.s32 %s108, 1
      %p112 = scmp.eq.s32.totalorder %s37, 6
      %p113 = scmp.ne.s32.totalorder %s108, %s110
      %p114 = scmp.eq.s32.totalorder %s37, 0
      %p115 = por %p113, %p114
      %p116 = scmp.ne.s32.totalorder %s108, %s110
      %p117 = scmp.eq.s32.totalorder %s42, 6
      %p118 = por %p116, %p117
      %p119 = scmp.ne.s32.totalorder %s110, %s111
      %p120 = scmp.eq.s32.totalorder %s42, 0
      %p121 = por %p119, %p120
      %p122 = scmp.ne.s32.totalorder %s110, %s111
      %p123 = scmp.eq.s32.totalorder %s43, 6
      %p124 = por %p122, %p123
      %p126 = scmp.ne.s32.totalorder %s111, %s125
      %p127 = scmp.eq.s32.totalorder %s43, 0
      %p128 = por %p126, %p127
      %s130 = sadd.s32 %s129, 1
      %p133 = scmp.eq.s32.totalorder %s37, 6
      %p134 = scmp.ne.s32.totalorder %s129, %s131
      %p135 = scmp.eq.s32.totalorder %s37, 0
      %p136 = por %p134, %p135
      %p137 = scmp.ne.s32.totalorder %s129, %s131
      %p138 = scmp.eq.s32.totalorder %s42, 6
      %p139 = por %p137, %p138
      %p140 = scmp.ne.s32.totalorder %s131, %s132
      %p141 = scmp.eq.s32.totalorder %s42, 0
      %p142 = por %p140, %p141
      %p143 = scmp.ne.s32.totalorder %s131, %s132
      %p144 = scmp.eq.s32.totalorder %s43, 6
      %p145 = por %p143, %p144
      %p147 = scmp.ne.s32.totalorder %s132, %s146
      %p148 = scmp.eq.s32.totalorder %s43, 0
      %p149 = por %p147, %p148
      %s151 = sadd.s32 %s150, 1
      %p154 = scmp.eq.s32.totalorder %s37, 6
      %p155 = scmp.ne.s32.totalorder %s150, %s152
      %p156 = scmp.eq.s32.totalorder %s37, 0
      %p157 = por %p155, %p156
      %p158 = scmp.ne.s32.totalorder %s150, %s152
      %p159 = scmp.eq.s32.totalorder %s42, 6
      %p160 = por %p158, %p159
      %p161 = scmp.ne.s32.totalorder %s152, %s153
      %p162 = scmp.eq.s32.totalorder %s42, 0
      %p163 = por %p161, %p162
      %p164 = scmp.ne.s32.totalorder %s152, %s153
      %p165 = scmp.eq.s32.totalorder %s43, 6
      %p166 = por %p164, %p165
      %p168 = scmp.ne.s32.totalorder %s153, %s167
      %p169 = scmp.eq.s32.totalorder %s43, 0
      %p170 = por %p168, %p169
      %s172 = sadd.s32 %s171, 1
      %p175 = scmp.eq.s32.totalorder %s37, 6
      %p176 = scmp.ne.s32.totalorder %s171, %s173
      %p177 = scmp.eq.s32.totalorder %s37, 0
      %p178 = por %p176, %p177
      %p179 = scmp.ne.s32.totalorder %s171, %s173
      %p180 = scmp.eq.s32.totalorder %s42, 6
      %p181 = por %p179, %p180
      %p182 = scmp.ne.s32.totalorder %s173, %s174
      %p183 = scmp.eq.s32.totalorder %s42, 0
      %p184 = por %p182, %p183
      %p185 = scmp.ne.s32.totalorder %s173, %s174
      %p186 = scmp.eq.s32.totalorder %s43, 6
      %p187 = por %p185, %p186
      %p189 = scmp.ne.s32.totalorder %s174, %s188
      %p190 = scmp.eq.s32.totalorder %s43, 0
      %p191 = por %p189, %p190
      %s193 = sadd.s32 %s192, 1
      %p196 = scmp.eq.s32.totalorder %s37, 6
      %p197 = scmp.ne.s32.totalorder %s192, %s194
      %p198 = scmp.eq.s32.totalorder %s37, 0
      %p199 = por %p197, %p198
      %p200 = scmp.ne.s32.totalorder %s192, %s194
      %p201 = scmp.eq.s32.totalorder %s42, 6
      %p202 = por %p200, %p201
      %p203 = scmp.ne.s32.totalorder %s194, %s195
      %p204 = scmp.eq.s32.totalorder %s42, 0
      %p205 = por %p203, %p204
      %p206 = scmp.ne.s32.totalorder %s194, %s195
      %p207 = scmp.eq.s32.totalorder %s43, 6
      %p208 = por %p206, %p207
      %p210 = scmp.ne.s32.totalorder %s195, %s209
      %p211 = scmp.eq.s32.totalorder %s43, 0
      %p212 = por %p210, %p211
      %s214 = sadd.s32 %s213, 1
      %p217 = scmp.eq.s32.totalorder %s37, 6
      %p218 = scmp.ne.s32.totalorder %s213, %s215
      %p219 = scmp.eq.s32.totalorder %s37, 0
      %p220 = por %p218, %p219
      %p221 = scmp.ne.s32.totalorder %s213, %s215
      %p222 = scmp.eq.s32.totalorder %s42, 6
      %p223 = por %p221, %p222
      %p224 = scmp.ne.s32.totalorder %s215, %s216
      %p225 = scmp.eq.s32.totalorder %s42, 0
      %p226 = por %p224, %p225
      %p227 = scmp.ne.s32.totalorder %s215, %s216
      %p228 = scmp.eq.s32.totalorder %s43, 6
      %p229 = por %p227, %p228
      %p231 = scmp.ne.s32.totalorder %s216, %s230
      %p232 = scmp.eq.s32.totalorder %s43, 0
      %p233 = por %p231, %p232
      %s235 = sadd.s32 %s234, 1
      %p238 = scmp.eq.s32.totalorder %s37, 6
      %p239 = scmp.ne.s32.totalorder %s234, %s236
      %p240 = scmp.eq.s32.totalorder %s37, 0
      %p241 = por %p239, %p240
      %p242 = scmp.ne.s32.totalorder %s234, %s236
      %p243 = scmp.eq.s32.totalorder %s42, 6
      %p244 = por %p242, %p243
      %p245 = scmp.ne.s32.totalorder %s236, %s237
      %p246 = scmp.eq.s32.totalorder %s42, 0
      %p247 = por %p245, %p246
      %p248 = scmp.ne.s32.totalorder %s236, %s237
      %p249 = scmp.eq.s32.totalorder %s43, 6
      %p250 = por %p248, %p249
      %p252 = scmp.ne.s32.totalorder %s237, %s251
      %p253 = scmp.eq.s32.totalorder %s43, 0
      %p254 = por %p252, %p253
      %s256 = sadd.s32 %s255, 1
      %p259 = scmp.eq.s32.totalorder %s37, 6
      %p260 = scmp.ne.s32.totalorder %s255, %s257
      %p261 = scmp.eq.s32.totalorder %s37, 0
      %p262 = por %p260, %p261
      %p263 = scmp.ne.s32.totalorder %s255, %s257
      %p264 = scmp.eq.s32.totalorder %s42, 6
      %p265 = por %p263, %p264
      %p266 = scmp.ne.s32.totalorder %s257, %s258
      %p267 = scmp.eq.s32.totalorder %s42, 0
      %p268 = por %p266, %p267
      %p269 = scmp.ne.s32.totalorder %s257, %s258
      %p270 = scmp.eq.s32.totalorder %s43, 6
      %p271 = por %p269, %p270
      %p273 = scmp.ne.s32.totalorder %s258, %s272
      %p274 = scmp.eq.s32.totalorder %s43, 0
      %p275 = por %p273, %p274
      %s277 = sadd.s32 %s276, 1
      %p280 = scmp.eq.s32.totalorder %s37, 6
      %p281 = scmp.ne.s32.totalorder %s276, %s278
      %p282 = scmp.eq.s32.totalorder %s37, 0
      %p283 = por %p281, %p282
      %p284 = scmp.ne.s32.totalorder %s276, %s278
      %p285 = scmp.eq.s32.totalorder %s42, 6
      %p286 = por %p284, %p285
      %p287 = scmp.ne.s32.totalorder %s278, %s279
      %p288 = scmp.eq.s32.totalorder %s42, 0
      %p289 = por %p287, %p288
      %p290 = scmp.ne.s32.totalorder %s278, %s279
      %p291 = scmp.eq.s32.totalorder %s43, 6
      %p292 = por %p290, %p291
      %p294 = scmp.ne.s32.totalorder %s279, %s293
      %p295 = scmp.eq.s32.totalorder %s43, 0
      %p296 = por %p294, %p295
      %s298 = sadd.s32 %s297, 1
      %p301 = scmp.eq.s32.totalorder %s37, 6
      %p302 = scmp.ne.s32.totalorder %s297, %s299
      %p303 = scmp.eq.s32.totalorder %s37, 0
      %p304 = por %p302, %p303
      %p305 = scmp.ne.s32.totalorder %s297, %s299
      %p306 = scmp.eq.s32.totalorder %s42, 6
      %p307 = por %p305, %p306
      %p308 = scmp.ne.s32.totalorder %s299, %s300
      %p309 = scmp.eq.s32.totalorder %s42, 0
      %p310 = por %p308, %p309
      %p311 = scmp.ne.s32.totalorder %s299, %s300
      %p312 = scmp.eq.s32.totalorder %s43, 6
      %p313 = por %p311, %p312
      %p315 = scmp.ne.s32.totalorder %s300, %s314
      %p316 = scmp.eq.s32.totalorder %s43, 0
      %p317 = por %p315, %p316
      %s318 = ssub.s32 %s37, %s44
      %p319 = scmp.eq.s32.totalorder %s318, 0
      %s321 = sadd.s32 %s320, 1
      %s322 = scalar_select %p319, %s320, %s321
      %p325 = pneg %p319
      %p326 = scmp.eq.s32.totalorder %s37, 6
      %p327 = por %p325, %p326
      %p328 = scmp.ne.s32.totalorder %s320, %s323
      %p329 = scmp.eq.s32.totalorder %s37, 0
      %p330 = por %p328, %p329
      %p331 = scmp.ne.s32.totalorder %s320, %s323
      %p332 = scmp.eq.s32.totalorder %s42, 6
      %p333 = por %p331, %p332
      %p334 = scmp.ne.s32.totalorder %s323, %s324
      %p335 = scmp.eq.s32.totalorder %s42, 0
      %p336 = por %p334, %p335
      %p337 = scmp.ne.s32.totalorder %s323, %s324
      %p338 = scmp.eq.s32.totalorder %s43, 6
      %p339 = por %p337, %p338
      %p341 = scmp.ne.s32.totalorder %s324, %s340
      %p342 = scmp.eq.s32.totalorder %s43, 0
      %p343 = por %p341, %p342
      %s345 = sadd.s32 %s344, 1
      %p348 = scmp.eq.s32.totalorder %s37, 6
      %p349 = scmp.ne.s32.totalorder %s344, %s346
      %p350 = scmp.eq.s32.totalorder %s37, 0
      %p351 = por %p349, %p350
      %p352 = scmp.ne.s32.totalorder %s344, %s346
      %p353 = scmp.eq.s32.totalorder %s42, 6
      %p354 = por %p352, %p353
      %p355 = scmp.ne.s32.totalorder %s346, %s347
      %p356 = scmp.eq.s32.totalorder %s42, 0
      %p357 = por %p355, %p356
      %p358 = scmp.ne.s32.totalorder %s346, %s347
      %p359 = scmp.eq.s32.totalorder %s43, 6
      %p360 = por %p358, %p359
      %p362 = scmp.ne.s32.totalorder %s347, %s361
      %p363 = scmp.eq.s32.totalorder %s43, 0
      %p364 = por %p362, %p363
      %p365 = scmp.le.s32.totalorder 1, %s37
      %p366 = scmp.lt.s32.totalorder %s37, 8
      %p367 = pnand %p365, %p366
      %p368 = pneg %p367
      // Predicated region
      $region9: #{tpu_custom_call.1} parent=5 // pred_check
        _
      $region10: #{tpu_custom_call.1} parent=5 // pred_check_branch
        %370 = sbr.rel (%p367) target = $region12
      $region11: #{tpu_custom_call.1} parent=5 // pred_region
        %s371 = ssub.s32 %s37, 1
        // Predicated region
        $region13: #{tpu_custom_call.1} parent=11 // pred_check
          %p372 = pneg %p58
        $region14: #{tpu_custom_call.1} parent=11 // pred_check_branch
          %374 = sbr.rel (%p372) target = $region16
        $region15: #{tpu_custom_call.1} parent=11 // pred_region
          _
        $region16: #{tpu_custom_call.1} parent=11 // pred_fallthru
          _
        // Predicated region
        $region17: #{tpu_custom_call.1} parent=11 // pred_check
          %p375 = pneg %p79
        $region18: #{tpu_custom_call.1} parent=11 // pred_check_branch
          %377 = sbr.rel (%p375) target = $region20
        $region19: #{tpu_custom_call.1} parent=11 // pred_region
          _
        $region20: #{tpu_custom_call.1} parent=11 // pred_fallthru
          _
        // Predicated region
        $region21: #{tpu_custom_call.1} parent=11 // pred_check
          %p378 = pneg %p100
        $region22: #{tpu_custom_call.1} parent=11 // pred_check_branch
          %380 = sbr.rel (%p378) target = $region24
        $region23: #{tpu_custom_call.1} parent=11 // pred_region
          _
        $region24: #{tpu_custom_call.1} parent=11 // pred_fallthru
          _
        // Predicated region
        $region25: #{tpu_custom_call.1} parent=11 // pred_check
          %p381 = pneg %p121
        $region26: #{tpu_custom_call.1} parent=11 // pred_check_branch
          %383 = sbr.rel (%p381) target = $region28
        $region27: #{tpu_custom_call.1} parent=11 // pred_region
          _
        $region28: #{tpu_custom_call.1} parent=11 // pred_fallthru
          _
        // Predicated region
        $region29: #{tpu_custom_call.1} parent=11 // pred_check
          %p384 = pneg %p142
        $region30: #{tpu_custom_call.1} parent=11 // pred_check_branch
          %386 = sbr.rel (%p384) target = $region32
        $region31: #{tpu_custom_call.1} parent=11 // pred_region
          %s388 = ssub.s32 32, 32
          %389 = vsyncadd [#allocation9], %s388
          %s391 = sshll.u32 [#allocation8], 4
          %s392 = int_to_ptr.vmem [resolvable:$true] %s391
          %394 = dma.hbm_to_vmem [thread:$0]  %s6, 32, %s392, [#allocation9]
        $region32: #{tpu_custom_call.1} parent=11 // pred_fallthru
          _
        // Predicated region
        $region33: #{tpu_custom_call.1} parent=11 // pred_check
          %p395 = pneg %p163
        $region34: #{tpu_custom_call.1} parent=11 // pred_check_branch
          %397 = sbr.rel (%p395) target = $region36
        $region35: #{tpu_custom_call.1} parent=11 // pred_region
          %s399 = ssub.s32 16, 16
          %400 = vsyncadd [#allocation12], %s399
          %s402 = sshll.u32 [#allocation11], 4
          %s403 = int_to_ptr.vmem [resolvable:$true] %s402
          %405 = dma.hbm_to_vmem [thread:$0]  %s7, 16, %s403, [#allocation12]
        $region36: #{tpu_custom_call.1} parent=11 // pred_fallthru
          _
        // Predicated region
        $region37: #{tpu_custom_call.1} parent=11 // pred_check
          %p406 = pneg %p184
        $region38: #{tpu_custom_call.1} parent=11 // pred_check_branch
          %408 = sbr.rel (%p406) target = $region40
        $region39: #{tpu_custom_call.1} parent=11 // pred_region
          %s410 = ssub.s32 32, 32
          %411 = vsyncadd [#allocation12], %s410
          %s413 = sshll.u32 [#allocation13], 4
          %s414 = int_to_ptr.vmem [resolvable:$true] %s413
          %416 = dma.hbm_to_vmem [thread:$0]  %s8, 32, %s414, [#allocation12]
        $region40: #{tpu_custom_call.1} parent=11 // pred_fallthru
          _
        // Predicated region
        $region41: #{tpu_custom_call.1} parent=11 // pred_check
          %p417 = pneg %p205
        $region42: #{tpu_custom_call.1} parent=11 // pred_check_branch
          %419 = sbr.rel (%p417) target = $region44
        $region43: #{tpu_custom_call.1} parent=11 // pred_region
          %s421 = ssub.s32 64, 64
          %422 = vsyncadd [#allocation15], %s421
          %s424 = sshll.u32 [#allocation14], 4
          %s425 = int_to_ptr.vmem [resolvable:$true] %s424
          %427 = dma.hbm_to_vmem [thread:$0]  %s9, 64, %s425, [#allocation15]
        $region44: #{tpu_custom_call.1} parent=11 // pred_fallthru
          _
        // Predicated region
        $region45: #{tpu_custom_call.1} parent=11 // pred_check
          %p428 = pneg %p226
        $region46: #{tpu_custom_call.1} parent=11 // pred_check_branch
          %430 = sbr.rel (%p428) target = $region48
        $region47: #{tpu_custom_call.1} parent=11 // pred_region
          %s432 = ssub.s32 512, 512
          %433 = vsyncadd [#allocation15], %s432
          %s434 = sshll.u32 [#allocation16], 4
          %s435 = int_to_ptr.vmem [resolvable:$true] %s434
          %440 = dma.hbm_to_vmem [thread:$0]  %s10, 512, %s435, [#allocation15], 128, 128, 8
        $region48: #{tpu_custom_call.1} parent=11 // pred_fallthru
          _
        // Predicated region
        $region49: #{tpu_custom_call.1} parent=11 // pred_check
          %p441 = pneg %p247
        $region50: #{tpu_custom_call.1} parent=11 // pred_check_branch
          %443 = sbr.rel (%p441) target = $region52
        $region51: #{tpu_custom_call.1} parent=11 // pred_region
          %s445 = ssub.s32 512, 512
          %446 = vsyncadd [#allocation18], %s445
          %s447 = sshll.u32 [#allocation17], 4
          %s448 = int_to_ptr.vmem [resolvable:$true] %s447
          %453 = dma.hbm_to_vmem [thread:$0]  %s11, 512, %s448, [#allocation18], 128, 128, 8
        $region52: #{tpu_custom_call.1} parent=11 // pred_fallthru
          _
        // Predicated region
        $region53: #{tpu_custom_call.1} parent=11 // pred_check
          %p454 = pneg %p268
        $region54: #{tpu_custom_call.1} parent=11 // pred_check_branch
          %456 = sbr.rel (%p454) target = $region56
        $region55: #{tpu_custom_call.1} parent=11 // pred_region
          %s458 = ssub.s32 16, 16
          %459 = vsyncadd [#allocation18], %s458
          %s461 = sshll.u32 [#allocation19], 4
          %s462 = int_to_ptr.vmem [resolvable:$true] %s461
          %464 = dma.hbm_to_vmem [thread:$0]  %s12, 16, %s462, [#allocation18]
        $region56: #{tpu_custom_call.1} parent=11 // pred_fallthru
          _
        // Predicated region
        $region57: #{tpu_custom_call.1} parent=11 // pred_check
          %p465 = pneg %p289
        $region58: #{tpu_custom_call.1} parent=11 // pred_check_branch
          %467 = sbr.rel (%p465) target = $region60
        $region59: #{tpu_custom_call.1} parent=11 // pred_region
          %s469 = ssub.s32 12800, 12800
          %470 = vsyncadd [#allocation21], %s469
          %s471 = sshll.u32 [#allocation20], 4
          %s472 = int_to_ptr.vmem [resolvable:$true] %s471
          %477 = dma.hbm_to_vmem [thread:$0]  %s13, 12800, %s472, [#allocation21], 3200, 3200, 200
        $region60: #{tpu_custom_call.1} parent=11 // pred_fallthru
          _
        // Predicated region
        $region61: #{tpu_custom_call.1} parent=11 // pred_check
          %p478 = pneg %p310
        $region62: #{tpu_custom_call.1} parent=11 // pred_check_branch
          %480 = sbr.rel (%p478) target = $region64
        $region63: #{tpu_custom_call.1} parent=11 // pred_region
          %s482 = ssub.s32 800, 800
          %483 = vsyncadd [#allocation21], %s482
          %s485 = sshll.u32 [#allocation22], 4
          %s486 = int_to_ptr.vmem [resolvable:$true] %s485
          %488 = dma.hbm_to_vmem [thread:$0]  %s14, 800, %s486, [#allocation21]
        $region64: #{tpu_custom_call.1} parent=11 // pred_fallthru
          _
      $region12: #{tpu_custom_call.1} parent=5 // pred_fallthru
        _
      %p489 = scmp.lt.s32.totalorder %s37, 7
      // Predicated region
      $region65: #{tpu_custom_call.1} parent=5 // pred_check
        %p490 = pneg %p489
      $region66: #{tpu_custom_call.1} parent=5 // pred_check_branch
        %492 = sbr.rel (%p490) target = $region68
      $region67: #{tpu_custom_call.1} parent=5 // pred_region
        _
      $region68: #{tpu_custom_call.1} parent=5 // pred_fallthru
        _
      %p493 = scmp.le.s32.totalorder 1, %s37
      %p494 = scmp.lt.s32.totalorder %s37, 8
      %p495 = pnand %p493, %p494
      %p496 = pneg %p495
      // Predicated region
      $region69: #{tpu_custom_call.1} parent=5 // pred_check
        _
      $region70: #{tpu_custom_call.1} parent=5 // pred_check_branch
        %498 = sbr.rel (%p495) target = $region72
      $region71: #{tpu_custom_call.1} parent=5 // pred_region
        %s499 = ssub.s32 %s37, 1
        // Predicated region
        $region73: #{tpu_custom_call.1} parent=71 // pred_check
          %p500 = pneg %p142
        $region74: #{tpu_custom_call.1} parent=71 // pred_check_branch
          %502 = sbr.rel (%p500) target = $region76
        $region75: #{tpu_custom_call.1} parent=71 // pred_region
          %503 = dma.done [#allocation9], 32
        $region76: #{tpu_custom_call.1} parent=71 // pred_fallthru
          _
        // Predicated region
        $region77: #{tpu_custom_call.1} parent=71 // pred_check
          %p504 = pneg %p163
        $region78: #{tpu_custom_call.1} parent=71 // pred_check_branch
          %506 = sbr.rel (%p504) target = $region80
        $region79: #{tpu_custom_call.1} parent=71 // pred_region
          %507 = dma.done [#allocation12], 16
        $region80: #{tpu_custom_call.1} parent=71 // pred_fallthru
          _
        // Predicated region
        $region81: #{tpu_custom_call.1} parent=71 // pred_check
          %p508 = pneg %p184
        $region82: #{tpu_custom_call.1} parent=71 // pred_check_branch
          %510 = sbr.rel (%p508) target = $region84
        $region83: #{tpu_custom_call.1} parent=71 // pred_region
          %511 = dma.done [#allocation12], 32
        $region84: #{tpu_custom_call.1} parent=71 // pred_fallthru
          _
        // Predicated region
        $region85: #{tpu_custom_call.1} parent=71 // pred_check
          %p512 = pneg %p205
        $region86: #{tpu_custom_call.1} parent=71 // pred_check_branch
          %514 = sbr.rel (%p512) target = $region88
        $region87: #{tpu_custom_call.1} parent=71 // pred_region
          %515 = dma.done [#allocation15], 64
        $region88: #{tpu_custom_call.1} parent=71 // pred_fallthru
          _
        // Predicated region
        $region89: #{tpu_custom_call.1} parent=71 // pred_check
          %p516 = pneg %p226
        $region90: #{tpu_custom_call.1} parent=71 // pred_check_branch
          %518 = sbr.rel (%p516) target = $region92
        $region91: #{tpu_custom_call.1} parent=71 // pred_region
          %519 = dma.done [#allocation15], 512
        $region92: #{tpu_custom_call.1} parent=71 // pred_fallthru
          _
        // Predicated region
        $region93: #{tpu_custom_call.1} parent=71 // pred_check
          %p520 = pneg %p247
        $region94: #{tpu_custom_call.1} parent=71 // pred_check_branch
          %522 = sbr.rel (%p520) target = $region96
        $region95: #{tpu_custom_call.1} parent=71 // pred_region
          %523 = dma.done [#allocation18], 512
        $region96: #{tpu_custom_call.1} parent=71 // pred_fallthru
          _
        // Predicated region
        $region97: #{tpu_custom_call.1} parent=71 // pred_check
          %p524 = pneg %p268
        $region98: #{tpu_custom_call.1} parent=71 // pred_check_branch
          %526 = sbr.rel (%p524) target = $region100
        $region99: #{tpu_custom_call.1} parent=71 // pred_region
          %527 = dma.done [#allocation18], 16
        $region100: #{tpu_custom_call.1} parent=71 // pred_fallthru
          _
        // Predicated region
        $region101: #{tpu_custom_call.1} parent=71 // pred_check
          %p528 = pneg %p289
        $region102: #{tpu_custom_call.1} parent=71 // pred_check_branch
          %530 = sbr.rel (%p528) target = $region104
        $region103: #{tpu_custom_call.1} parent=71 // pred_region
          %531 = dma.done [#allocation21], 12800
        $region104: #{tpu_custom_call.1} parent=71 // pred_fallthru
          _
        // Predicated region
        $region105: #{tpu_custom_call.1} parent=71 // pred_check
          %p532 = pneg %p310
        $region106: #{tpu_custom_call.1} parent=71 // pred_check_branch
          %534 = sbr.rel (%p532) target = $region108
        $region107: #{tpu_custom_call.1} parent=71 // pred_region
          %535 = dma.done [#allocation21], 800
        $region108: #{tpu_custom_call.1} parent=71 // pred_fallthru
          _
        %p536 = pneg %p58
        %p537 = pneg %p55
        %p538 = pneg %p79
        %p539 = pneg %p76
        %p540 = pneg %p100
        %p541 = pneg %p97
        %p542 = pneg %p121
        %p543 = pneg %p118
        %p544 = pneg %p142
        %p545 = pneg %p139
        %p546 = pneg %p163
        %p547 = pneg %p160
        %p548 = pneg %p184
        %p549 = pneg %p181
        %p550 = pneg %p205
        %p551 = pneg %p202
        %p552 = pneg %p226
        %p553 = pneg %p223
        %p554 = pneg %p247
        %p555 = pneg %p244
        %p556 = pneg %p268
        %p557 = pneg %p265
        %p558 = pneg %p289
        %p559 = pneg %p286
        %p560 = pneg %p310
        %p561 = pneg %p307
        %p562 = pneg %p336
        %p563 = pneg %p333
        %s564 = sand.u32 %s323, 1
        %s565 = scalar_lea.sflag [#allocation10], %s564
        %s566 = sand.u32 %s323, 1
        %s567 = smul.addr %s566, 400
        %s568 = scalar_lea.vmem [#allocation23], %s567
        %p569 = pneg %p357
        %p570 = pneg %p354
        %p572 = scmp.eq.s32.totalorder %s42, 0
        // Predicated region
        $region109: #{tpu_custom_call.1} parent=71 // pred_check
          %p573 = pneg %p572
        $region110: #{tpu_custom_call.1} parent=71 // pred_check_branch
          %575 = sbr.rel (%p573) target = $region112
        $region111: #{tpu_custom_call.1} parent=71 // pred_region
          %v576 = vld [vmem:[%s2] sm:$0xf]
          %v577 = vld [vmem:[%s2 + $0x4] sm:$0xf]
          %v578 = vld [vmem:[%s2 + $0x8] sm:$0xf]
          %v579 = vld [vmem:[%s2 + $0xc] sm:$0xf]
          %v580 = vld [vmem:[%s2 + $0x10] sm:$0xf]
          %v581 = vld [vmem:[%s2 + $0x14] sm:$0xf]
          %v582 = vld [vmem:[%s2 + $0x18] sm:$0xf]
          %v583 = vld [vmem:[%s2 + $0x1c] sm:$0xf]
          %v584 = vld [vmem:[#allocation8] sm:$0x1]
          %v585 = vld [vmem:[#allocation8 + $0x1] sm:$0x1]
          %v586 = vld [vmem:[#allocation11] sm:$0x1]
          %588 = vset.pattern.permute.xlu0 0
          %589 = vperm.xlu0 %588, %v576
          %v590 = vpop.permute.xlu0 %589
          %593 = vset.pattern.permute.xlu0 0
          %594 = vperm.xlu0 %593, %v577
          %v595 = vpop.permute.xlu0 %594
          %598 = vset.pattern.permute.xlu0 0
          %599 = vperm.xlu0 %598, %v578
          %v600 = vpop.permute.xlu0 %599
          %603 = vset.pattern.permute.xlu0 0
          %604 = vperm.xlu0 %603, %v579
          %v605 = vpop.permute.xlu0 %604
          %608 = vset.pattern.permute.xlu0 0
          %609 = vperm.xlu0 %608, %v580
          %v610 = vpop.permute.xlu0 %609
          %613 = vset.pattern.permute.xlu0 0
          %614 = vperm.xlu0 %613, %v581
          %v615 = vpop.permute.xlu0 %614
          %618 = vset.pattern.permute.xlu0 0
          %619 = vperm.xlu0 %618, %v582
          %v620 = vpop.permute.xlu0 %619
          %623 = vset.pattern.permute.xlu0 0
          %624 = vperm.xlu0 %623, %v583
          %v625 = vpop.permute.xlu0 %624
          %v627 = vlaneseq
          %v628 = vshrl.u32 %v627, 7
          %v629 = vsub.s32 0, %v628
          %v630 = vrot.slane %v584, %v629
          %v631 = vmul.f32 %v590, %v630
          %v632 = vmul.f32 %v595, %v630
          %v633 = vmul.f32 %v600, %v630
          %v634 = vmul.f32 %v605, %v630
          %v635 = vmul.f32 %v610, %v630
          %v636 = vmul.f32 %v615, %v630
          %v637 = vmul.f32 %v620, %v630
          %v638 = vmul.f32 %v625, %v630
          %639 = vset.pattern.permute.xlu0 1
          %640 = vperm.xlu0 %639, %v576
          %v641 = vpop.permute.xlu0 %640
          %643 = vset.pattern.permute.xlu0 1
          %644 = vperm.xlu0 %643, %v577
          %v645 = vpop.permute.xlu0 %644
          %647 = vset.pattern.permute.xlu0 1
          %648 = vperm.xlu0 %647, %v578
          %v649 = vpop.permute.xlu0 %648
          %651 = vset.pattern.permute.xlu0 1
          %652 = vperm.xlu0 %651, %v579
          %v653 = vpop.permute.xlu0 %652
          %655 = vset.pattern.permute.xlu0 1
          %656 = vperm.xlu0 %655, %v580
          %v657 = vpop.permute.xlu0 %656
          %659 = vset.pattern.permute.xlu0 1
          %660 = vperm.xlu0 %659, %v581
          %v661 = vpop.permute.xlu0 %660
          %663 = vset.pattern.permute.xlu0 1
          %664 = vperm.xlu0 %663, %v582
          %v665 = vpop.permute.xlu0 %664
          %667 = vset.pattern.permute.xlu0 1
          %668 = vperm.xlu0 %667, %v583
          %v669 = vpop.permute.xlu0 %668
          %v671 = vlaneseq
          %v672 = vshrl.u32 %v671, 7
          %v673 = vsub.s32 0, %v672
          %v674 = vrot.slane %v585, %v673
          %v675 = vmul.f32 %v641, %v674
          %v676 = vmul.f32 %v645, %v674
          %v677 = vmul.f32 %v649, %v674
          %v678 = vmul.f32 %v653, %v674
          %v679 = vmul.f32 %v657, %v674
          %v680 = vmul.f32 %v661, %v674
          %v681 = vmul.f32 %v665, %v674
          %v682 = vmul.f32 %v669, %v674
          %v683 = vadd.f32 %v631, %v675
          %v684 = vadd.f32 %v632, %v676
          %v685 = vadd.f32 %v633, %v677
          %v686 = vadd.f32 %v634, %v678
          %v687 = vadd.f32 %v635, %v679
          %v688 = vadd.f32 %v636, %v680
          %v689 = vadd.f32 %v637, %v681
          %v690 = vadd.f32 %v638, %v682
          %v692 = vlaneseq
          %v693 = vshrl.u32 %v692, 7
          %v694 = vsub.s32 0, %v693
          %v695 = vrot.slane %v586, %v694
          %v697 = vadd.f32 %v683, %v695
          %v698 = vadd.f32 %v684, %v695
          %v699 = vadd.f32 %v685, %v695
          %v700 = vadd.f32 %v686, %v695
          %v701 = vadd.f32 %v687, %v695
          %v702 = vadd.f32 %v688, %v695
          %v703 = vadd.f32 %v689, %v695
          %v704 = vadd.f32 %v690, %v695
          %v705 = vtanh.pop %v697
          %v706 = vtanh.pop %v698
          %v707 = vtanh.pop %v699
          %v708 = vtanh.pop %v700
          %v709 = vtanh.pop %v701
          %v710 = vtanh.pop %v702
          %v711 = vtanh.pop %v703
          %v712 = vtanh.pop %v704
          %vm713 = vcmask 257024
          %714 = vst.msk [vmem:[#allocation2] sm:$0xf] %vm713, %v705
          %715 = vst.msk [vmem:[#allocation2 + $0x4] sm:$0xf] %vm713, %v706
          %716 = vst.msk [vmem:[#allocation2 + $0x8] sm:$0xf] %vm713, %v707
          %717 = vst.msk [vmem:[#allocation2 + $0xc] sm:$0xf] %vm713, %v708
          %718 = vst.msk [vmem:[#allocation2 + $0x10] sm:$0xf] %vm713, %v709
          %719 = vst.msk [vmem:[#allocation2 + $0x14] sm:$0xf] %vm713, %v710
          %720 = vst.msk [vmem:[#allocation2 + $0x18] sm:$0xf] %vm713, %v711
          %721 = vst.msk [vmem:[#allocation2 + $0x1c] sm:$0xf] %vm713, %v712
          %v730 = vrot.slane %v706, 7
          %vm731 = vcmask 1044484
          %v732 = vsel %vm731, %v730, %v705
          %v733 = vrot.slane %v707, 6
          %vm734 = vcmask 1045509
          %v735 = vsel %vm734, %v733, %v732
          %v736 = vrot.slane %v708, 5
          %vm737 = vcmask 1046534
          %v738 = vsel %vm737, %v736, %v735
          %v739 = vrot.slane %v709, 4
          %vm740 = vcmask 1047559
          %v741 = vsel %vm740, %v739, %v738
          %v742 = vrot.slane %v710, 3
          %v743 = vrot.slane %v711, 2
          %vm744 = vcmask 1041409
          %v745 = vsel %vm744, %v743, %v742
          %v746 = vrot.slane %v712, 1
          %vm747 = vcmask 1042434
          %v748 = vsel %vm747, %v746, %v745
          %vm751 = vcmask 261123
          %752 = vst.msk [vmem:[#allocation3 - $0x3] sm:$0xf8] %vm751, %v741
          %vm753 = vcmask 256000
          %754 = vst.msk [vmem:[#allocation3 + $0x5] sm:$0x7] %vm753, %v748
          %v755 = vrot.slane %v577, 7
          %v756 = vsel %vm744, %v755, %v576
          %v757 = vrot.slane %v578, 6
          %v758 = vsel %vm747, %v757, %v756
          %v759 = vrot.slane %v579, 5
          %vm760 = vcmask 1043459
          %v761 = vsel %vm760, %v759, %v758
          %v762 = vrot.slane %v580, 4
          %v763 = vsel %vm731, %v762, %v761
          %v764 = vrot.slane %v581, 3
          %v765 = vsel %vm734, %v764, %v763
          %v766 = vrot.slane %v582, 2
          %v767 = vsel %vm737, %v766, %v765
          %v768 = vrot.slane %v583, 1
          %v769 = vsel %vm740, %v768, %v767
          %vm771 = vcmask 15360
          %772 = vst.msk [vmem:[#allocation4] sm:$0xff] %vm771, %v769
        $region112: #{tpu_custom_call.1} parent=71 // pred_fallthru
          _
        %v773 = vld [vmem:[#allocation3] sm:$0xff]
        %v774 = vld [vmem:[#allocation4] sm:$0xff]
        %v775 = vld [vmem:[#allocation2] sm:$0xf]
        %v776 = vld [vmem:[#allocation2 + $0x4] sm:$0xf]
        %v777 = vld [vmem:[#allocation2 + $0x8] sm:$0xf]
        %v778 = vld [vmem:[#allocation2 + $0xc] sm:$0xf]
        %v779 = vld [vmem:[#allocation2 + $0x10] sm:$0xf]
        %v780 = vld [vmem:[#allocation2 + $0x14] sm:$0xf]
        %v781 = vld [vmem:[#allocation2 + $0x18] sm:$0xf]
        %v782 = vld [vmem:[#allocation2 + $0x1c] sm:$0xf]
        %v784 = vcombine.high %v773, %v773
        %v786 = vunpack.c.l.s4 1966171168
        %v787 = vunpack.c.0.s8 %v786
        %v788 = vlaneseq
        %v789 = vshrl.u32 %v788, 7
        %v790 = vsub.s32 %v787, %v789
        %v791 = vrot.slane %v773, %v790
        %v793 = vunpack.c.l.s4 1966171168
        %v794 = vunpack.c.0.s8 %v793
        %v795 = vlaneseq
        %v796 = vshrl.u32 %v795, 7
        %v797 = vsub.s32 %v794, %v796
        %v798 = vrot.slane %v784, %v797
        %v799 = vcombine.high %v791, %v791
        %v800 = vcombine.high %v798, %v798
        %v802 = vunpack.c.l.s4 1966171168
        %v803 = vunpack.c.0.s8 %v802
        %v804 = vlaneseq
        %v805 = vshrl.u32 %v804, 7
        %v806 = vsub.s32 %v803, %v805
        %v807 = vrot.slane %v791, %v806
        %v809 = vunpack.c.l.s4 1966171168
        %v810 = vunpack.c.0.s8 %v809
        %v811 = vlaneseq
        %v812 = vshrl.u32 %v811, 7
        %v813 = vsub.s32 %v810, %v812
        %v814 = vrot.slane %v798, %v813
        %v816 = vunpack.c.l.s4 1966171168
        %v817 = vunpack.c.0.s8 %v816
        %v818 = vlaneseq
        %v819 = vshrl.u32 %v818, 7
        %v820 = vsub.s32 %v817, %v819
        %v821 = vrot.slane %v799, %v820
        %v823 = vunpack.c.l.s4 1966171168
        %v824 = vunpack.c.0.s8 %v823
        %v825 = vlaneseq
        %v826 = vshrl.u32 %v825, 7
        %v827 = vsub.s32 %v824, %v826
        %v828 = vrot.slane %v800, %v827
        %v829 = vcombine.high %v807, %v807
        %v830 = vcombine.high %v814, %v814
        %v831 = vcombine.high %v821, %v821
        %v832 = vcombine.high %v828, %v828
        %v833 = vlaneseq
        %v834 = vshrl.u32 %v833, 7
        %v835 = vsub.s32 0, %v834
        %v836 = vrot.slane %v807, %v835
        %v837 = vlaneseq
        %v838 = vshrl.u32 %v837, 7
        %v839 = vsub.s32 0, %v838
        %v840 = vrot.slane %v821, %v839
        %v841 = vlaneseq
        %v842 = vshrl.u32 %v841, 7
        %v843 = vsub.s32 0, %v842
        %v844 = vrot.slane %v829, %v843
        %v845 = vlaneseq
        %v846 = vshrl.u32 %v845, 7
        %v847 = vsub.s32 0, %v846
        %v848 = vrot.slane %v831, %v847
        %v849 = vlaneseq
        %v850 = vshrl.u32 %v849, 7
        %v851 = vsub.s32 0, %v850
        %v852 = vrot.slane %v814, %v851
        %v853 = vlaneseq
        %v854 = vshrl.u32 %v853, 7
        %v855 = vsub.s32 0, %v854
        %v856 = vrot.slane %v828, %v855
        %v857 = vlaneseq
        %v858 = vshrl.u32 %v857, 7
        %v859 = vsub.s32 0, %v858
        %v860 = vrot.slane %v830, %v859
        %v861 = vlaneseq
        %v862 = vshrl.u32 %v861, 7
        %v863 = vsub.s32 0, %v862
        %v864 = vrot.slane %v832, %v863
        %v873 = vmul.f32 %v836, %v775
        %v874 = vmul.f32 %v840, %v776
        %v875 = vmul.f32 %v844, %v777
        %v876 = vmul.f32 %v848, %v778
        %v877 = vmul.f32 %v852, %v779
        %v878 = vmul.f32 %v856, %v780
        %v879 = vmul.f32 %v860, %v781
        %v880 = vmul.f32 %v864, %v782
        %vm881 = vcmask 257024
        %v882 = vsel %vm881, %v873, 0.0
        %883 = vadd.xlane.f32.xlu0 %v882
        %v884 = vpop.xlane.xlu0 %883
        %v885 = vsel %vm881, %v874, 0.0
        %886 = vadd.xlane.f32.xlu0 %v885
        %v887 = vpop.xlane.xlu0 %886
        %v888 = vsel %vm881, %v875, 0.0
        %889 = vadd.xlane.f32.xlu0 %v888
        %v890 = vpop.xlane.xlu0 %889
        %v891 = vsel %vm881, %v876, 0.0
        %892 = vadd.xlane.f32.xlu0 %v891
        %v893 = vpop.xlane.xlu0 %892
        %v894 = vsel %vm881, %v877, 0.0
        %895 = vadd.xlane.f32.xlu0 %v894
        %v896 = vpop.xlane.xlu0 %895
        %v897 = vsel %vm881, %v878, 0.0
        %898 = vadd.xlane.f32.xlu0 %v897
        %v899 = vpop.xlane.xlu0 %898
        %v900 = vsel %vm881, %v879, 0.0
        %901 = vadd.xlane.f32.xlu0 %v900
        %v902 = vpop.xlane.xlu0 %901
        %v903 = vsel %vm881, %v880, 0.0
        %904 = vadd.xlane.f32.xlu0 %v903
        %v905 = vpop.xlane.xlu0 %904
        %v914 = vlaneseq
        %v915 = vand.u32 %v914, 127
        %v916 = vlaneseq
        %v917 = vshrl.u32 %v916, 7
        %v918 = vsub.s32 %v915, %v917
        %v919 = vrot.slane %v884, %v918
        %v920 = vlaneseq
        %v921 = vshrl.u32 %v920, 7
        %v922 = vsub.s32 %v915, %v921
        %v923 = vrot.slane %v887, %v922
        %v924 = vlaneseq
        %v925 = vshrl.u32 %v924, 7
        %v926 = vsub.s32 %v915, %v925
        %v927 = vrot.slane %v890, %v926
        %v928 = vlaneseq
        %v929 = vshrl.u32 %v928, 7
        %v930 = vsub.s32 %v915, %v929
        %v931 = vrot.slane %v893, %v930
        %v932 = vlaneseq
        %v933 = vshrl.u32 %v932, 7
        %v934 = vsub.s32 %v915, %v933
        %v935 = vrot.slane %v896, %v934
        %v936 = vlaneseq
        %v937 = vshrl.u32 %v936, 7
        %v938 = vsub.s32 %v915, %v937
        %v939 = vrot.slane %v899, %v938
        %v940 = vlaneseq
        %v941 = vshrl.u32 %v940, 7
        %v942 = vsub.s32 %v915, %v941
        %v943 = vrot.slane %v902, %v942
        %v944 = vlaneseq
        %v945 = vshrl.u32 %v944, 7
        %v946 = vsub.s32 %v915, %v945
        %v947 = vrot.slane %v905, %v946
        %vm948 = vcmask 1041409
        %v949 = vsel %vm948, %v923, %v919
        %vm950 = vcmask 1042434
        %v951 = vsel %vm950, %v927, %v949
        %vm952 = vcmask 1043459
        %v953 = vsel %vm952, %v931, %v951
        %vm954 = vcmask 1044484
        %v955 = vsel %vm954, %v935, %v953
        %vm956 = vcmask 1045509
        %v957 = vsel %vm956, %v939, %v955
        %vm958 = vcmask 1046534
        %v959 = vsel %vm958, %v943, %v957
        %vm960 = vcmask 1047559
        %v961 = vsel %vm960, %v947, %v959
        %vm963 = vcmask 31744
        %v964 = vsel %vm963, %v961, -inf
        %965 = vmax.xlane.f32.xlu0 %v964
        %v966 = vpop.xlane.xlu0 %965
        %v968 = vlaneseq
        %v969 = vshrl.u32 %v968, 7
        %v970 = vsub.s32 0, %v969
        %v971 = vrot.slane %v966, %v970
        %v972 = vlaneseq
        %v973 = vshrl.u32 %v972, 7
        %v974 = vsub.s32 1, %v973
        %v975 = vrot.slane %v966, %v974
        %v976 = vlaneseq
        %v977 = vshrl.u32 %v976, 7
        %v978 = vsub.s32 2, %v977
        %v979 = vrot.slane %v966, %v978
        %v980 = vlaneseq
        %v981 = vshrl.u32 %v980, 7
        %v982 = vsub.s32 3, %v981
        %v983 = vrot.slane %v966, %v982
        %v984 = vlaneseq
        %v985 = vshrl.u32 %v984, 7
        %v986 = vsub.s32 4, %v985
        %v987 = vrot.slane %v966, %v986
        %v988 = vlaneseq
        %v989 = vshrl.u32 %v988, 7
        %v990 = vsub.s32 5, %v989
        %v991 = vrot.slane %v966, %v990
        %v992 = vlaneseq
        %v993 = vshrl.u32 %v992, 7
        %v994 = vsub.s32 6, %v993
        %v995 = vrot.slane %v966, %v994
        %v996 = vlaneseq
        %v997 = vshrl.u32 %v996, 7
        %v998 = vsub.s32 7, %v997
        %v999 = vrot.slane %v966, %v998
        %v1008 = vsub.f32 %v884, %v971
        %v1009 = vsub.f32 %v887, %v975
        %v1010 = vsub.f32 %v890, %v979
        %v1011 = vsub.f32 %v893, %v983
        %v1012 = vsub.f32 %v896, %v987
        %v1013 = vsub.f32 %v899, %v991
        %v1014 = vsub.f32 %v902, %v995
        %v1015 = vsub.f32 %v905, %v999
        %v1016 = vmul.f32 %v1008, 1.442695
        %v1017 = vpow.pop %v1016
        %v1018 = vmul.f32 %v1009, 1.442695
        %v1019 = vpow.pop %v1018
        %v1020 = vmul.f32 %v1010, 1.442695
        %v1021 = vpow.pop %v1020
        %v1022 = vmul.f32 %v1011, 1.442695
        %v1023 = vpow.pop %v1022
        %v1024 = vmul.f32 %v1012, 1.442695
        %v1025 = vpow.pop %v1024
        %v1026 = vmul.f32 %v1013, 1.442695
        %v1027 = vpow.pop %v1026
        %v1028 = vmul.f32 %v1014, 1.442695
        %v1029 = vpow.pop %v1028
        %v1030 = vmul.f32 %v1015, 1.442695
        %v1031 = vpow.pop %v1030
        %1040 = vset.pattern.permute.xlu0 0
        %1041 = vperm.xlu0 %1040, %v1017
        %v1042 = vpop.permute.xlu0 %1041
        %1043 = vset.pattern.permute.xlu0 0
        %1044 = vperm.xlu0 %1043, %v1019
        %v1045 = vpop.permute.xlu0 %1044
        %1046 = vset.pattern.permute.xlu0 0
        %1047 = vperm.xlu0 %1046, %v1021
        %v1048 = vpop.permute.xlu0 %1047
        %1049 = vset.pattern.permute.xlu0 0
        %1050 = vperm.xlu0 %1049, %v1023
        %v1051 = vpop.permute.xlu0 %1050
        %1052 = vset.pattern.permute.xlu0 0
        %1053 = vperm.xlu0 %1052, %v1025
        %v1054 = vpop.permute.xlu0 %1053
        %1055 = vset.pattern.permute.xlu0 0
        %1056 = vperm.xlu0 %1055, %v1027
        %v1057 = vpop.permute.xlu0 %1056
        %1058 = vset.pattern.permute.xlu0 0
        %1059 = vperm.xlu0 %1058, %v1029
        %v1060 = vpop.permute.xlu0 %1059
        %1061 = vset.pattern.permute.xlu0 0
        %1062 = vperm.xlu0 %1061, %v1031
        %v1063 = vpop.permute.xlu0 %1062
        %v1064 = vlaneseq
        %v1065 = vshrl.u32 %v1064, 7
        %v1066 = vsub.s32 %v915, %v1065
        %v1067 = vrot.slane %v1042, %v1066
        %v1068 = vlaneseq
        %v1069 = vshrl.u32 %v1068, 7
        %v1070 = vsub.s32 %v915, %v1069
        %v1071 = vrot.slane %v1045, %v1070
        %v1072 = vlaneseq
        %v1073 = vshrl.u32 %v1072, 7
        %v1074 = vsub.s32 %v915, %v1073
        %v1075 = vrot.slane %v1048, %v1074
        %v1076 = vlaneseq
        %v1077 = vshrl.u32 %v1076, 7
        %v1078 = vsub.s32 %v915, %v1077
        %v1079 = vrot.slane %v1051, %v1078
        %v1080 = vlaneseq
        %v1081 = vshrl.u32 %v1080, 7
        %v1082 = vsub.s32 %v915, %v1081
        %v1083 = vrot.slane %v1054, %v1082
        %v1084 = vlaneseq
        %v1085 = vshrl.u32 %v1084, 7
        %v1086 = vsub.s32 %v915, %v1085
        %v1087 = vrot.slane %v1057, %v1086
        %v1088 = vlaneseq
        %v1089 = vshrl.u32 %v1088, 7
        %v1090 = vsub.s32 %v915, %v1089
        %v1091 = vrot.slane %v1060, %v1090
        %v1092 = vlaneseq
        %v1093 = vshrl.u32 %v1092, 7
        %v1094 = vsub.s32 %v915, %v1093
        %v1095 = vrot.slane %v1063, %v1094
        %v1096 = vsel %vm948, %v1071, %v1067
        %v1097 = vsel %vm950, %v1075, %v1096
        %v1098 = vsel %vm952, %v1079, %v1097
        %v1099 = vsel %vm954, %v1083, %v1098
        %v1100 = vsel %vm956, %v1087, %v1099
        %v1101 = vsel %vm958, %v1091, %v1100
        %v1102 = vsel %vm960, %v1095, %v1101
        %v1104 = vsel %vm963, %v1102, 0.0
        %1105 = vadd.xlane.f32.xlu0 %v1104
        %v1106 = vpop.xlane.xlu0 %1105
        %v1108 = vlaneseq
        %v1109 = vshrl.u32 %v1108, 7
        %v1110 = vsub.s32 0, %v1109
        %v1111 = vrot.slane %v1106, %v1110
        %v1112 = vlaneseq
        %v1113 = vshrl.u32 %v1112, 7
        %v1114 = vsub.s32 1, %v1113
        %v1115 = vrot.slane %v1106, %v1114
        %v1116 = vlaneseq
        %v1117 = vshrl.u32 %v1116, 7
        %v1118 = vsub.s32 2, %v1117
        %v1119 = vrot.slane %v1106, %v1118
        %v1120 = vlaneseq
        %v1121 = vshrl.u32 %v1120, 7
        %v1122 = vsub.s32 3, %v1121
        %v1123 = vrot.slane %v1106, %v1122
        %v1124 = vlaneseq
        %v1125 = vshrl.u32 %v1124, 7
        %v1126 = vsub.s32 4, %v1125
        %v1127 = vrot.slane %v1106, %v1126
        %v1128 = vlaneseq
        %v1129 = vshrl.u32 %v1128, 7
        %v1130 = vsub.s32 5, %v1129
        %v1131 = vrot.slane %v1106, %v1130
        %v1132 = vlaneseq
        %v1133 = vshrl.u32 %v1132, 7
        %v1134 = vsub.s32 6, %v1133
        %v1135 = vrot.slane %v1106, %v1134
        %v1136 = vlaneseq
        %v1137 = vshrl.u32 %v1136, 7
        %v1138 = vsub.s32 7, %v1137
        %v1139 = vrot.slane %v1106, %v1138
        %v1148 = vrcp.pop %v1111
        %v1149 = vmul.f32 %v1017, %v1148
        %v1150 = vrcp.pop %v1115
        %v1151 = vmul.f32 %v1019, %v1150
        %v1152 = vrcp.pop %v1119
        %v1153 = vmul.f32 %v1021, %v1152
        %v1154 = vrcp.pop %v1123
        %v1155 = vmul.f32 %v1023, %v1154
        %v1156 = vrcp.pop %v1127
        %v1157 = vmul.f32 %v1025, %v1156
        %v1158 = vrcp.pop %v1131
        %v1159 = vmul.f32 %v1027, %v1158
        %v1160 = vrcp.pop %v1135
        %v1161 = vmul.f32 %v1029, %v1160
        %v1162 = vrcp.pop %v1139
        %v1163 = vmul.f32 %v1031, %v1162
        %1165 = vset.pattern.permute.xlu0 0
        %1166 = vperm.xlu0 %1165, %v1149
        %v1167 = vpop.permute.xlu0 %1166
        %1170 = vset.pattern.permute.xlu0 0
        %1171 = vperm.xlu0 %1170, %v1151
        %v1172 = vpop.permute.xlu0 %1171
        %1175 = vset.pattern.permute.xlu0 0
        %1176 = vperm.xlu0 %1175, %v1153
        %v1177 = vpop.permute.xlu0 %1176
        %1180 = vset.pattern.permute.xlu0 0
        %1181 = vperm.xlu0 %1180, %v1155
        %v1182 = vpop.permute.xlu0 %1181
        %1185 = vset.pattern.permute.xlu0 0
        %1186 = vperm.xlu0 %1185, %v1157
        %v1187 = vpop.permute.xlu0 %1186
        %1190 = vset.pattern.permute.xlu0 0
        %1191 = vperm.xlu0 %1190, %v1159
        %v1192 = vpop.permute.xlu0 %1191
        %1195 = vset.pattern.permute.xlu0 0
        %1196 = vperm.xlu0 %1195, %v1161
        %v1197 = vpop.permute.xlu0 %1196
        %1200 = vset.pattern.permute.xlu0 0
        %1201 = vperm.xlu0 %1200, %v1163
        %v1202 = vpop.permute.xlu0 %1201
        %v1204 = vmul.f32 %v1167, %v775
        %v1205 = vmul.f32 %v1172, %v776
        %v1206 = vmul.f32 %v1177, %v777
        %v1207 = vmul.f32 %v1182, %v778
        %v1208 = vmul.f32 %v1187, %v779
        %v1209 = vmul.f32 %v1192, %v780
        %v1210 = vmul.f32 %v1197, %v781
        %v1211 = vmul.f32 %v1202, %v782
        %v1212 = vsel %vm881, %v1204, 0.0
        %v1213 = vrot.slane %v1212, 4
        %v1214 = vadd.f32 %v1212, %v1213
        %v1215 = vrot.slane %v1214, 2
        %v1216 = vadd.f32 %v1214, %v1215
        %v1217 = vrot.slane %v1216, 1
        %v1218 = vadd.f32 %v1216, %v1217
        %v1219 = vsel %vm881, %v1205, 0.0
        %v1220 = vrot.slane %v1219, 4
        %v1221 = vadd.f32 %v1219, %v1220
        %v1222 = vrot.slane %v1221, 2
        %v1223 = vadd.f32 %v1221, %v1222
        %v1224 = vrot.slane %v1223, 1
        %v1225 = vadd.f32 %v1223, %v1224
        %v1226 = vsel %vm881, %v1206, 0.0
        %v1227 = vrot.slane %v1226, 4
        %v1228 = vadd.f32 %v1226, %v1227
        %v1229 = vrot.slane %v1228, 2
        %v1230 = vadd.f32 %v1228, %v1229
        %v1231 = vrot.slane %v1230, 1
        %v1232 = vadd.f32 %v1230, %v1231
        %v1233 = vsel %vm881, %v1207, 0.0
        %v1234 = vrot.slane %v1233, 4
        %v1235 = vadd.f32 %v1233, %v1234
        %v1236 = vrot.slane %v1235, 2
        %v1237 = vadd.f32 %v1235, %v1236
        %v1238 = vrot.slane %v1237, 1
        %v1239 = vadd.f32 %v1237, %v1238
        %v1240 = vsel %vm881, %v1208, 0.0
        %v1241 = vrot.slane %v1240, 4
        %v1242 = vadd.f32 %v1240, %v1241
        %v1243 = vrot.slane %v1242, 2
        %v1244 = vadd.f32 %v1242, %v1243
        %v1245 = vrot.slane %v1244, 1
        %v1246 = vadd.f32 %v1244, %v1245
        %v1247 = vsel %vm881, %v1209, 0.0
        %v1248 = vrot.slane %v1247, 4
        %v1249 = vadd.f32 %v1247, %v1248
        %v1250 = vrot.slane %v1249, 2
        %v1251 = vadd.f32 %v1249, %v1250
        %v1252 = vrot.slane %v1251, 1
        %v1253 = vadd.f32 %v1251, %v1252
        %v1254 = vsel %vm881, %v1210, 0.0
        %v1255 = vrot.slane %v1254, 4
        %v1256 = vadd.f32 %v1254, %v1255
        %v1257 = vrot.slane %v1256, 2
        %v1258 = vadd.f32 %v1256, %v1257
        %v1259 = vrot.slane %v1258, 1
        %v1260 = vadd.f32 %v1258, %v1259
        %v1261 = vsel %vm881, %v1211, 0.0
        %v1262 = vrot.slane %v1261, 4
        %v1263 = vadd.f32 %v1261, %v1262
        %v1264 = vrot.slane %v1263, 2
        %v1265 = vadd.f32 %v1263, %v1264
        %v1266 = vrot.slane %v1265, 1
        %v1267 = vadd.f32 %v1265, %v1266
        %s1268 = smul.u32 %s42, 8
        %s1269 = scalar_lea.vmem %s3, %s1268
        %v1270 = vld [vmem:[%s1269] sm:$0xff]
        %v1271 = vld [vmem:[#allocation13] sm:$0x3]
        %v1272 = vld [vmem:[#allocation14] sm:$0xf]
        %v1274 = vsel %vm963, %v1270, 0
        %vm1276 = vcmask 1043456
        %v1278 = vsel %vm1276, %v1272, 0
        %1280 = vmatprep.subr.mxu0 0.0
        %1281 = vmatpush1.msra.mxu0 %v1278
        %1282 = vmatprep.subr.mxu0 0.0
        %1283 = vmatpush1.msra.mxu0 0.0
        %1284 = vmatprep.subr.mxu0 0.0
        %1285 = vmatpush1.msra.mxu0 0.0
        %1286 = vmatprep.subr.mxu0 0.0
        %1287 = vmatpush1.msra.mxu0 0.0
        %1288 = vmatprep.subr.mxu0 0.0
        %1289 = vmatpush1.msra.mxu0 0.0
        %1290 = vmatprep.subr.mxu0 0.0
        %1291 = vmatpush1.msra.mxu0 0.0
        %1292 = vmatprep.subr.mxu0 0.0
        %1293 = vmatpush1.msra.mxu0 0.0
        %1294 = vmatprep.subr.mxu0 0.0
        %1295 = vmatpush1.msra.mxu0 0.0
        %1296 = vmatprep.subr.mxu0 0.0
        %1297 = vmatpush1.msra.mxu0 0.0
        %1298 = vmatprep.subr.mxu0 0.0
        %1299 = vmatpush1.msra.mxu0 0.0
        %1300 = vmatprep.subr.mxu0 0.0
        %1301 = vmatpush1.msra.mxu0 0.0
        %1302 = vmatprep.subr.mxu0 0.0
        %1303 = vmatpush1.msra.mxu0 0.0
        %1304 = vmatprep.subr.mxu0 0.0
        %1305 = vmatpush1.msra.mxu0 0.0
        %1306 = vmatprep.subr.mxu0 0.0
        %1307 = vmatpush1.msra.mxu0 0.0
        %1308 = vmatprep.subr.mxu0 0.0
        %1309 = vmatpush1.msra.mxu0 0.0
        %1310 = vmatprep.subr.mxu0 0.0
        %1311 = vmatpush1.msra.mxu0 0.0
        %1312 = vmatprep.subr.mxu0 0.0
        %1313 = vmatpush1.msra.mxu0 0.0
        %1314 = vmatprep.subr.mxu0 0.0
        %1315 = vmatpush1.msra.mxu0 0.0
        %1316 = vmatprep.subr.mxu0 0.0
        %1317 = vmatpush1.msra.mxu0 0.0
        %1318 = vmatprep.subr.mxu0 0.0
        %1319 = vmatpush1.msra.mxu0 0.0
        %1320 = vmatprep.subr.mxu0 0.0
        %1321 = vmatpush1.msra.mxu0 0.0
        %1322 = vmatprep.subr.mxu0 0.0
        %1323 = vmatpush1.msra.mxu0 0.0
        %1324 = vmatprep.subr.mxu0 0.0
        %1325 = vmatpush1.msra.mxu0 0.0
        %1326 = vmatprep.subr.mxu0 0.0
        %1327 = vmatpush1.msra.mxu0 0.0
        %1328 = vmatprep.subr.mxu0 0.0
        %1329 = vmatpush1.msra.mxu0 0.0
        %1330 = vmatprep.subr.mxu0 0.0
        %1331 = vmatpush1.msra.mxu0 0.0
        %1332 = vmatprep.subr.mxu0 0.0
        %1333 = vmatpush1.msra.mxu0 0.0
        %1334 = vmatprep.subr.mxu0 0.0
        %1335 = vmatpush1.msra.mxu0 0.0
        %1336 = vmatprep.subr.mxu0 0.0
        %1337 = vmatpush1.msra.mxu0 0.0
        %1338 = vmatprep.subr.mxu0 0.0
        %1339 = vmatpush1.msra.mxu0 0.0
        %1340 = vmatprep.subr.mxu0 0.0
        %1341 = vmatpush1.msra.mxu0 0.0
        %1342 = vmatprep.subr.mxu0 0.0
        %1343 = vmatpush1.msra.mxu0 0.0
        %1344 = vmatprep.mubr.f32.mxu0 0.0
        %1345 = vmatmul.mubr.f32.gmra.mrb[0].mxu0 %v1274
        %v1346 = vpop.f32.mrb[0].mxu0
        %v1347 = vadd.f32 0.0, %v1346
        %v1348 = vpop.f32.mrb[0].mxu0
        %1349 = vdwg.mxu0
        %vm1350 = vcmask 15360
        %v1352 = vsel %vm1350, %v774, 0
        %vm1354 = vcmask 1041408
        %v1356 = vsel %vm1354, %v1271, 0
        %1358 = vmatprep.subr.mxu0 0.0
        %1359 = vmatpush1.msra.mxu0 %v1356
        %1360 = vmatprep.subr.mxu0 0.0
        %1361 = vmatpush1.msra.mxu0 0.0
        %1362 = vmatprep.subr.mxu0 0.0
        %1363 = vmatpush1.msra.mxu0 0.0
        %1364 = vmatprep.subr.mxu0 0.0
        %1365 = vmatpush1.msra.mxu0 0.0
        %1366 = vmatprep.subr.mxu0 0.0
        %1367 = vmatpush1.msra.mxu0 0.0
        %1368 = vmatprep.subr.mxu0 0.0
        %1369 = vmatpush1.msra.mxu0 0.0
        %1370 = vmatprep.subr.mxu0 0.0
        %1371 = vmatpush1.msra.mxu0 0.0
        %1372 = vmatprep.subr.mxu0 0.0
        %1373 = vmatpush1.msra.mxu0 0.0
        %1374 = vmatprep.subr.mxu0 0.0
        %1375 = vmatpush1.msra.mxu0 0.0
        %1376 = vmatprep.subr.mxu0 0.0
        %1377 = vmatpush1.msra.mxu0 0.0
        %1378 = vmatprep.subr.mxu0 0.0
        %1379 = vmatpush1.msra.mxu0 0.0
        %1380 = vmatprep.subr.mxu0 0.0
        %1381 = vmatpush1.msra.mxu0 0.0
        %1382 = vmatprep.subr.mxu0 0.0
        %1383 = vmatpush1.msra.mxu0 0.0
        %1384 = vmatprep.subr.mxu0 0.0
        %1385 = vmatpush1.msra.mxu0 0.0
        %1386 = vmatprep.subr.mxu0 0.0
        %1387 = vmatpush1.msra.mxu0 0.0
        %1388 = vmatprep.subr.mxu0 0.0
        %1389 = vmatpush1.msra.mxu0 0.0
        %1390 = vmatprep.subr.mxu0 0.0
        %1391 = vmatpush1.msra.mxu0 0.0
        %1392 = vmatprep.subr.mxu0 0.0
        %1393 = vmatpush1.msra.mxu0 0.0
        %1394 = vmatprep.subr.mxu0 0.0
        %1395 = vmatpush1.msra.mxu0 0.0
        %1396 = vmatprep.subr.mxu0 0.0
        %1397 = vmatpush1.msra.mxu0 0.0
        %1398 = vmatprep.subr.mxu0 0.0
        %1399 = vmatpush1.msra.mxu0 0.0
        %1400 = vmatprep.subr.mxu0 0.0
        %1401 = vmatpush1.msra.mxu0 0.0
        %1402 = vmatprep.subr.mxu0 0.0
        %1403 = vmatpush1.msra.mxu0 0.0
        %1404 = vmatprep.subr.mxu0 0.0
        %1405 = vmatpush1.msra.mxu0 0.0
        %1406 = vmatprep.subr.mxu0 0.0
        %1407 = vmatpush1.msra.mxu0 0.0
        %1408 = vmatprep.subr.mxu0 0.0
        %1409 = vmatpush1.msra.mxu0 0.0
        %1410 = vmatprep.subr.mxu0 0.0
        %1411 = vmatpush1.msra.mxu0 0.0
        %1412 = vmatprep.subr.mxu0 0.0
        %1413 = vmatpush1.msra.mxu0 0.0
        %1414 = vmatprep.subr.mxu0 0.0
        %1415 = vmatpush1.msra.mxu0 0.0
        %1416 = vmatprep.subr.mxu0 0.0
        %1417 = vmatpush1.msra.mxu0 0.0
        %1418 = vmatprep.subr.mxu0 0.0
        %1419 = vmatpush1.msra.mxu0 0.0
        %1420 = vmatprep.subr.mxu0 0.0
        %1421 = vmatpush1.msra.mxu0 0.0
        %1422 = vmatprep.mubr.f32.mxu0 0.0
        %1423 = vmatmul.mubr.f32.gmra.mrb[0].mxu0 %v1352
        %v1424 = vpop.f32.mrb[0].mxu0
        %v1425 = vadd.f32 %v1347, %v1424
        %v1426 = vpop.f32.mrb[0].mxu0
        %1427 = vdwg.mxu0
        %v1428 = vld [vmem:[#allocation16] sm:$0xff]
        %v1429 = vld [vmem:[#allocation16 + $0x8] sm:$0xff]
        %v1430 = vld [vmem:[#allocation16 + $0x10] sm:$0xff]
        %v1431 = vld [vmem:[#allocation16 + $0x18] sm:$0xff]
        %v1440 = vsel %vm948, %v1225, %v1218
        %v1441 = vsel %vm950, %v1232, %v1440
        %v1442 = vsel %vm952, %v1239, %v1441
        %v1443 = vsel %vm954, %v1246, %v1442
        %v1444 = vsel %vm956, %v1253, %v1443
        %v1445 = vsel %vm958, %v1260, %v1444
        %v1446 = vsel %vm960, %v1267, %v1445
        %vm1447 = vcmask 261120
        %v1448 = vsel %vm1447, %v1446, 0
        %1450 = vmatprep.subr.mxu0 0.0
        %1451 = vmatpush1.msra.mxu0 %v1428
        %1452 = vmatprep.subr.mxu0 0.0
        %1453 = vmatpush1.msra.mxu0 %v1429
        %1454 = vmatprep.subr.mxu0 0.0
        %1455 = vmatpush1.msra.mxu0 %v1430
        %1456 = vmatprep.subr.mxu0 0.0
        %1457 = vmatpush1.msra.mxu0 %v1431
        %1458 = vmatprep.subr.mxu0 0.0
        %1459 = vmatpush1.msra.mxu0 0.0
        %1460 = vmatprep.subr.mxu0 0.0
        %1461 = vmatpush1.msra.mxu0 0.0
        %1462 = vmatprep.subr.mxu0 0.0
        %1463 = vmatpush1.msra.mxu0 0.0
        %1464 = vmatprep.subr.mxu0 0.0
        %1465 = vmatpush1.msra.mxu0 0.0
        %1466 = vmatprep.subr.mxu0 0.0
        %1467 = vmatpush1.msra.mxu0 0.0
        %1468 = vmatprep.subr.mxu0 0.0
        %1469 = vmatpush1.msra.mxu0 0.0
        %1470 = vmatprep.subr.mxu0 0.0
        %1471 = vmatpush1.msra.mxu0 0.0
        %1472 = vmatprep.subr.mxu0 0.0
        %1473 = vmatpush1.msra.mxu0 0.0
        %1474 = vmatprep.subr.mxu0 0.0
        %1475 = vmatpush1.msra.mxu0 0.0
        %1476 = vmatprep.subr.mxu0 0.0
        %1477 = vmatpush1.msra.mxu0 0.0
        %1478 = vmatprep.subr.mxu0 0.0
        %1479 = vmatpush1.msra.mxu0 0.0
        %1480 = vmatprep.subr.mxu0 0.0
        %1481 = vmatpush1.msra.mxu0 0.0
        %1482 = vmatprep.subr.mxu0 0.0
        %1483 = vmatpush1.msra.mxu0 0.0
        %1484 = vmatprep.subr.mxu0 0.0
        %1485 = vmatpush1.msra.mxu0 0.0
        %1486 = vmatprep.subr.mxu0 0.0
        %1487 = vmatpush1.msra.mxu0 0.0
        %1488 = vmatprep.subr.mxu0 0.0
        %1489 = vmatpush1.msra.mxu0 0.0
        %1490 = vmatprep.subr.mxu0 0.0
        %1491 = vmatpush1.msra.mxu0 0.0
        %1492 = vmatprep.subr.mxu0 0.0
        %1493 = vmatpush1.msra.mxu0 0.0
        %1494 = vmatprep.subr.mxu0 0.0
        %1495 = vmatpush1.msra.mxu0 0.0
        %1496 = vmatprep.subr.mxu0 0.0
        %1497 = vmatpush1.msra.mxu0 0.0
        %1498 = vmatprep.subr.mxu0 0.0
        %1499 = vmatpush1.msra.mxu0 0.0
        %1500 = vmatprep.subr.mxu0 0.0
        %1501 = vmatpush1.msra.mxu0 0.0
        %1502 = vmatprep.subr.mxu0 0.0
        %1503 = vmatpush1.msra.mxu0 0.0
        %1504 = vmatprep.subr.mxu0 0.0
        %1505 = vmatpush1.msra.mxu0 0.0
        %1506 = vmatprep.subr.mxu0 0.0
        %1507 = vmatpush1.msra.mxu0 0.0
        %1508 = vmatprep.subr.mxu0 0.0
        %1509 = vmatpush1.msra.mxu0 0.0
        %1510 = vmatprep.subr.mxu0 0.0
        %1511 = vmatpush1.msra.mxu0 0.0
        %1512 = vmatprep.subr.mxu0 0.0
        %1513 = vmatpush1.msra.mxu0 0.0
        %1514 = vmatprep.mubr.f32.mxu0 0.0
        %1515 = vmatmul.mubr.f32.gmra.mrb[0].mxu0 %v1448
        %v1516 = vpop.f32.mrb[0].mxu0
        %v1517 = vadd.f32 0.0, %v1516
        %v1518 = vpop.f32.mrb[0].mxu0
        %1519 = vdwg.mxu0
        %v1520 = vadd.f32 %v1425, %v1517
        %v1521 = vld [vmem:[#allocation17] sm:$0xff]
        %v1522 = vld [vmem:[#allocation17 + $0x8] sm:$0xff]
        %v1523 = vld [vmem:[#allocation17 + $0x10] sm:$0xff]
        %v1524 = vld [vmem:[#allocation17 + $0x18] sm:$0xff]
        %v1525 = vsel %vm1447, %v773, 0
        %1527 = vmatprep.subr.mxu0 0.0
        %1528 = vmatpush1.msra.mxu0 %v1521
        %1529 = vmatprep.subr.mxu0 0.0
        %1530 = vmatpush1.msra.mxu0 %v1522
        %1531 = vmatprep.subr.mxu0 0.0
        %1532 = vmatpush1.msra.mxu0 %v1523
        %1533 = vmatprep.subr.mxu0 0.0
        %1534 = vmatpush1.msra.mxu0 %v1524
        %1535 = vmatprep.subr.mxu0 0.0
        %1536 = vmatpush1.msra.mxu0 0.0
        %1537 = vmatprep.subr.mxu0 0.0
        %1538 = vmatpush1.msra.mxu0 0.0
        %1539 = vmatprep.subr.mxu0 0.0
        %1540 = vmatpush1.msra.mxu0 0.0
        %1541 = vmatprep.subr.mxu0 0.0
        %1542 = vmatpush1.msra.mxu0 0.0
        %1543 = vmatprep.subr.mxu0 0.0
        %1544 = vmatpush1.msra.mxu0 0.0
        %1545 = vmatprep.subr.mxu0 0.0
        %1546 = vmatpush1.msra.mxu0 0.0
        %1547 = vmatprep.subr.mxu0 0.0
        %1548 = vmatpush1.msra.mxu0 0.0
        %1549 = vmatprep.subr.mxu0 0.0
        %1550 = vmatpush1.msra.mxu0 0.0
        %1551 = vmatprep.subr.mxu0 0.0
        %1552 = vmatpush1.msra.mxu0 0.0
        %1553 = vmatprep.subr.mxu0 0.0
        %1554 = vmatpush1.msra.mxu0 0.0
        %1555 = vmatprep.subr.mxu0 0.0
        %1556 = vmatpush1.msra.mxu0 0.0
        %1557 = vmatprep.subr.mxu0 0.0
        %1558 = vmatpush1.msra.mxu0 0.0
        %1559 = vmatprep.subr.mxu0 0.0
        %1560 = vmatpush1.msra.mxu0 0.0
        %1561 = vmatprep.subr.mxu0 0.0
        %1562 = vmatpush1.msra.mxu0 0.0
        %1563 = vmatprep.subr.mxu0 0.0
        %1564 = vmatpush1.msra.mxu0 0.0
        %1565 = vmatprep.subr.mxu0 0.0
        %1566 = vmatpush1.msra.mxu0 0.0
        %1567 = vmatprep.subr.mxu0 0.0
        %1568 = vmatpush1.msra.mxu0 0.0
        %1569 = vmatprep.subr.mxu0 0.0
        %1570 = vmatpush1.msra.mxu0 0.0
        %1571 = vmatprep.subr.mxu0 0.0
        %1572 = vmatpush1.msra.mxu0 0.0
        %1573 = vmatprep.subr.mxu0 0.0
        %1574 = vmatpush1.msra.mxu0 0.0
        %1575 = vmatprep.subr.mxu0 0.0
        %1576 = vmatpush1.msra.mxu0 0.0
        %1577 = vmatprep.subr.mxu0 0.0
        %1578 = vmatpush1.msra.mxu0 0.0
        %1579 = vmatprep.subr.mxu0 0.0
        %1580 = vmatpush1.msra.mxu0 0.0
        %1581 = vmatprep.subr.mxu0 0.0
        %1582 = vmatpush1.msra.mxu0 0.0
        %1583 = vmatprep.subr.mxu0 0.0
        %1584 = vmatpush1.msra.mxu0 0.0
        %1585 = vmatprep.subr.mxu0 0.0
        %1586 = vmatpush1.msra.mxu0 0.0
        %1587 = vmatprep.subr.mxu0 0.0
        %1588 = vmatpush1.msra.mxu0 0.0
        %1589 = vmatprep.subr.mxu0 0.0
        %1590 = vmatpush1.msra.mxu0 0.0
        %1591 = vmatprep.mubr.f32.mxu0 0.0
        %1592 = vmatmul.mubr.f32.gmra.mrb[0].mxu0 %v1525
        %v1593 = vpop.f32.mrb[0].mxu0
        %v1594 = vadd.f32 0.0, %v1593
        %v1595 = vpop.f32.mrb[0].mxu0
        %1596 = vdwg.mxu0
        %v1597 = vadd.f32 %v1520, %v1594
        %v1598 = vld [vmem:[#allocation19] sm:$0x1]
        %v1600 = vlaneseq
        %v1601 = vshrl.u32 %v1600, 7
        %v1602 = vsub.s32 0, %v1601
        %v1603 = vrot.slane %v1598, %v1602
        %v1605 = vadd.f32 %v1597, %v1603
        %v1606 = vtanh.pop %v1605
        %v1607 = vpack.c.bf16 %v1606, %v1606
        %v1608 = vadd.s32 %v915, 128
        %v1609 = vadd.s32 %v915, 256
        %v1610 = vadd.s32 %v915, 384
        %v1611 = vadd.s32 %v915, 512
        %v1612 = vadd.s32 %v915, 640
        %v1613 = vadd.s32 %v915, 768
        %v1614 = vadd.s32 %v915, 896
        %v1615 = vadd.s32 %v915, 1024
        %v1616 = vadd.s32 %v915, 1152
        %v1617 = vld [vmem:[#allocation20] sm:$0xff]
        %v1618 = vld [vmem:[#allocation20 + $0x8] sm:$0xff]
        %v1619 = vld [vmem:[#allocation20 + $0x10] sm:$0xff]
        %v1620 = vld [vmem:[#allocation20 + $0x18] sm:$0xff]
        %v1621 = vld [vmem:[#allocation20 + $0x20] sm:$0xff]
        %v1622 = vld [vmem:[#allocation20 + $0xc8] sm:$0xff]
        %v1623 = vld [vmem:[#allocation20 + $0xd0] sm:$0xff]
        %v1624 = vld [vmem:[#allocation20 + $0xd8] sm:$0xff]
        %v1625 = vld [vmem:[#allocation20 + $0xe0] sm:$0xff]
        %v1626 = vld [vmem:[#allocation20 + $0xe8] sm:$0xff]
        %v1627 = vld [vmem:[#allocation20 + $0x190] sm:$0xff]
        %v1628 = vld [vmem:[#allocation20 + $0x198] sm:$0xff]
        %v1629 = vld [vmem:[#allocation20 + $0x1a0] sm:$0xff]
        %v1630 = vld [vmem:[#allocation20 + $0x1a8] sm:$0xff]
        %v1631 = vld [vmem:[#allocation20 + $0x1b0] sm:$0xff]
        %v1632 = vld [vmem:[#allocation20 + $0x258] sm:$0xff]
        %v1633 = vld [vmem:[#allocation20 + $0x260] sm:$0xff]
        %v1634 = vld [vmem:[#allocation20 + $0x268] sm:$0xff]
        %v1635 = vld [vmem:[#allocation20 + $0x270] sm:$0xff]
        %v1636 = vld [vmem:[#allocation20 + $0x278] sm:$0xff]
        %v1637 = vld [vmem:[#allocation22] sm:$0xff]
        %v1638 = vld [vmem:[#allocation22 + $0x8] sm:$0x3]
        %v1641 = vlaneseq
        %v1642 = vshrl.u32 %v1641, 7
        %v1643 = vsub.s32 0, %v1642
        %v1644 = vrot.slane %v1637, %v1643
        %v1645 = vlaneseq
        %v1646 = vshrl.u32 %v1645, 7
        %v1647 = vsub.s32 1, %v1646
        %v1648 = vrot.slane %v1637, %v1647
        %v1649 = vlaneseq
        %v1650 = vshrl.u32 %v1649, 7
        %v1651 = vsub.s32 2, %v1650
        %v1652 = vrot.slane %v1637, %v1651
        %v1653 = vlaneseq
        %v1654 = vshrl.u32 %v1653, 7
        %v1655 = vsub.s32 3, %v1654
        %v1656 = vrot.slane %v1637, %v1655
        %v1657 = vlaneseq
        %v1658 = vshrl.u32 %v1657, 7
        %v1659 = vsub.s32 4, %v1658
        %v1660 = vrot.slane %v1637, %v1659
        %v1661 = vlaneseq
        %v1662 = vshrl.u32 %v1661, 7
        %v1663 = vsub.s32 5, %v1662
        %v1664 = vrot.slane %v1637, %v1663
        %v1665 = vlaneseq
        %v1666 = vshrl.u32 %v1665, 7
        %v1667 = vsub.s32 6, %v1666
        %v1668 = vrot.slane %v1637, %v1667
        %v1669 = vlaneseq
        %v1670 = vshrl.u32 %v1669, 7
        %v1671 = vsub.s32 7, %v1670
        %v1672 = vrot.slane %v1637, %v1671
        %v1673 = vlaneseq
        %v1674 = vshrl.u32 %v1673, 7
        %v1675 = vsub.s32 0, %v1674
        %v1676 = vrot.slane %v1638, %v1675
        %v1677 = vlaneseq
        %v1678 = vshrl.u32 %v1677, 7
        %v1679 = vsub.s32 1, %v1678
        %v1680 = vrot.slane %v1638, %v1679
        %v1711 = vunpack.c.l.b16 %v1617
        %v1712 = vunpack.c.h.b16 %v1617
        %v1713 = vunpack.c.l.b16 %v1618
        %v1714 = vunpack.c.h.b16 %v1618
        %v1715 = vunpack.c.l.b16 %v1619
        %v1716 = vunpack.c.h.b16 %v1619
        %v1717 = vunpack.c.l.b16 %v1620
        %v1718 = vunpack.c.h.b16 %v1620
        %v1719 = vunpack.c.l.b16 %v1621
        %v1720 = vunpack.c.h.b16 %v1621
        %v1721 = vunpack.c.l.b16 %v1622
        %v1722 = vunpack.c.h.b16 %v1622
        %v1723 = vunpack.c.l.b16 %v1623
        %v1724 = vunpack.c.h.b16 %v1623
        %v1725 = vunpack.c.l.b16 %v1624
        %v1726 = vunpack.c.h.b16 %v1624
        %v1727 = vunpack.c.l.b16 %v1625
        %v1728 = vunpack.c.h.b16 %v1625
        %v1729 = vunpack.c.l.b16 %v1626
        %v1730 = vunpack.c.h.b16 %v1626
        %v1731 = vunpack.c.l.b16 %v1627
        %v1732 = vunpack.c.h.b16 %v1627
        %v1733 = vunpack.c.l.b16 %v1628
        %v1734 = vunpack.c.h.b16 %v1628
        %v1735 = vunpack.c.l.b16 %v1629
        %v1736 = vunpack.c.h.b16 %v1629
        %v1737 = vunpack.c.l.b16 %v1630
        %v1738 = vunpack.c.h.b16 %v1630
        %v1739 = vunpack.c.l.b16 %v1631
        %v1740 = vunpack.c.h.b16 %v1631
        %v1741 = vunpack.c.l.b16 %v1632
        %v1742 = vunpack.c.h.b16 %v1632
        %v1743 = vunpack.c.l.b16 %v1633
        %v1744 = vunpack.c.h.b16 %v1633
        %v1745 = vunpack.c.l.b16 %v1634
        %v1746 = vunpack.c.h.b16 %v1634
        %v1747 = vunpack.c.l.b16 %v1635
        %v1748 = vunpack.c.h.b16 %v1635
        %v1749 = vunpack.c.l.b16 %v1636
        %v1750 = vunpack.c.h.b16 %v1636
        %v1751 = vpack.c.b16 %v1721, %v1711
        %v1752 = vpack.c.b16 %v1722, %v1712
        %v1753 = vpack.c.b16 %v1723, %v1713
        %v1754 = vpack.c.b16 %v1724, %v1714
        %v1755 = vpack.c.b16 %v1725, %v1715
        %v1756 = vpack.c.b16 %v1726, %v1716
        %v1757 = vpack.c.b16 %v1727, %v1717
        %v1758 = vpack.c.b16 %v1728, %v1718
        %v1759 = vpack.c.b16 %v1729, %v1719
        %v1760 = vpack.c.b16 %v1730, %v1720
        %v1761 = vpack.c.b16 %v1741, %v1731
        %v1762 = vpack.c.b16 %v1742, %v1732
        %v1763 = vpack.c.b16 %v1743, %v1733
        %v1764 = vpack.c.b16 %v1744, %v1734
        %v1765 = vpack.c.b16 %v1745, %v1735
        %v1766 = vpack.c.b16 %v1746, %v1736
        %v1767 = vpack.c.b16 %v1747, %v1737
        %v1768 = vpack.c.b16 %v1748, %v1738
        %v1769 = vpack.c.b16 %v1749, %v1739
        %v1770 = vpack.c.b16 %v1750, %v1740
        %v1792 = vsel %vm1447, %v1607, 0
        %1794 = vmatprep.subr.bf16.mxu0 %v1752
        %1795 = vmatpush1.bf16.msra.mxu0 %v1751
        %1796 = vmatprep.subr.bf16.mxu0 %v1762
        %1797 = vmatpush1.bf16.msra.mxu0 %v1761
        %1798 = vmatprep.subr.bf16.mxu0 0
        %1799 = vmatpush1.bf16.msra.mxu0 0
        %1800 = vmatprep.subr.bf16.mxu0 0
        %1801 = vmatpush1.bf16.msra.mxu0 0
        %1802 = vmatprep.subr.bf16.mxu0 0
        %1803 = vmatpush1.bf16.msra.mxu0 0
        %1804 = vmatprep.subr.bf16.mxu0 0
        %1805 = vmatpush1.bf16.msra.mxu0 0
        %1806 = vmatprep.subr.bf16.mxu0 0
        %1807 = vmatpush1.bf16.msra.mxu0 0
        %1808 = vmatprep.subr.bf16.mxu0 0
        %1809 = vmatpush1.bf16.msra.mxu0 0
        %1810 = vmatprep.subr.bf16.mxu0 0
        %1811 = vmatpush1.bf16.msra.mxu0 0
        %1812 = vmatprep.subr.bf16.mxu0 0
        %1813 = vmatpush1.bf16.msra.mxu0 0
        %1814 = vmatprep.subr.bf16.mxu0 0
        %1815 = vmatpush1.bf16.msra.mxu0 0
        %1816 = vmatprep.subr.bf16.mxu0 0
        %1817 = vmatpush1.bf16.msra.mxu0 0
        %1818 = vmatprep.subr.bf16.mxu0 0
        %1819 = vmatpush1.bf16.msra.mxu0 0
        %1820 = vmatprep.subr.bf16.mxu0 0
        %1821 = vmatpush1.bf16.msra.mxu0 0
        %1822 = vmatprep.subr.bf16.mxu0 0
        %1823 = vmatpush1.bf16.msra.mxu0 0
        %1824 = vmatprep.subr.bf16.mxu0 0
        %1825 = vmatpush1.bf16.msra.mxu0 0
        %1826 = vmatprep.mubr.bf16.mxu0 0
        %1827 = vmatmul.mubr.bf16.gmra.mrb[0].mxu0 %v1792
        %v1828 = vpop.f32.mrb[0].mxu0
        %v1829 = vadd.f32 %v1644, %v1828
        %v1830 = vpop.f32.mrb[0].mxu0
        %v1831 = vadd.f32 %v1648, %v1830
        %v1832 = vpop.f32.mrb[0].mxu0
        %v1833 = vpop.f32.mrb[0].mxu0
        %1834 = vdwg.mxu0
        %1835 = vmatprep.subr.bf16.mxu0 %v1754
        %1836 = vmatpush1.bf16.msra.mxu0 %v1753
        %1837 = vmatprep.subr.bf16.mxu0 %v1764
        %1838 = vmatpush1.bf16.msra.mxu0 %v1763
        %1839 = vmatprep.subr.bf16.mxu0 0
        %1840 = vmatpush1.bf16.msra.mxu0 0
        %1841 = vmatprep.subr.bf16.mxu0 0
        %1842 = vmatpush1.bf16.msra.mxu0 0
        %1843 = vmatprep.subr.bf16.mxu0 0
        %1844 = vmatpush1.bf16.msra.mxu0 0
        %1845 = vmatprep.subr.bf16.mxu0 0
        %1846 = vmatpush1.bf16.msra.mxu0 0
        %1847 = vmatprep.subr.bf16.mxu0 0
        %1848 = vmatpush1.bf16.msra.mxu0 0
        %1849 = vmatprep.subr.bf16.mxu0 0
        %1850 = vmatpush1.bf16.msra.mxu0 0
        %1851 = vmatprep.subr.bf16.mxu0 0
        %1852 = vmatpush1.bf16.msra.mxu0 0
        %1853 = vmatprep.subr.bf16.mxu0 0
        %1854 = vmatpush1.bf16.msra.mxu0 0
        %1855 = vmatprep.subr.bf16.mxu0 0
        %1856 = vmatpush1.bf16.msra.mxu0 0
        %1857 = vmatprep.subr.bf16.mxu0 0
        %1858 = vmatpush1.bf16.msra.mxu0 0
        %1859 = vmatprep.subr.bf16.mxu0 0
        %1860 = vmatpush1.bf16.msra.mxu0 0
        %1861 = vmatprep.subr.bf16.mxu0 0
        %1862 = vmatpush1.bf16.msra.mxu0 0
        %1863 = vmatprep.subr.bf16.mxu0 0
        %1864 = vmatpush1.bf16.msra.mxu0 0
        %1865 = vmatprep.subr.bf16.mxu0 0
        %1866 = vmatpush1.bf16.msra.mxu0 0
        %1867 = vmatprep.mubr.bf16.mxu0 0
        %1868 = vmatmul.mubr.bf16.gmra.mrb[0].mxu0 %v1792
        %v1869 = vpop.f32.mrb[0].mxu0
        %v1870 = vadd.f32 %v1652, %v1869
        %v1871 = vpop.f32.mrb[0].mxu0
        %v1872 = vadd.f32 %v1656, %v1871
        %v1873 = vpop.f32.mrb[0].mxu0
        %v1874 = vpop.f32.mrb[0].mxu0
        %1875 = vdwg.mxu0
        %1876 = vmatprep.subr.bf16.mxu0 %v1756
        %1877 = vmatpush1.bf16.msra.mxu0 %v1755
        %1878 = vmatprep.subr.bf16.mxu0 %v1766
        %1879 = vmatpush1.bf16.msra.mxu0 %v1765
        %1880 = vmatprep.subr.bf16.mxu0 0
        %1881 = vmatpush1.bf16.msra.mxu0 0
        %1882 = vmatprep.subr.bf16.mxu0 0
        %1883 = vmatpush1.bf16.msra.mxu0 0
        %1884 = vmatprep.subr.bf16.mxu0 0
        %1885 = vmatpush1.bf16.msra.mxu0 0
        %1886 = vmatprep.subr.bf16.mxu0 0
        %1887 = vmatpush1.bf16.msra.mxu0 0
        %1888 = vmatprep.subr.bf16.mxu0 0
        %1889 = vmatpush1.bf16.msra.mxu0 0
        %1890 = vmatprep.subr.bf16.mxu0 0
        %1891 = vmatpush1.bf16.msra.mxu0 0
        %1892 = vmatprep.subr.bf16.mxu0 0
        %1893 = vmatpush1.bf16.msra.mxu0 0
        %1894 = vmatprep.subr.bf16.mxu0 0
        %1895 = vmatpush1.bf16.msra.mxu0 0
        %1896 = vmatprep.subr.bf16.mxu0 0
        %1897 = vmatpush1.bf16.msra.mxu0 0
        %1898 = vmatprep.subr.bf16.mxu0 0
        %1899 = vmatpush1.bf16.msra.mxu0 0
        %1900 = vmatprep.subr.bf16.mxu0 0
        %1901 = vmatpush1.bf16.msra.mxu0 0
        %1902 = vmatprep.subr.bf16.mxu0 0
        %1903 = vmatpush1.bf16.msra.mxu0 0
        %1904 = vmatprep.subr.bf16.mxu0 0
        %1905 = vmatpush1.bf16.msra.mxu0 0
        %1906 = vmatprep.subr.bf16.mxu0 0
        %1907 = vmatpush1.bf16.msra.mxu0 0
        %1908 = vmatprep.mubr.bf16.mxu0 0
        %1909 = vmatmul.mubr.bf16.gmra.mrb[0].mxu0 %v1792
        %v1910 = vpop.f32.mrb[0].mxu0
        %v1911 = vadd.f32 %v1660, %v1910
        %v1912 = vpop.f32.mrb[0].mxu0
        %v1913 = vadd.f32 %v1664, %v1912
        %v1914 = vpop.f32.mrb[0].mxu0
        %v1915 = vpop.f32.mrb[0].mxu0
        %1916 = vdwg.mxu0
        %1917 = vmatprep.subr.bf16.mxu0 %v1758
        %1918 = vmatpush1.bf16.msra.mxu0 %v1757
        %1919 = vmatprep.subr.bf16.mxu0 %v1768
        %1920 = vmatpush1.bf16.msra.mxu0 %v1767
        %1921 = vmatprep.subr.bf16.mxu0 0
        %1922 = vmatpush1.bf16.msra.mxu0 0
        %1923 = vmatprep.subr.bf16.mxu0 0
        %1924 = vmatpush1.bf16.msra.mxu0 0
        %1925 = vmatprep.subr.bf16.mxu0 0
        %1926 = vmatpush1.bf16.msra.mxu0 0
        %1927 = vmatprep.subr.bf16.mxu0 0
        %1928 = vmatpush1.bf16.msra.mxu0 0
        %1929 = vmatprep.subr.bf16.mxu0 0
        %1930 = vmatpush1.bf16.msra.mxu0 0
        %1931 = vmatprep.subr.bf16.mxu0 0
        %1932 = vmatpush1.bf16.msra.mxu0 0
        %1933 = vmatprep.subr.bf16.mxu0 0
        %1934 = vmatpush1.bf16.msra.mxu0 0
        %1935 = vmatprep.subr.bf16.mxu0 0
        %1936 = vmatpush1.bf16.msra.mxu0 0
        %1937 = vmatprep.subr.bf16.mxu0 0
        %1938 = vmatpush1.bf16.msra.mxu0 0
        %1939 = vmatprep.subr.bf16.mxu0 0
        %1940 = vmatpush1.bf16.msra.mxu0 0
        %1941 = vmatprep.subr.bf16.mxu0 0
        %1942 = vmatpush1.bf16.msra.mxu0 0
        %1943 = vmatprep.subr.bf16.mxu0 0
        %1944 = vmatpush1.bf16.msra.mxu0 0
        %1945 = vmatprep.subr.bf16.mxu0 0
        %1946 = vmatpush1.bf16.msra.mxu0 0
        %1947 = vmatprep.subr.bf16.mxu0 0
        %1948 = vmatpush1.bf16.msra.mxu0 0
        %1949 = vmatprep.mubr.bf16.mxu0 0
        %1950 = vmatmul.mubr.bf16.gmra.mrb[0].mxu0 %v1792
        %v1951 = vpop.f32.mrb[0].mxu0
        %v1952 = vadd.f32 %v1668, %v1951
        %v1953 = vpop.f32.mrb[0].mxu0
        %v1954 = vadd.f32 %v1672, %v1953
        %v1955 = vpop.f32.mrb[0].mxu0
        %v1956 = vpop.f32.mrb[0].mxu0
        %1957 = vdwg.mxu0
        %1958 = vmatprep.subr.bf16.mxu0 %v1760
        %1959 = vmatpush1.bf16.msra.mxu0 %v1759
        %1960 = vmatprep.subr.bf16.mxu0 %v1770
        %1961 = vmatpush1.bf16.msra.mxu0 %v1769
        %1962 = vmatprep.subr.bf16.mxu0 0
        %1963 = vmatpush1.bf16.msra.mxu0 0
        %1964 = vmatprep.subr.bf16.mxu0 0
        %1965 = vmatpush1.bf16.msra.mxu0 0
        %1966 = vmatprep.subr.bf16.mxu0 0
        %1967 = vmatpush1.bf16.msra.mxu0 0
        %1968 = vmatprep.subr.bf16.mxu0 0
        %1969 = vmatpush1.bf16.msra.mxu0 0
        %1970 = vmatprep.subr.bf16.mxu0 0
        %1971 = vmatpush1.bf16.msra.mxu0 0
        %1972 = vmatprep.subr.bf16.mxu0 0
        %1973 = vmatpush1.bf16.msra.mxu0 0
        %1974 = vmatprep.subr.bf16.mxu0 0
        %1975 = vmatpush1.bf16.msra.mxu0 0
        %1976 = vmatprep.subr.bf16.mxu0 0
        %1977 = vmatpush1.bf16.msra.mxu0 0
        %1978 = vmatprep.subr.bf16.mxu0 0
        %1979 = vmatpush1.bf16.msra.mxu0 0
        %1980 = vmatprep.subr.bf16.mxu0 0
        %1981 = vmatpush1.bf16.msra.mxu0 0
        %1982 = vmatprep.subr.bf16.mxu0 0
        %1983 = vmatpush1.bf16.msra.mxu0 0
        %1984 = vmatprep.subr.bf16.mxu0 0
        %1985 = vmatpush1.bf16.msra.mxu0 0
        %1986 = vmatprep.subr.bf16.mxu0 0
        %1987 = vmatpush1.bf16.msra.mxu0 0
        %1988 = vmatprep.subr.bf16.mxu0 0
        %1989 = vmatpush1.bf16.msra.mxu0 0
        %1990 = vmatprep.mubr.bf16.mxu0 0
        %1991 = vmatmul.mubr.bf16.gmra.mrb[0].mxu0 %v1792
        %v1992 = vpop.f32.mrb[0].mxu0
        %v1993 = vadd.f32 %v1676, %v1992
        %v1994 = vpop.f32.mrb[0].mxu0
        %v1995 = vadd.f32 %v1680, %v1994
        %v1996 = vpop.f32.mrb[0].mxu0
        %v1997 = vpop.f32.mrb[0].mxu0
        %1998 = vdwg.mxu0
        %1999 = vst [vmem:[%s568] sm:$0xff] %v1829
        %2000 = vst [vmem:[%s568 + $0x8] sm:$0xff] %v1831
        %2001 = vst [vmem:[%s568 + $0x10] sm:$0xff] %v1870
        %2002 = vst [vmem:[%s568 + $0x18] sm:$0xff] %v1872
        %2003 = vst [vmem:[%s568 + $0x20] sm:$0xff] %v1911
        %2004 = vst [vmem:[%s568 + $0x28] sm:$0xff] %v1913
        %2005 = vst [vmem:[%s568 + $0x30] sm:$0xff] %v1952
        %2006 = vst [vmem:[%s568 + $0x38] sm:$0xff] %v1954
        %2007 = vst [vmem:[%s568 + $0x40] sm:$0xff] %v1993
        %2008 = vst [vmem:[%s568 + $0x48] sm:$0xff] %v1995
        %v2009 = vmax.f32 %v1829, %v1911
        %v2010 = vmax.f32 %v1831, %v1913
        %v2011 = vmax.f32 %v1870, %v1952
        %v2012 = vmax.f32 %v1872, %v1954
        %v2013 = vmax.f32 %v2009, %v1993
        %v2014 = vmax.f32 %v2010, %v1995
        %v2015 = vmax.f32 %v2013, %v2014
        %v2016 = vmax.f32 %v2011, %v2012
        %v2017 = vmax.f32 %v2015, %v2016
        %2018 = vmax.xlane.f32.xlu0 %v2017
        %v2019 = vpop.xlane.xlu0 %2018
        %vm2020 = vcmp.eq.f32.partialorder %v1829, %v2019
        %vm2021 = vcmp.eq.f32.partialorder %v1831, %v2019
        %vm2022 = vcmp.eq.f32.partialorder %v1870, %v2019
        %vm2023 = vcmp.eq.f32.partialorder %v1872, %v2019
        %vm2024 = vcmp.eq.f32.partialorder %v1911, %v2019
        %vm2025 = vcmp.eq.f32.partialorder %v1913, %v2019
        %vm2026 = vcmp.eq.f32.partialorder %v1952, %v2019
        %vm2027 = vcmp.eq.f32.partialorder %v1954, %v2019
        %vm2028 = vcmp.eq.f32.partialorder %v1993, %v2019
        %vm2029 = vcmp.eq.f32.partialorder %v1995, %v2019
        %v2030 = vsel %vm2020, %v915, 1280
        %v2031 = vsel %vm2021, %v1608, 1280
        %v2032 = vsel %vm2022, %v1609, 1280
        %v2033 = vsel %vm2023, %v1610, 1280
        %v2034 = vsel %vm2024, %v1611, 1280
        %v2035 = vsel %vm2025, %v1612, 1280
        %v2036 = vsel %vm2026, %v1613, 1280
        %v2037 = vsel %vm2027, %v1614, 1280
        %v2038 = vsel %vm2028, %v1615, 1280
        %v2039 = vsel %vm2029, %v1616, 1280
        %vm2040 = vcmp.lt.s32.totalorder %v2030, %v2034
        %v2041 = vsel %vm2040, %v2030, %v2034
        %vm2042 = vcmp.lt.s32.totalorder %v2031, %v2035
        %v2043 = vsel %vm2042, %v2031, %v2035
        %vm2044 = vcmp.lt.s32.totalorder %v2032, %v2036
        %v2045 = vsel %vm2044, %v2032, %v2036
        %vm2046 = vcmp.lt.s32.totalorder %v2033, %v2037
        %v2047 = vsel %vm2046, %v2033, %v2037
        %vm2048 = vcmp.lt.s32.totalorder %v2041, %v2038
        %v2049 = vsel %vm2048, %v2041, %v2038
        %vm2050 = vcmp.lt.s32.totalorder %v2043, %v2039
        %v2051 = vsel %vm2050, %v2043, %v2039
        %vm2052 = vcmp.lt.s32.totalorder %v2049, %v2051
        %v2053 = vsel %vm2052, %v2049, %v2051
        %vm2054 = vcmp.lt.s32.totalorder %v2045, %v2047
        %v2055 = vsel %vm2054, %v2045, %v2047
        %vm2056 = vcmp.lt.s32.totalorder %v2053, %v2055
        %v2057 = vsel %vm2056, %v2053, %v2055
        %v2058 = vand.u32 %v2057, 65535
        %v2059 = vshra.s32 %v2057, 16
        %v2060 = vcvt.s32.f32 %v2058
        %v2061 = vcvt.s32.f32 %v2059
        %2062 = vmin.xlane.f32.xlu0 %v2061
        %v2063 = vpop.xlane.xlu0 %2062
        %vm2064 = vcmp.eq.f32.partialorder %v2061, %v2063
        %v2065 = vsel %vm2064, %v2060, inf
        %2066 = vmin.xlane.f32.xlu0 %v2065
        %v2067 = vpop.xlane.xlu0 %2066
        %v2068 = vcvt.f32.s32 %v2067
        %v2069 = vcvt.f32.s32 %v2063
        %v2070 = vshll.u32 %v2069, 16
        %v2071 = vadd.s32 %v2070, %v2068
        %vm2072 = vcmp.gt.f32.partialorder %v2019, -inf
        %v2073 = vsel %vm2072, %v2071, 0
        %v2074 = vsel %vm2072, %v2019, -inf
        %v2075 = vld [vmem:[#allocation20 + $0x28] sm:$0xff]
        %v2076 = vld [vmem:[#allocation20 + $0x30] sm:$0xff]
        %v2077 = vld [vmem:[#allocation20 + $0x38] sm:$0xff]
        %v2078 = vld [vmem:[#allocation20 + $0x40] sm:$0xff]
        %v2079 = vld [vmem:[#allocation20 + $0x48] sm:$0xff]
        %v2080 = vld [vmem:[#allocation20 + $0xf0] sm:$0xff]
        %v2081 = vld [vmem:[#allocation20 + $0xf8] sm:$0xff]
        %v2082 = vld [vmem:[#allocation20 + $0x100] sm:$0xff]
        %v2083 = vld [vmem:[#allocation20 + $0x108] sm:$0xff]
        %v2084 = vld [vmem:[#allocation20 + $0x110] sm:$0xff]
        %v2085 = vld [vmem:[#allocation20 + $0x1b8] sm:$0xff]
        %v2086 = vld [vmem:[#allocation20 + $0x1c0] sm:$0xff]
        %v2087 = vld [vmem:[#allocation20 + $0x1c8] sm:$0xff]
        %v2088 = vld [vmem:[#allocation20 + $0x1d0] sm:$0xff]
        %v2089 = vld [vmem:[#allocation20 + $0x1d8] sm:$0xff]
        %v2090 = vld [vmem:[#allocation20 + $0x280] sm:$0xff]
        %v2091 = vld [vmem:[#allocation20 + $0x288] sm:$0xff]
        %v2092 = vld [vmem:[#allocation20 + $0x290] sm:$0xff]
        %v2093 = vld [vmem:[#allocation20 + $0x298] sm:$0xff]
        %v2094 = vld [vmem:[#allocation20 + $0x2a0] sm:$0xff]
        %v2095 = vld [vmem:[#allocation22 + $0xa] sm:$0xff]
        %v2096 = vld [vmem:[#allocation22 + $0x12] sm:$0x3]
        %v2099 = vlaneseq
        %v2100 = vshrl.u32 %v2099, 7
        %v2101 = vsub.s32 0, %v2100
        %v2102 = vrot.slane %v2095, %v2101
        %v2103 = vlaneseq
        %v2104 = vshrl.u32 %v2103, 7
        %v2105 = vsub.s32 1, %v2104
        %v2106 = vrot.slane %v2095, %v2105
        %v2107 = vlaneseq
        %v2108 = vshrl.u32 %v2107, 7
        %v2109 = vsub.s32 2, %v2108
        %v2110 = vrot.slane %v2095, %v2109
        %v2111 = vlaneseq
        %v2112 = vshrl.u32 %v2111, 7
        %v2113 = vsub.s32 3, %v2112
        %v2114 = vrot.slane %v2095, %v2113
        %v2115 = vlaneseq
        %v2116 = vshrl.u32 %v2115, 7
        %v2117 = vsub.s32 4, %v2116
        %v2118 = vrot.slane %v2095, %v2117
        %v2119 = vlaneseq
        %v2120 = vshrl.u32 %v2119, 7
        %v2121 = vsub.s32 5, %v2120
        %v2122 = vrot.slane %v2095, %v2121
        %v2123 = vlaneseq
        %v2124 = vshrl.u32 %v2123, 7
        %v2125 = vsub.s32 6, %v2124
        %v2126 = vrot.slane %v2095, %v2125
        %v2127 = vlaneseq
        %v2128 = vshrl.u32 %v2127, 7
        %v2129 = vsub.s32 7, %v2128
        %v2130 = vrot.slane %v2095, %v2129
        %v2131 = vlaneseq
        %v2132 = vshrl.u32 %v2131, 7
        %v2133 = vsub.s32 0, %v2132
        %v2134 = vrot.slane %v2096, %v2133
        %v2135 = vlaneseq
        %v2136 = vshrl.u32 %v2135, 7
        %v2137 = vsub.s32 1, %v2136
        %v2138 = vrot.slane %v2096, %v2137
        %v2169 = vunpack.c.l.b16 %v2075
        %v2170 = vunpack.c.h.b16 %v2075
        %v2171 = vunpack.c.l.b16 %v2076
        %v2172 = vunpack.c.h.b16 %v2076
        %v2173 = vunpack.c.l.b16 %v2077
        %v2174 = vunpack.c.h.b16 %v2077
        %v2175 = vunpack.c.l.b16 %v2078
        %v2176 = vunpack.c.h.b16 %v2078
        %v2177 = vunpack.c.l.b16 %v2079
        %v2178 = vunpack.c.h.b16 %v2079
        %v2179 = vunpack.c.l.b16 %v2080
        %v2180 = vunpack.c.h.b16 %v2080
        %v2181 = vunpack.c.l.b16 %v2081
        %v2182 = vunpack.c.h.b16 %v2081
        %v2183 = vunpack.c.l.b16 %v2082
        %v2184 = vunpack.c.h.b16 %v2082
        %v2185 = vunpack.c.l.b16 %v2083
        %v2186 = vunpack.c.h.b16 %v2083
        %v2187 = vunpack.c.l.b16 %v2084
        %v2188 = vunpack.c.h.b16 %v2084
        %v2189 = vunpack.c.l.b16 %v2085
        %v2190 = vunpack.c.h.b16 %v2085
        %v2191 = vunpack.c.l.b16 %v2086
        %v2192 = vunpack.c.h.b16 %v2086
        %v2193 = vunpack.c.l.b16 %v2087
        %v2194 = vunpack.c.h.b16 %v2087
        %v2195 = vunpack.c.l.b16 %v2088
        %v2196 = vunpack.c.h.b16 %v2088
        %v2197 = vunpack.c.l.b16 %v2089
        %v2198 = vunpack.c.h.b16 %v2089
        %v2199 = vunpack.c.l.b16 %v2090
        %v2200 = vunpack.c.h.b16 %v2090
        %v2201 = vunpack.c.l.b16 %v2091
        %v2202 = vunpack.c.h.b16 %v2091
        %v2203 = vunpack.c.l.b16 %v2092
        %v2204 = vunpack.c.h.b16 %v2092
        %v2205 = vunpack.c.l.b16 %v2093
        %v2206 = vunpack.c.h.b16 %v2093
        %v2207 = vunpack.c.l.b16 %v2094
        %v2208 = vunpack.c.h.b16 %v2094
        %v2209 = vpack.c.b16 %v2179, %v2169
        %v2210 = vpack.c.b16 %v2180, %v2170
        %v2211 = vpack.c.b16 %v2181, %v2171
        %v2212 = vpack.c.b16 %v2182, %v2172
        %v2213 = vpack.c.b16 %v2183, %v2173
        %v2214 = vpack.c.b16 %v2184, %v2174
        %v2215 = vpack.c.b16 %v2185, %v2175
        %v2216 = vpack.c.b16 %v2186, %v2176
        %v2217 = vpack.c.b16 %v2187, %v2177
        %v2218 = vpack.c.b16 %v2188, %v2178
        %v2219 = vpack.c.b16 %v2199, %v2189
        %v2220 = vpack.c.b16 %v2200, %v2190
        %v2221 = vpack.c.b16 %v2201, %v2191
        %v2222 = vpack.c.b16 %v2202, %v2192
        %v2223 = vpack.c.b16 %v2203, %v2193
        %v2224 = vpack.c.b16 %v2204, %v2194
        %v2225 = vpack.c.b16 %v2205, %v2195
        %v2226 = vpack.c.b16 %v2206, %v2196
        %v2227 = vpack.c.b16 %v2207, %v2197
        %v2228 = vpack.c.b16 %v2208, %v2198
        %2249 = vmatprep.subr.bf16.mxu0 %v2210
        %2250 = vmatpush1.bf16.msra.mxu0 %v2209
        %2251 = vmatprep.subr.bf16.mxu0 %v2220
        %2252 = vmatpush1.bf16.msra.mxu0 %v2219
        %2253 = vmatprep.subr.bf16.mxu0 0
        %2254 = vmatpush1.bf16.msra.mxu0 0
        %2255 = vmatprep.subr.bf16.mxu0 0
        %2256 = vmatpush1.bf16.msra.mxu0 0
        %2257 = vmatprep.subr.bf16.mxu0 0
        %2258 = vmatpush1.bf16.msra.mxu0 0
        %2259 = vmatprep.subr.bf16.mxu0 0
        %2260 = vmatpush1.bf16.msra.mxu0 0
        %2261 = vmatprep.subr.bf16.mxu0 0
        %2262 = vmatpush1.bf16.msra.mxu0 0
        %2263 = vmatprep.subr.bf16.mxu0 0
        %2264 = vmatpush1.bf16.msra.mxu0 0
        %2265 = vmatprep.subr.bf16.mxu0 0
        %2266 = vmatpush1.bf16.msra.mxu0 0
        %2267 = vmatprep.subr.bf16.mxu0 0
        %2268 = vmatpush1.bf16.msra.mxu0 0
        %2269 = vmatprep.subr.bf16.mxu0 0
        %2270 = vmatpush1.bf16.msra.mxu0 0
        %2271 = vmatprep.subr.bf16.mxu0 0
        %2272 = vmatpush1.bf16.msra.mxu0 0
        %2273 = vmatprep.subr.bf16.mxu0 0
        %2274 = vmatpush1.bf16.msra.mxu0 0
        %2275 = vmatprep.subr.bf16.mxu0 0
        %2276 = vmatpush1.bf16.msra.mxu0 0
        %2277 = vmatprep.subr.bf16.mxu0 0
        %2278 = vmatpush1.bf16.msra.mxu0 0
        %2279 = vmatprep.subr.bf16.mxu0 0
        %2280 = vmatpush1.bf16.msra.mxu0 0
        %2281 = vmatprep.mubr.bf16.mxu0 0
        %2282 = vmatmul.mubr.bf16.gmra.mrb[0].mxu0 %v1792
        %v2283 = vpop.f32.mrb[0].mxu0
        %v2284 = vadd.f32 %v2102, %v2283
        %v2285 = vpop.f32.mrb[0].mxu0
        %v2286 = vadd.f32 %v2106, %v2285
        %v2287 = vpop.f32.mrb[0].mxu0
        %v2288 = vpop.f32.mrb[0].mxu0
        %2289 = vdwg.mxu0
        %2290 = vmatprep.subr.bf16.mxu0 %v2212
        %2291 = vmatpush1.bf16.msra.mxu0 %v2211
        %2292 = vmatprep.subr.bf16.mxu0 %v2222
        %2293 = vmatpush1.bf16.msra.mxu0 %v2221
        %2294 = vmatprep.subr.bf16.mxu0 0
        %2295 = vmatpush1.bf16.msra.mxu0 0
        %2296 = vmatprep.subr.bf16.mxu0 0
        %2297 = vmatpush1.bf16.msra.mxu0 0
        %2298 = vmatprep.subr.bf16.mxu0 0
        %2299 = vmatpush1.bf16.msra.mxu0 0
        %2300 = vmatprep.subr.bf16.mxu0 0
        %2301 = vmatpush1.bf16.msra.mxu0 0
        %2302 = vmatprep.subr.bf16.mxu0 0
        %2303 = vmatpush1.bf16.msra.mxu0 0
        %2304 = vmatprep.subr.bf16.mxu0 0
        %2305 = vmatpush1.bf16.msra.mxu0 0
        %2306 = vmatprep.subr.bf16.mxu0 0
        %2307 = vmatpush1.bf16.msra.mxu0 0
        %2308 = vmatprep.subr.bf16.mxu0 0
        %2309 = vmatpush1.bf16.msra.mxu0 0
        %2310 = vmatprep.subr.bf16.mxu0 0
        %2311 = vmatpush1.bf16.msra.mxu0 0
        %2312 = vmatprep.subr.bf16.mxu0 0
        %2313 = vmatpush1.bf16.msra.mxu0 0
        %2314 = vmatprep.subr.bf16.mxu0 0
        %2315 = vmatpush1.bf16.msra.mxu0 0
        %2316 = vmatprep.subr.bf16.mxu0 0
        %2317 = vmatpush1.bf16.msra.mxu0 0
        %2318 = vmatprep.subr.bf16.mxu0 0
        %2319 = vmatpush1.bf16.msra.mxu0 0
        %2320 = vmatprep.subr.bf16.mxu0 0
        %2321 = vmatpush1.bf16.msra.mxu0 0
        %2322 = vmatprep.mubr.bf16.mxu0 0
        %2323 = vmatmul.mubr.bf16.gmra.mrb[0].mxu0 %v1792
        %v2324 = vpop.f32.mrb[0].mxu0
        %v2325 = vadd.f32 %v2110, %v2324
        %v2326 = vpop.f32.mrb[0].mxu0
        %v2327 = vadd.f32 %v2114, %v2326
        %v2328 = vpop.f32.mrb[0].mxu0
        %v2329 = vpop.f32.mrb[0].mxu0
        %2330 = vdwg.mxu0
        %2331 = vmatprep.subr.bf16.mxu0 %v2214
        %2332 = vmatpush1.bf16.msra.mxu0 %v2213
        %2333 = vmatprep.subr.bf16.mxu0 %v2224
        %2334 = vmatpush1.bf16.msra.mxu0 %v2223
        %2335 = vmatprep.subr.bf16.mxu0 0
        %2336 = vmatpush1.bf16.msra.mxu0 0
        %2337 = vmatprep.subr.bf16.mxu0 0
        %2338 = vmatpush1.bf16.msra.mxu0 0
        %2339 = vmatprep.subr.bf16.mxu0 0
        %2340 = vmatpush1.bf16.msra.mxu0 0
        %2341 = vmatprep.subr.bf16.mxu0 0
        %2342 = vmatpush1.bf16.msra.mxu0 0
        %2343 = vmatprep.subr.bf16.mxu0 0
        %2344 = vmatpush1.bf16.msra.mxu0 0
        %2345 = vmatprep.subr.bf16.mxu0 0
        %2346 = vmatpush1.bf16.msra.mxu0 0
        %2347 = vmatprep.subr.bf16.mxu0 0
        %2348 = vmatpush1.bf16.msra.mxu0 0
        %2349 = vmatprep.subr.bf16.mxu0 0
        %2350 = vmatpush1.bf16.msra.mxu0 0
        %2351 = vmatprep.subr.bf16.mxu0 0
        %2352 = vmatpush1.bf16.msra.mxu0 0
        %2353 = vmatprep.subr.bf16.mxu0 0
        %2354 = vmatpush1.bf16.msra.mxu0 0
        %2355 = vmatprep.subr.bf16.mxu0 0
        %2356 = vmatpush1.bf16.msra.mxu0 0
        %2357 = vmatprep.subr.bf16.mxu0 0
        %2358 = vmatpush1.bf16.msra.mxu0 0
        %2359 = vmatprep.subr.bf16.mxu0 0
        %2360 = vmatpush1.bf16.msra.mxu0 0
        %2361 = vmatprep.subr.bf16.mxu0 0
        %2362 = vmatpush1.bf16.msra.mxu0 0
        %2363 = vmatprep.mubr.bf16.mxu0 0
        %2364 = vmatmul.mubr.bf16.gmra.mrb[0].mxu0 %v1792
        %v2365 = vpop.f32.mrb[0].mxu0
        %v2366 = vadd.f32 %v2118, %v2365
        %v2367 = vpop.f32.mrb[0].mxu0
        %v2368 = vadd.f32 %v2122, %v2367
        %v2369 = vpop.f32.mrb[0].mxu0
        %v2370 = vpop.f32.mrb[0].mxu0
        %2371 = vdwg.mxu0
        %2372 = vmatprep.subr.bf16.mxu0 %v2216
        %2373 = vmatpush1.bf16.msra.mxu0 %v2215
        %2374 = vmatprep.subr.bf16.mxu0 %v2226
        %2375 = vmatpush1.bf16.msra.mxu0 %v2225
        %2376 = vmatprep.subr.bf16.mxu0 0
        %2377 = vmatpush1.bf16.msra.mxu0 0
        %2378 = vmatprep.subr.bf16.mxu0 0
        %2379 = vmatpush1.bf16.msra.mxu0 0
        %2380 = vmatprep.subr.bf16.mxu0 0
        %2381 = vmatpush1.bf16.msra.mxu0 0
        %2382 = vmatprep.subr.bf16.mxu0 0
        %2383 = vmatpush1.bf16.msra.mxu0 0
        %2384 = vmatprep.subr.bf16.mxu0 0
        %2385 = vmatpush1.bf16.msra.mxu0 0
        %2386 = vmatprep.subr.bf16.mxu0 0
        %2387 = vmatpush1.bf16.msra.mxu0 0
        %2388 = vmatprep.subr.bf16.mxu0 0
        %2389 = vmatpush1.bf16.msra.mxu0 0
        %2390 = vmatprep.subr.bf16.mxu0 0
        %2391 = vmatpush1.bf16.msra.mxu0 0
        %2392 = vmatprep.subr.bf16.mxu0 0
        %2393 = vmatpush1.bf16.msra.mxu0 0
        %2394 = vmatprep.subr.bf16.mxu0 0
        %2395 = vmatpush1.bf16.msra.mxu0 0
        %2396 = vmatprep.subr.bf16.mxu0 0
        %2397 = vmatpush1.bf16.msra.mxu0 0
        %2398 = vmatprep.subr.bf16.mxu0 0
        %2399 = vmatpush1.bf16.msra.mxu0 0
        %2400 = vmatprep.subr.bf16.mxu0 0
        %2401 = vmatpush1.bf16.msra.mxu0 0
        %2402 = vmatprep.subr.bf16.mxu0 0
        %2403 = vmatpush1.bf16.msra.mxu0 0
        %2404 = vmatprep.mubr.bf16.mxu0 0
        %2405 = vmatmul.mubr.bf16.gmra.mrb[0].mxu0 %v1792
        %v2406 = vpop.f32.mrb[0].mxu0
        %v2407 = vadd.f32 %v2126, %v2406
        %v2408 = vpop.f32.mrb[0].mxu0
        %v2409 = vadd.f32 %v2130, %v2408
        %v2410 = vpop.f32.mrb[0].mxu0
        %v2411 = vpop.f32.mrb[0].mxu0
        %2412 = vdwg.mxu0
        %2413 = vmatprep.subr.bf16.mxu0 %v2218
        %2414 = vmatpush1.bf16.msra.mxu0 %v2217
        %2415 = vmatprep.subr.bf16.mxu0 %v2228
        %2416 = vmatpush1.bf16.msra.mxu0 %v2227
        %2417 = vmatprep.subr.bf16.mxu0 0
        %2418 = vmatpush1.bf16.msra.mxu0 0
        %2419 = vmatprep.subr.bf16.mxu0 0
        %2420 = vmatpush1.bf16.msra.mxu0 0
        %2421 = vmatprep.subr.bf16.mxu0 0
        %2422 = vmatpush1.bf16.msra.mxu0 0
        %2423 = vmatprep.subr.bf16.mxu0 0
        %2424 = vmatpush1.bf16.msra.mxu0 0
        %2425 = vmatprep.subr.bf16.mxu0 0
        %2426 = vmatpush1.bf16.msra.mxu0 0
        %2427 = vmatprep.subr.bf16.mxu0 0
        %2428 = vmatpush1.bf16.msra.mxu0 0
        %2429 = vmatprep.subr.bf16.mxu0 0
        %2430 = vmatpush1.bf16.msra.mxu0 0
        %2431 = vmatprep.subr.bf16.mxu0 0
        %2432 = vmatpush1.bf16.msra.mxu0 0
        %2433 = vmatprep.subr.bf16.mxu0 0
        %2434 = vmatpush1.bf16.msra.mxu0 0
        %2435 = vmatprep.subr.bf16.mxu0 0
        %2436 = vmatpush1.bf16.msra.mxu0 0
        %2437 = vmatprep.subr.bf16.mxu0 0
        %2438 = vmatpush1.bf16.msra.mxu0 0
        %2439 = vmatprep.subr.bf16.mxu0 0
        %2440 = vmatpush1.bf16.msra.mxu0 0
        %2441 = vmatprep.subr.bf16.mxu0 0
        %2442 = vmatpush1.bf16.msra.mxu0 0
        %2443 = vmatprep.subr.bf16.mxu0 0
        %2444 = vmatpush1.bf16.msra.mxu0 0
        %2445 = vmatprep.mubr.bf16.mxu0 0
        %2446 = vmatmul.mubr.bf16.gmra.mrb[0].mxu0 %v1792
        %v2447 = vpop.f32.mrb[0].mxu0
        %v2448 = vadd.f32 %v2134, %v2447
        %v2449 = vpop.f32.mrb[0].mxu0
        %v2450 = vadd.f32 %v2138, %v2449
        %v2451 = vpop.f32.mrb[0].mxu0
        %v2452 = vpop.f32.mrb[0].mxu0
        %2453 = vdwg.mxu0
        %2454 = vst [vmem:[%s568 + $0x50] sm:$0xff] %v2284
        %2455 = vst [vmem:[%s568 + $0x58] sm:$0xff] %v2286
        %2456 = vst [vmem:[%s568 + $0x60] sm:$0xff] %v2325
        %2457 = vst [vmem:[%s568 + $0x68] sm:$0xff] %v2327
        %2458 = vst [vmem:[%s568 + $0x70] sm:$0xff] %v2366
        %2459 = vst [vmem:[%s568 + $0x78] sm:$0xff] %v2368
        %2460 = vst [vmem:[%s568 + $0x80] sm:$0xff] %v2407
        %2461 = vst [vmem:[%s568 + $0x88] sm:$0xff] %v2409
        %2462 = vst [vmem:[%s568 + $0x90] sm:$0xff] %v2448
        %2463 = vst [vmem:[%s568 + $0x98] sm:$0xff] %v2450
        %v2464 = vmax.f32 %v2284, %v2366
        %v2465 = vmax.f32 %v2286, %v2368
        %v2466 = vmax.f32 %v2325, %v2407
        %v2467 = vmax.f32 %v2327, %v2409
        %v2468 = vmax.f32 %v2464, %v2448
        %v2469 = vmax.f32 %v2465, %v2450
        %v2470 = vmax.f32 %v2468, %v2469
        %v2471 = vmax.f32 %v2466, %v2467
        %v2472 = vmax.f32 %v2470, %v2471
        %2473 = vmax.xlane.f32.xlu0 %v2472
        %v2474 = vpop.xlane.xlu0 %2473
        %vm2475 = vcmp.eq.f32.partialorder %v2284, %v2474
        %vm2476 = vcmp.eq.f32.partialorder %v2286, %v2474
        %vm2477 = vcmp.eq.f32.partialorder %v2325, %v2474
        %vm2478 = vcmp.eq.f32.partialorder %v2327, %v2474
        %vm2479 = vcmp.eq.f32.partialorder %v2366, %v2474
        %vm2480 = vcmp.eq.f32.partialorder %v2368, %v2474
        %vm2481 = vcmp.eq.f32.partialorder %v2407, %v2474
        %vm2482 = vcmp.eq.f32.partialorder %v2409, %v2474
        %vm2483 = vcmp.eq.f32.partialorder %v2448, %v2474
        %vm2484 = vcmp.eq.f32.partialorder %v2450, %v2474
        %v2485 = vsel %vm2475, %v915, 1280
        %v2486 = vsel %vm2476, %v1608, 1280
        %v2487 = vsel %vm2477, %v1609, 1280
        %v2488 = vsel %vm2478, %v1610, 1280
        %v2489 = vsel %vm2479, %v1611, 1280
        %v2490 = vsel %vm2480, %v1612, 1280
        %v2491 = vsel %vm2481, %v1613, 1280
        %v2492 = vsel %vm2482, %v1614, 1280
        %v2493 = vsel %vm2483, %v1615, 1280
        %v2494 = vsel %vm2484, %v1616, 1280
        %vm2495 = vcmp.lt.s32.totalorder %v2485, %v2489
        %v2496 = vsel %vm2495, %v2485, %v2489
        %vm2497 = vcmp.lt.s32.totalorder %v2486, %v2490
        %v2498 = vsel %vm2497, %v2486, %v2490
        %vm2499 = vcmp.lt.s32.totalorder %v2487, %v2491
        %v2500 = vsel %vm2499, %v2487, %v2491
        %vm2501 = vcmp.lt.s32.totalorder %v2488, %v2492
        %v2502 = vsel %vm2501, %v2488, %v2492
        %vm2503 = vcmp.lt.s32.totalorder %v2496, %v2493
        %v2504 = vsel %vm2503, %v2496, %v2493
        %vm2505 = vcmp.lt.s32.totalorder %v2498, %v2494
        %v2506 = vsel %vm2505, %v2498, %v2494
        %vm2507 = vcmp.lt.s32.totalorder %v2504, %v2506
        %v2508 = vsel %vm2507, %v2504, %v2506
        %vm2509 = vcmp.lt.s32.totalorder %v2500, %v2502
        %v2510 = vsel %vm2509, %v2500, %v2502
        %vm2511 = vcmp.lt.s32.totalorder %v2508, %v2510
        %v2512 = vsel %vm2511, %v2508, %v2510
        %v2513 = vand.u32 %v2512, 65535
        %v2514 = vshra.s32 %v2512, 16
        %v2515 = vcvt.s32.f32 %v2513
        %v2516 = vcvt.s32.f32 %v2514
        %2517 = vmin.xlane.f32.xlu0 %v2516
        %v2518 = vpop.xlane.xlu0 %2517
        %vm2519 = vcmp.eq.f32.partialorder %v2516, %v2518
        %v2520 = vsel %vm2519, %v2515, inf
        %2521 = vmin.xlane.f32.xlu0 %v2520
        %v2522 = vpop.xlane.xlu0 %2521
        %v2523 = vcvt.f32.s32 %v2522
        %v2524 = vcvt.f32.s32 %v2518
        %v2525 = vshll.u32 %v2524, 16
        %v2526 = vadd.s32 %v2525, %v2523
        %v2527 = vadd.s32 %v2526, 1280
        %vm2528 = vcmp.gt.f32.partialorder %v2474, %v2074
        %v2529 = vsel %vm2528, %v2527, %v2073
        %v2530 = vsel %vm2528, %v2474, %v2074
        %v2531 = vld [vmem:[#allocation20 + $0x50] sm:$0xff]
        %v2532 = vld [vmem:[#allocation20 + $0x58] sm:$0xff]
        %v2533 = vld [vmem:[#allocation20 + $0x60] sm:$0xff]
        %v2534 = vld [vmem:[#allocation20 + $0x68] sm:$0xff]
        %v2535 = vld [vmem:[#allocation20 + $0x70] sm:$0xff]
        %v2536 = vld [vmem:[#allocation20 + $0x118] sm:$0xff]
        %v2537 = vld [vmem:[#allocation20 + $0x120] sm:$0xff]
        %v2538 = vld [vmem:[#allocation20 + $0x128] sm:$0xff]
        %v2539 = vld [vmem:[#allocation20 + $0x130] sm:$0xff]
        %v2540 = vld [vmem:[#allocation20 + $0x138] sm:$0xff]
        %v2541 = vld [vmem:[#allocation20 + $0x1e0] sm:$0xff]
        %v2542 = vld [vmem:[#allocation20 + $0x1e8] sm:$0xff]
        %v2543 = vld [vmem:[#allocation20 + $0x1f0] sm:$0xff]
        %v2544 = vld [vmem:[#allocation20 + $0x1f8] sm:$0xff]
        %v2545 = vld [vmem:[#allocation20 + $0x200] sm:$0xff]
        %v2546 = vld [vmem:[#allocation20 + $0x2a8] sm:$0xff]
        %v2547 = vld [vmem:[#allocation20 + $0x2b0] sm:$0xff]
        %v2548 = vld [vmem:[#allocation20 + $0x2b8] sm:$0xff]
        %v2549 = vld [vmem:[#allocation20 + $0x2c0] sm:$0xff]
        %v2550 = vld [vmem:[#allocation20 + $0x2c8] sm:$0xff]
        %v2551 = vld [vmem:[#allocation22 + $0x14] sm:$0xff]
        %v2552 = vld [vmem:[#allocation22 + $0x1c] sm:$0x3]
        %v2555 = vlaneseq
        %v2556 = vshrl.u32 %v2555, 7
        %v2557 = vsub.s32 0, %v2556
        %v2558 = vrot.slane %v2551, %v2557
        %v2559 = vlaneseq
        %v2560 = vshrl.u32 %v2559, 7
        %v2561 = vsub.s32 1, %v2560
        %v2562 = vrot.slane %v2551, %v2561
        %v2563 = vlaneseq
        %v2564 = vshrl.u32 %v2563, 7
        %v2565 = vsub.s32 2, %v2564
        %v2566 = vrot.slane %v2551, %v2565
        %v2567 = vlaneseq
        %v2568 = vshrl.u32 %v2567, 7
        %v2569 = vsub.s32 3, %v2568
        %v2570 = vrot.slane %v2551, %v2569
        %v2571 = vlaneseq
        %v2572 = vshrl.u32 %v2571, 7
        %v2573 = vsub.s32 4, %v2572
        %v2574 = vrot.slane %v2551, %v2573
        %v2575 = vlaneseq
        %v2576 = vshrl.u32 %v2575, 7
        %v2577 = vsub.s32 5, %v2576
        %v2578 = vrot.slane %v2551, %v2577
        %v2579 = vlaneseq
        %v2580 = vshrl.u32 %v2579, 7
        %v2581 = vsub.s32 6, %v2580
        %v2582 = vrot.slane %v2551, %v2581
        %v2583 = vlaneseq
        %v2584 = vshrl.u32 %v2583, 7
        %v2585 = vsub.s32 7, %v2584
        %v2586 = vrot.slane %v2551, %v2585
        %v2587 = vlaneseq
        %v2588 = vshrl.u32 %v2587, 7
        %v2589 = vsub.s32 0, %v2588
        %v2590 = vrot.slane %v2552, %v2589
        %v2591 = vlaneseq
        %v2592 = vshrl.u32 %v2591, 7
        %v2593 = vsub.s32 1, %v2592
        %v2594 = vrot.slane %v2552, %v2593
        %v2625 = vunpack.c.l.b16 %v2531
        %v2626 = vunpack.c.h.b16 %v2531
        %v2627 = vunpack.c.l.b16 %v2532
        %v2628 = vunpack.c.h.b16 %v2532
        %v2629 = vunpack.c.l.b16 %v2533
        %v2630 = vunpack.c.h.b16 %v2533
        %v2631 = vunpack.c.l.b16 %v2534
        %v2632 = vunpack.c.h.b16 %v2534
        %v2633 = vunpack.c.l.b16 %v2535
        %v2634 = vunpack.c.h.b16 %v2535
        %v2635 = vunpack.c.l.b16 %v2536
        %v2636 = vunpack.c.h.b16 %v2536
        %v2637 = vunpack.c.l.b16 %v2537
        %v2638 = vunpack.c.h.b16 %v2537
        %v2639 = vunpack.c.l.b16 %v2538
        %v2640 = vunpack.c.h.b16 %v2538
        %v2641 = vunpack.c.l.b16 %v2539
        %v2642 = vunpack.c.h.b16 %v2539
        %v2643 = vunpack.c.l.b16 %v2540
        %v2644 = vunpack.c.h.b16 %v2540
        %v2645 = vunpack.c.l.b16 %v2541
        %v2646 = vunpack.c.h.b16 %v2541
        %v2647 = vunpack.c.l.b16 %v2542
        %v2648 = vunpack.c.h.b16 %v2542
        %v2649 = vunpack.c.l.b16 %v2543
        %v2650 = vunpack.c.h.b16 %v2543
        %v2651 = vunpack.c.l.b16 %v2544
        %v2652 = vunpack.c.h.b16 %v2544
        %v2653 = vunpack.c.l.b16 %v2545
        %v2654 = vunpack.c.h.b16 %v2545
        %v2655 = vunpack.c.l.b16 %v2546
        %v2656 = vunpack.c.h.b16 %v2546
        %v2657 = vunpack.c.l.b16 %v2547
        %v2658 = vunpack.c.h.b16 %v2547
        %v2659 = vunpack.c.l.b16 %v2548
        %v2660 = vunpack.c.h.b16 %v2548
        %v2661 = vunpack.c.l.b16 %v2549
        %v2662 = vunpack.c.h.b16 %v2549
        %v2663 = vunpack.c.l.b16 %v2550
        %v2664 = vunpack.c.h.b16 %v2550
        %v2665 = vpack.c.b16 %v2635, %v2625
        %v2666 = vpack.c.b16 %v2636, %v2626
        %v2667 = vpack.c.b16 %v2637, %v2627
        %v2668 = vpack.c.b16 %v2638, %v2628
        %v2669 = vpack.c.b16 %v2639, %v2629
        %v2670 = vpack.c.b16 %v2640, %v2630
        %v2671 = vpack.c.b16 %v2641, %v2631
        %v2672 = vpack.c.b16 %v2642, %v2632
        %v2673 = vpack.c.b16 %v2643, %v2633
        %v2674 = vpack.c.b16 %v2644, %v2634
        %v2675 = vpack.c.b16 %v2655, %v2645
        %v2676 = vpack.c.b16 %v2656, %v2646
        %v2677 = vpack.c.b16 %v2657, %v2647
        %v2678 = vpack.c.b16 %v2658, %v2648
        %v2679 = vpack.c.b16 %v2659, %v2649
        %v2680 = vpack.c.b16 %v2660, %v2650
        %v2681 = vpack.c.b16 %v2661, %v2651
        %v2682 = vpack.c.b16 %v2662, %v2652
        %v2683 = vpack.c.b16 %v2663, %v2653
        %v2684 = vpack.c.b16 %v2664, %v2654
        %2705 = vmatprep.subr.bf16.mxu0 %v2666
        %2706 = vmatpush1.bf16.msra.mxu0 %v2665
        %2707 = vmatprep.subr.bf16.mxu0 %v2676
        %2708 = vmatpush1.bf16.msra.mxu0 %v2675
        %2709 = vmatprep.subr.bf16.mxu0 0
        %2710 = vmatpush1.bf16.msra.mxu0 0
        %2711 = vmatprep.subr.bf16.mxu0 0
        %2712 = vmatpush1.bf16.msra.mxu0 0
        %2713 = vmatprep.subr.bf16.mxu0 0
        %2714 = vmatpush1.bf16.msra.mxu0 0
        %2715 = vmatprep.subr.bf16.mxu0 0
        %2716 = vmatpush1.bf16.msra.mxu0 0
        %2717 = vmatprep.subr.bf16.mxu0 0
        %2718 = vmatpush1.bf16.msra.mxu0 0
        %2719 = vmatprep.subr.bf16.mxu0 0
        %2720 = vmatpush1.bf16.msra.mxu0 0
        %2721 = vmatprep.subr.bf16.mxu0 0
        %2722 = vmatpush1.bf16.msra.mxu0 0
        %2723 = vmatprep.subr.bf16.mxu0 0
        %2724 = vmatpush1.bf16.msra.mxu0 0
        %2725 = vmatprep.subr.bf16.mxu0 0
        %2726 = vmatpush1.bf16.msra.mxu0 0
        %2727 = vmatprep.subr.bf16.mxu0 0
        %2728 = vmatpush1.bf16.msra.mxu0 0
        %2729 = vmatprep.subr.bf16.mxu0 0
        %2730 = vmatpush1.bf16.msra.mxu0 0
        %2731 = vmatprep.subr.bf16.mxu0 0
        %2732 = vmatpush1.bf16.msra.mxu0 0
        %2733 = vmatprep.subr.bf16.mxu0 0
        %2734 = vmatpush1.bf16.msra.mxu0 0
        %2735 = vmatprep.subr.bf16.mxu0 0
        %2736 = vmatpush1.bf16.msra.mxu0 0
        %2737 = vmatprep.mubr.bf16.mxu0 0
        %2738 = vmatmul.mubr.bf16.gmra.mrb[0].mxu0 %v1792
        %v2739 = vpop.f32.mrb[0].mxu0
        %v2740 = vadd.f32 %v2558, %v2739
        %v2741 = vpop.f32.mrb[0].mxu0
        %v2742 = vadd.f32 %v2562, %v2741
        %v2743 = vpop.f32.mrb[0].mxu0
        %v2744 = vpop.f32.mrb[0].mxu0
        %2745 = vdwg.mxu0
        %2746 = vmatprep.subr.bf16.mxu0 %v2668
        %2747 = vmatpush1.bf16.msra.mxu0 %v2667
        %2748 = vmatprep.subr.bf16.mxu0 %v2678
        %2749 = vmatpush1.bf16.msra.mxu0 %v2677
        %2750 = vmatprep.subr.bf16.mxu0 0
        %2751 = vmatpush1.bf16.msra.mxu0 0
        %2752 = vmatprep.subr.bf16.mxu0 0
        %2753 = vmatpush1.bf16.msra.mxu0 0
        %2754 = vmatprep.subr.bf16.mxu0 0
        %2755 = vmatpush1.bf16.msra.mxu0 0
        %2756 = vmatprep.subr.bf16.mxu0 0
        %2757 = vmatpush1.bf16.msra.mxu0 0
        %2758 = vmatprep.subr.bf16.mxu0 0
        %2759 = vmatpush1.bf16.msra.mxu0 0
        %2760 = vmatprep.subr.bf16.mxu0 0
        %2761 = vmatpush1.bf16.msra.mxu0 0
        %2762 = vmatprep.subr.bf16.mxu0 0
        %2763 = vmatpush1.bf16.msra.mxu0 0
        %2764 = vmatprep.subr.bf16.mxu0 0
        %2765 = vmatpush1.bf16.msra.mxu0 0
        %2766 = vmatprep.subr.bf16.mxu0 0
        %2767 = vmatpush1.bf16.msra.mxu0 0
        %2768 = vmatprep.subr.bf16.mxu0 0
        %2769 = vmatpush1.bf16.msra.mxu0 0
        %2770 = vmatprep.subr.bf16.mxu0 0
        %2771 = vmatpush1.bf16.msra.mxu0 0
        %2772 = vmatprep.subr.bf16.mxu0 0
        %2773 = vmatpush1.bf16.msra.mxu0 0
        %2774 = vmatprep.subr.bf16.mxu0 0
        %2775 = vmatpush1.bf16.msra.mxu0 0
        %2776 = vmatprep.subr.bf16.mxu0 0
        %2777 = vmatpush1.bf16.msra.mxu0 0
        %2778 = vmatprep.mubr.bf16.mxu0 0
        %2779 = vmatmul.mubr.bf16.gmra.mrb[0].mxu0 %v1792
        %v2780 = vpop.f32.mrb[0].mxu0
        %v2781 = vadd.f32 %v2566, %v2780
        %v2782 = vpop.f32.mrb[0].mxu0
        %v2783 = vadd.f32 %v2570, %v2782
        %v2784 = vpop.f32.mrb[0].mxu0
        %v2785 = vpop.f32.mrb[0].mxu0
        %2786 = vdwg.mxu0
        %2787 = vmatprep.subr.bf16.mxu0 %v2670
        %2788 = vmatpush1.bf16.msra.mxu0 %v2669
        %2789 = vmatprep.subr.bf16.mxu0 %v2680
        %2790 = vmatpush1.bf16.msra.mxu0 %v2679
        %2791 = vmatprep.subr.bf16.mxu0 0
        %2792 = vmatpush1.bf16.msra.mxu0 0
        %2793 = vmatprep.subr.bf16.mxu0 0
        %2794 = vmatpush1.bf16.msra.mxu0 0
        %2795 = vmatprep.subr.bf16.mxu0 0
        %2796 = vmatpush1.bf16.msra.mxu0 0
        %2797 = vmatprep.subr.bf16.mxu0 0
        %2798 = vmatpush1.bf16.msra.mxu0 0
        %2799 = vmatprep.subr.bf16.mxu0 0
        %2800 = vmatpush1.bf16.msra.mxu0 0
        %2801 = vmatprep.subr.bf16.mxu0 0
        %2802 = vmatpush1.bf16.msra.mxu0 0
        %2803 = vmatprep.subr.bf16.mxu0 0
        %2804 = vmatpush1.bf16.msra.mxu0 0
        %2805 = vmatprep.subr.bf16.mxu0 0
        %2806 = vmatpush1.bf16.msra.mxu0 0
        %2807 = vmatprep.subr.bf16.mxu0 0
        %2808 = vmatpush1.bf16.msra.mxu0 0
        %2809 = vmatprep.subr.bf16.mxu0 0
        %2810 = vmatpush1.bf16.msra.mxu0 0
        %2811 = vmatprep.subr.bf16.mxu0 0
        %2812 = vmatpush1.bf16.msra.mxu0 0
        %2813 = vmatprep.subr.bf16.mxu0 0
        %2814 = vmatpush1.bf16.msra.mxu0 0
        %2815 = vmatprep.subr.bf16.mxu0 0
        %2816 = vmatpush1.bf16.msra.mxu0 0
        %2817 = vmatprep.subr.bf16.mxu0 0
        %2818 = vmatpush1.bf16.msra.mxu0 0
        %2819 = vmatprep.mubr.bf16.mxu0 0
        %2820 = vmatmul.mubr.bf16.gmra.mrb[0].mxu0 %v1792
        %v2821 = vpop.f32.mrb[0].mxu0
        %v2822 = vadd.f32 %v2574, %v2821
        %v2823 = vpop.f32.mrb[0].mxu0
        %v2824 = vadd.f32 %v2578, %v2823
        %v2825 = vpop.f32.mrb[0].mxu0
        %v2826 = vpop.f32.mrb[0].mxu0
        %2827 = vdwg.mxu0
        %2828 = vmatprep.subr.bf16.mxu0 %v2672
        %2829 = vmatpush1.bf16.msra.mxu0 %v2671
        %2830 = vmatprep.subr.bf16.mxu0 %v2682
        %2831 = vmatpush1.bf16.msra.mxu0 %v2681
        %2832 = vmatprep.subr.bf16.mxu0 0
        %2833 = vmatpush1.bf16.msra.mxu0 0
        %2834 = vmatprep.subr.bf16.mxu0 0
        %2835 = vmatpush1.bf16.msra.mxu0 0
        %2836 = vmatprep.subr.bf16.mxu0 0
        %2837 = vmatpush1.bf16.msra.mxu0 0
        %2838 = vmatprep.subr.bf16.mxu0 0
        %2839 = vmatpush1.bf16.msra.mxu0 0
        %2840 = vmatprep.subr.bf16.mxu0 0
        %2841 = vmatpush1.bf16.msra.mxu0 0
        %2842 = vmatprep.subr.bf16.mxu0 0
        %2843 = vmatpush1.bf16.msra.mxu0 0
        %2844 = vmatprep.subr.bf16.mxu0 0
        %2845 = vmatpush1.bf16.msra.mxu0 0
        %2846 = vmatprep.subr.bf16.mxu0 0
        %2847 = vmatpush1.bf16.msra.mxu0 0
        %2848 = vmatprep.subr.bf16.mxu0 0
        %2849 = vmatpush1.bf16.msra.mxu0 0
        %2850 = vmatprep.subr.bf16.mxu0 0
        %2851 = vmatpush1.bf16.msra.mxu0 0
        %2852 = vmatprep.subr.bf16.mxu0 0
        %2853 = vmatpush1.bf16.msra.mxu0 0
        %2854 = vmatprep.subr.bf16.mxu0 0
        %2855 = vmatpush1.bf16.msra.mxu0 0
        %2856 = vmatprep.subr.bf16.mxu0 0
        %2857 = vmatpush1.bf16.msra.mxu0 0
        %2858 = vmatprep.subr.bf16.mxu0 0
        %2859 = vmatpush1.bf16.msra.mxu0 0
        %2860 = vmatprep.mubr.bf16.mxu0 0
        %2861 = vmatmul.mubr.bf16.gmra.mrb[0].mxu0 %v1792
        %v2862 = vpop.f32.mrb[0].mxu0
        %v2863 = vadd.f32 %v2582, %v2862
        %v2864 = vpop.f32.mrb[0].mxu0
        %v2865 = vadd.f32 %v2586, %v2864
        %v2866 = vpop.f32.mrb[0].mxu0
        %v2867 = vpop.f32.mrb[0].mxu0
        %2868 = vdwg.mxu0
        %2869 = vmatprep.subr.bf16.mxu0 %v2674
        %2870 = vmatpush1.bf16.msra.mxu0 %v2673
        %2871 = vmatprep.subr.bf16.mxu0 %v2684
        %2872 = vmatpush1.bf16.msra.mxu0 %v2683
        %2873 = vmatprep.subr.bf16.mxu0 0
        %2874 = vmatpush1.bf16.msra.mxu0 0
        %2875 = vmatprep.subr.bf16.mxu0 0
        %2876 = vmatpush1.bf16.msra.mxu0 0
        %2877 = vmatprep.subr.bf16.mxu0 0
        %2878 = vmatpush1.bf16.msra.mxu0 0
        %2879 = vmatprep.subr.bf16.mxu0 0
        %2880 = vmatpush1.bf16.msra.mxu0 0
        %2881 = vmatprep.subr.bf16.mxu0 0
        %2882 = vmatpush1.bf16.msra.mxu0 0
        %2883 = vmatprep.subr.bf16.mxu0 0
        %2884 = vmatpush1.bf16.msra.mxu0 0
        %2885 = vmatprep.subr.bf16.mxu0 0
        %2886 = vmatpush1.bf16.msra.mxu0 0
        %2887 = vmatprep.subr.bf16.mxu0 0
        %2888 = vmatpush1.bf16.msra.mxu0 0
        %2889 = vmatprep.subr.bf16.mxu0 0
        %2890 = vmatpush1.bf16.msra.mxu0 0
        %2891 = vmatprep.subr.bf16.mxu0 0
        %2892 = vmatpush1.bf16.msra.mxu0 0
        %2893 = vmatprep.subr.bf16.mxu0 0
        %2894 = vmatpush1.bf16.msra.mxu0 0
        %2895 = vmatprep.subr.bf16.mxu0 0
        %2896 = vmatpush1.bf16.msra.mxu0 0
        %2897 = vmatprep.subr.bf16.mxu0 0
        %2898 = vmatpush1.bf16.msra.mxu0 0
        %2899 = vmatprep.subr.bf16.mxu0 0
        %2900 = vmatpush1.bf16.msra.mxu0 0
        %2901 = vmatprep.mubr.bf16.mxu0 0
        %2902 = vmatmul.mubr.bf16.gmra.mrb[0].mxu0 %v1792
        %v2903 = vpop.f32.mrb[0].mxu0
        %v2904 = vadd.f32 %v2590, %v2903
        %v2905 = vpop.f32.mrb[0].mxu0
        %v2906 = vadd.f32 %v2594, %v2905
        %v2907 = vpop.f32.mrb[0].mxu0
        %v2908 = vpop.f32.mrb[0].mxu0
        %2909 = vdwg.mxu0
        %2910 = vst [vmem:[%s568 + $0xa0] sm:$0xff] %v2740
        %2911 = vst [vmem:[%s568 + $0xa8] sm:$0xff] %v2742
        %2912 = vst [vmem:[%s568 + $0xb0] sm:$0xff] %v2781
        %2913 = vst [vmem:[%s568 + $0xb8] sm:$0xff] %v2783
        %2914 = vst [vmem:[%s568 + $0xc0] sm:$0xff] %v2822
        %2915 = vst [vmem:[%s568 + $0xc8] sm:$0xff] %v2824
        %2916 = vst [vmem:[%s568 + $0xd0] sm:$0xff] %v2863
        %2917 = vst [vmem:[%s568 + $0xd8] sm:$0xff] %v2865
        %2918 = vst [vmem:[%s568 + $0xe0] sm:$0xff] %v2904
        %2919 = vst [vmem:[%s568 + $0xe8] sm:$0xff] %v2906
        %v2920 = vmax.f32 %v2740, %v2822
        %v2921 = vmax.f32 %v2742, %v2824
        %v2922 = vmax.f32 %v2781, %v2863
        %v2923 = vmax.f32 %v2783, %v2865
        %v2924 = vmax.f32 %v2920, %v2904
        %v2925 = vmax.f32 %v2921, %v2906
        %v2926 = vmax.f32 %v2924, %v2925
        %v2927 = vmax.f32 %v2922, %v2923
        %v2928 = vmax.f32 %v2926, %v2927
        %2929 = vmax.xlane.f32.xlu0 %v2928
        %v2930 = vpop.xlane.xlu0 %2929
        %vm2931 = vcmp.eq.f32.partialorder %v2740, %v2930
        %vm2932 = vcmp.eq.f32.partialorder %v2742, %v2930
        %vm2933 = vcmp.eq.f32.partialorder %v2781, %v2930
        %vm2934 = vcmp.eq.f32.partialorder %v2783, %v2930
        %vm2935 = vcmp.eq.f32.partialorder %v2822, %v2930
        %vm2936 = vcmp.eq.f32.partialorder %v2824, %v2930
        %vm2937 = vcmp.eq.f32.partialorder %v2863, %v2930
        %vm2938 = vcmp.eq.f32.partialorder %v2865, %v2930
        %vm2939 = vcmp.eq.f32.partialorder %v2904, %v2930
        %vm2940 = vcmp.eq.f32.partialorder %v2906, %v2930
        %v2941 = vsel %vm2931, %v915, 1280
        %v2942 = vsel %vm2932, %v1608, 1280
        %v2943 = vsel %vm2933, %v1609, 1280
        %v2944 = vsel %vm2934, %v1610, 1280
        %v2945 = vsel %vm2935, %v1611, 1280
        %v2946 = vsel %vm2936, %v1612, 1280
        %v2947 = vsel %vm2937, %v1613, 1280
        %v2948 = vsel %vm2938, %v1614, 1280
        %v2949 = vsel %vm2939, %v1615, 1280
        %v2950 = vsel %vm2940, %v1616, 1280
        %vm2951 = vcmp.lt.s32.totalorder %v2941, %v2945
        %v2952 = vsel %vm2951, %v2941, %v2945
        %vm2953 = vcmp.lt.s32.totalorder %v2942, %v2946
        %v2954 = vsel %vm2953, %v2942, %v2946
        %vm2955 = vcmp.lt.s32.totalorder %v2943, %v2947
        %v2956 = vsel %vm2955, %v2943, %v2947
        %vm2957 = vcmp.lt.s32.totalorder %v2944, %v2948
        %v2958 = vsel %vm2957, %v2944, %v2948
        %vm2959 = vcmp.lt.s32.totalorder %v2952, %v2949
        %v2960 = vsel %vm2959, %v2952, %v2949
        %vm2961 = vcmp.lt.s32.totalorder %v2954, %v2950
        %v2962 = vsel %vm2961, %v2954, %v2950
        %vm2963 = vcmp.lt.s32.totalorder %v2960, %v2962
        %v2964 = vsel %vm2963, %v2960, %v2962
        %vm2965 = vcmp.lt.s32.totalorder %v2956, %v2958
        %v2966 = vsel %vm2965, %v2956, %v2958
        %vm2967 = vcmp.lt.s32.totalorder %v2964, %v2966
        %v2968 = vsel %vm2967, %v2964, %v2966
        %v2969 = vand.u32 %v2968, 65535
        %v2970 = vshra.s32 %v2968, 16
        %v2971 = vcvt.s32.f32 %v2969
        %v2972 = vcvt.s32.f32 %v2970
        %2973 = vmin.xlane.f32.xlu0 %v2972
        %v2974 = vpop.xlane.xlu0 %2973
        %vm2975 = vcmp.eq.f32.partialorder %v2972, %v2974
        %v2976 = vsel %vm2975, %v2971, inf
        %2977 = vmin.xlane.f32.xlu0 %v2976
        %v2978 = vpop.xlane.xlu0 %2977
        %v2979 = vcvt.f32.s32 %v2978
        %v2980 = vcvt.f32.s32 %v2974
        %v2981 = vshll.u32 %v2980, 16
        %v2982 = vadd.s32 %v2981, %v2979
        %v2983 = vadd.s32 %v2982, 2560
        %vm2984 = vcmp.gt.f32.partialorder %v2930, %v2530
        %v2985 = vsel %vm2984, %v2983, %v2529
        %v2986 = vsel %vm2984, %v2930, %v2530
        %v2987 = vld [vmem:[#allocation20 + $0x78] sm:$0xff]
        %v2988 = vld [vmem:[#allocation20 + $0x80] sm:$0xff]
        %v2989 = vld [vmem:[#allocation20 + $0x88] sm:$0xff]
        %v2990 = vld [vmem:[#allocation20 + $0x90] sm:$0xff]
        %v2991 = vld [vmem:[#allocation20 + $0x98] sm:$0xff]
        %v2992 = vld [vmem:[#allocation20 + $0x140] sm:$0xff]
        %v2993 = vld [vmem:[#allocation20 + $0x148] sm:$0xff]
        %v2994 = vld [vmem:[#allocation20 + $0x150] sm:$0xff]
        %v2995 = vld [vmem:[#allocation20 + $0x158] sm:$0xff]
        %v2996 = vld [vmem:[#allocation20 + $0x160] sm:$0xff]
        %v2997 = vld [vmem:[#allocation20 + $0x208] sm:$0xff]
        %v2998 = vld [vmem:[#allocation20 + $0x210] sm:$0xff]
        %v2999 = vld [vmem:[#allocation20 + $0x218] sm:$0xff]
        %v3000 = vld [vmem:[#allocation20 + $0x220] sm:$0xff]
        %v3001 = vld [vmem:[#allocation20 + $0x228] sm:$0xff]
        %v3002 = vld [vmem:[#allocation20 + $0x2d0] sm:$0xff]
        %v3003 = vld [vmem:[#allocation20 + $0x2d8] sm:$0xff]
        %v3004 = vld [vmem:[#allocation20 + $0x2e0] sm:$0xff]
        %v3005 = vld [vmem:[#allocation20 + $0x2e8] sm:$0xff]
        %v3006 = vld [vmem:[#allocation20 + $0x2f0] sm:$0xff]
        %v3007 = vld [vmem:[#allocation22 + $0x1e] sm:$0xff]
        %v3008 = vld [vmem:[#allocation22 + $0x26] sm:$0x3]
        %v3011 = vlaneseq
        %v3012 = vshrl.u32 %v3011, 7
        %v3013 = vsub.s32 0, %v3012
        %v3014 = vrot.slane %v3007, %v3013
        %v3015 = vlaneseq
        %v3016 = vshrl.u32 %v3015, 7
        %v3017 = vsub.s32 1, %v3016
        %v3018 = vrot.slane %v3007, %v3017
        %v3019 = vlaneseq
        %v3020 = vshrl.u32 %v3019, 7
        %v3021 = vsub.s32 2, %v3020
        %v3022 = vrot.slane %v3007, %v3021
        %v3023 = vlaneseq
        %v3024 = vshrl.u32 %v3023, 7
        %v3025 = vsub.s32 3, %v3024
        %v3026 = vrot.slane %v3007, %v3025
        %v3027 = vlaneseq
        %v3028 = vshrl.u32 %v3027, 7
        %v3029 = vsub.s32 4, %v3028
        %v3030 = vrot.slane %v3007, %v3029
        %v3031 = vlaneseq
        %v3032 = vshrl.u32 %v3031, 7
        %v3033 = vsub.s32 5, %v3032
        %v3034 = vrot.slane %v3007, %v3033
        %v3035 = vlaneseq
        %v3036 = vshrl.u32 %v3035, 7
        %v3037 = vsub.s32 6, %v3036
        %v3038 = vrot.slane %v3007, %v3037
        %v3039 = vlaneseq
        %v3040 = vshrl.u32 %v3039, 7
        %v3041 = vsub.s32 7, %v3040
        %v3042 = vrot.slane %v3007, %v3041
        %v3043 = vlaneseq
        %v3044 = vshrl.u32 %v3043, 7
        %v3045 = vsub.s32 0, %v3044
        %v3046 = vrot.slane %v3008, %v3045
        %v3047 = vlaneseq
        %v3048 = vshrl.u32 %v3047, 7
        %v3049 = vsub.s32 1, %v3048
        %v3050 = vrot.slane %v3008, %v3049
        %v3081 = vunpack.c.l.b16 %v2987
        %v3082 = vunpack.c.h.b16 %v2987
        %v3083 = vunpack.c.l.b16 %v2988
        %v3084 = vunpack.c.h.b16 %v2988
        %v3085 = vunpack.c.l.b16 %v2989
        %v3086 = vunpack.c.h.b16 %v2989
        %v3087 = vunpack.c.l.b16 %v2990
        %v3088 = vunpack.c.h.b16 %v2990
        %v3089 = vunpack.c.l.b16 %v2991
        %v3090 = vunpack.c.h.b16 %v2991
        %v3091 = vunpack.c.l.b16 %v2992
        %v3092 = vunpack.c.h.b16 %v2992
        %v3093 = vunpack.c.l.b16 %v2993
        %v3094 = vunpack.c.h.b16 %v2993
        %v3095 = vunpack.c.l.b16 %v2994
        %v3096 = vunpack.c.h.b16 %v2994
        %v3097 = vunpack.c.l.b16 %v2995
        %v3098 = vunpack.c.h.b16 %v2995
        %v3099 = vunpack.c.l.b16 %v2996
        %v3100 = vunpack.c.h.b16 %v2996
        %v3101 = vunpack.c.l.b16 %v2997
        %v3102 = vunpack.c.h.b16 %v2997
        %v3103 = vunpack.c.l.b16 %v2998
        %v3104 = vunpack.c.h.b16 %v2998
        %v3105 = vunpack.c.l.b16 %v2999
        %v3106 = vunpack.c.h.b16 %v2999
        %v3107 = vunpack.c.l.b16 %v3000
        %v3108 = vunpack.c.h.b16 %v3000
        %v3109 = vunpack.c.l.b16 %v3001
        %v3110 = vunpack.c.h.b16 %v3001
        %v3111 = vunpack.c.l.b16 %v3002
        %v3112 = vunpack.c.h.b16 %v3002
        %v3113 = vunpack.c.l.b16 %v3003
        %v3114 = vunpack.c.h.b16 %v3003
        %v3115 = vunpack.c.l.b16 %v3004
        %v3116 = vunpack.c.h.b16 %v3004
        %v3117 = vunpack.c.l.b16 %v3005
        %v3118 = vunpack.c.h.b16 %v3005
        %v3119 = vunpack.c.l.b16 %v3006
        %v3120 = vunpack.c.h.b16 %v3006
        %v3121 = vpack.c.b16 %v3091, %v3081
        %v3122 = vpack.c.b16 %v3092, %v3082
        %v3123 = vpack.c.b16 %v3093, %v3083
        %v3124 = vpack.c.b16 %v3094, %v3084
        %v3125 = vpack.c.b16 %v3095, %v3085
        %v3126 = vpack.c.b16 %v3096, %v3086
        %v3127 = vpack.c.b16 %v3097, %v3087
        %v3128 = vpack.c.b16 %v3098, %v3088
        %v3129 = vpack.c.b16 %v3099, %v3089
        %v3130 = vpack.c.b16 %v3100, %v3090
        %v3131 = vpack.c.b16 %v3111, %v3101
        %v3132 = vpack.c.b16 %v3112, %v3102
        %v3133 = vpack.c.b16 %v3113, %v3103
        %v3134 = vpack.c.b16 %v3114, %v3104
        %v3135 = vpack.c.b16 %v3115, %v3105
        %v3136 = vpack.c.b16 %v3116, %v3106
        %v3137 = vpack.c.b16 %v3117, %v3107
        %v3138 = vpack.c.b16 %v3118, %v3108
        %v3139 = vpack.c.b16 %v3119, %v3109
        %v3140 = vpack.c.b16 %v3120, %v3110
        %3161 = vmatprep.subr.bf16.mxu0 %v3122
        %3162 = vmatpush1.bf16.msra.mxu0 %v3121
        %3163 = vmatprep.subr.bf16.mxu0 %v3132
        %3164 = vmatpush1.bf16.msra.mxu0 %v3131
        %3165 = vmatprep.subr.bf16.mxu0 0
        %3166 = vmatpush1.bf16.msra.mxu0 0
        %3167 = vmatprep.subr.bf16.mxu0 0
        %3168 = vmatpush1.bf16.msra.mxu0 0
        %3169 = vmatprep.subr.bf16.mxu0 0
        %3170 = vmatpush1.bf16.msra.mxu0 0
        %3171 = vmatprep.subr.bf16.mxu0 0
        %3172 = vmatpush1.bf16.msra.mxu0 0
        %3173 = vmatprep.subr.bf16.mxu0 0
        %3174 = vmatpush1.bf16.msra.mxu0 0
        %3175 = vmatprep.subr.bf16.mxu0 0
        %3176 = vmatpush1.bf16.msra.mxu0 0
        %3177 = vmatprep.subr.bf16.mxu0 0
        %3178 = vmatpush1.bf16.msra.mxu0 0
        %3179 = vmatprep.subr.bf16.mxu0 0
        %3180 = vmatpush1.bf16.msra.mxu0 0
        %3181 = vmatprep.subr.bf16.mxu0 0
        %3182 = vmatpush1.bf16.msra.mxu0 0
        %3183 = vmatprep.subr.bf16.mxu0 0
        %3184 = vmatpush1.bf16.msra.mxu0 0
        %3185 = vmatprep.subr.bf16.mxu0 0
        %3186 = vmatpush1.bf16.msra.mxu0 0
        %3187 = vmatprep.subr.bf16.mxu0 0
        %3188 = vmatpush1.bf16.msra.mxu0 0
        %3189 = vmatprep.subr.bf16.mxu0 0
        %3190 = vmatpush1.bf16.msra.mxu0 0
        %3191 = vmatprep.subr.bf16.mxu0 0
        %3192 = vmatpush1.bf16.msra.mxu0 0
        %3193 = vmatprep.mubr.bf16.mxu0 0
        %3194 = vmatmul.mubr.bf16.gmra.mrb[0].mxu0 %v1792
        %v3195 = vpop.f32.mrb[0].mxu0
        %v3196 = vadd.f32 %v3014, %v3195
        %v3197 = vpop.f32.mrb[0].mxu0
        %v3198 = vadd.f32 %v3018, %v3197
        %v3199 = vpop.f32.mrb[0].mxu0
        %v3200 = vpop.f32.mrb[0].mxu0
        %3201 = vdwg.mxu0
        %3202 = vmatprep.subr.bf16.mxu0 %v3124
        %3203 = vmatpush1.bf16.msra.mxu0 %v3123
        %3204 = vmatprep.subr.bf16.mxu0 %v3134
        %3205 = vmatpush1.bf16.msra.mxu0 %v3133
        %3206 = vmatprep.subr.bf16.mxu0 0
        %3207 = vmatpush1.bf16.msra.mxu0 0
        %3208 = vmatprep.subr.bf16.mxu0 0
        %3209 = vmatpush1.bf16.msra.mxu0 0
        %3210 = vmatprep.subr.bf16.mxu0 0
        %3211 = vmatpush1.bf16.msra.mxu0 0
        %3212 = vmatprep.subr.bf16.mxu0 0
        %3213 = vmatpush1.bf16.msra.mxu0 0
        %3214 = vmatprep.subr.bf16.mxu0 0
        %3215 = vmatpush1.bf16.msra.mxu0 0
        %3216 = vmatprep.subr.bf16.mxu0 0
        %3217 = vmatpush1.bf16.msra.mxu0 0
        %3218 = vmatprep.subr.bf16.mxu0 0
        %3219 = vmatpush1.bf16.msra.mxu0 0
        %3220 = vmatprep.subr.bf16.mxu0 0
        %3221 = vmatpush1.bf16.msra.mxu0 0
        %3222 = vmatprep.subr.bf16.mxu0 0
        %3223 = vmatpush1.bf16.msra.mxu0 0
        %3224 = vmatprep.subr.bf16.mxu0 0
        %3225 = vmatpush1.bf16.msra.mxu0 0
        %3226 = vmatprep.subr.bf16.mxu0 0
        %3227 = vmatpush1.bf16.msra.mxu0 0
        %3228 = vmatprep.subr.bf16.mxu0 0
        %3229 = vmatpush1.bf16.msra.mxu0 0
        %3230 = vmatprep.subr.bf16.mxu0 0
        %3231 = vmatpush1.bf16.msra.mxu0 0
        %3232 = vmatprep.subr.bf16.mxu0 0
        %3233 = vmatpush1.bf16.msra.mxu0 0
        %3234 = vmatprep.mubr.bf16.mxu0 0
        %3235 = vmatmul.mubr.bf16.gmra.mrb[0].mxu0 %v1792
        %v3236 = vpop.f32.mrb[0].mxu0
        %v3237 = vadd.f32 %v3022, %v3236
        %v3238 = vpop.f32.mrb[0].mxu0
        %v3239 = vadd.f32 %v3026, %v3238
        %v3240 = vpop.f32.mrb[0].mxu0
        %v3241 = vpop.f32.mrb[0].mxu0
        %3242 = vdwg.mxu0
        %3243 = vmatprep.subr.bf16.mxu0 %v3126
        %3244 = vmatpush1.bf16.msra.mxu0 %v3125
        %3245 = vmatprep.subr.bf16.mxu0 %v3136
        %3246 = vmatpush1.bf16.msra.mxu0 %v3135
        %3247 = vmatprep.subr.bf16.mxu0 0
        %3248 = vmatpush1.bf16.msra.mxu0 0
        %3249 = vmatprep.subr.bf16.mxu0 0
        %3250 = vmatpush1.bf16.msra.mxu0 0
        %3251 = vmatprep.subr.bf16.mxu0 0
        %3252 = vmatpush1.bf16.msra.mxu0 0
        %3253 = vmatprep.subr.bf16.mxu0 0
        %3254 = vmatpush1.bf16.msra.mxu0 0
        %3255 = vmatprep.subr.bf16.mxu0 0
        %3256 = vmatpush1.bf16.msra.mxu0 0
        %3257 = vmatprep.subr.bf16.mxu0 0
        %3258 = vmatpush1.bf16.msra.mxu0 0
        %3259 = vmatprep.subr.bf16.mxu0 0
        %3260 = vmatpush1.bf16.msra.mxu0 0
        %3261 = vmatprep.subr.bf16.mxu0 0
        %3262 = vmatpush1.bf16.msra.mxu0 0
        %3263 = vmatprep.subr.bf16.mxu0 0
        %3264 = vmatpush1.bf16.msra.mxu0 0
        %3265 = vmatprep.subr.bf16.mxu0 0
        %3266 = vmatpush1.bf16.msra.mxu0 0
        %3267 = vmatprep.subr.bf16.mxu0 0
        %3268 = vmatpush1.bf16.msra.mxu0 0
        %3269 = vmatprep.subr.bf16.mxu0 0
        %3270 = vmatpush1.bf16.msra.mxu0 0
        %3271 = vmatprep.subr.bf16.mxu0 0
        %3272 = vmatpush1.bf16.msra.mxu0 0
        %3273 = vmatprep.subr.bf16.mxu0 0
        %3274 = vmatpush1.bf16.msra.mxu0 0
        %3275 = vmatprep.mubr.bf16.mxu0 0
        %3276 = vmatmul.mubr.bf16.gmra.mrb[0].mxu0 %v1792
        %v3277 = vpop.f32.mrb[0].mxu0
        %v3278 = vadd.f32 %v3030, %v3277
        %v3279 = vpop.f32.mrb[0].mxu0
        %v3280 = vadd.f32 %v3034, %v3279
        %v3281 = vpop.f32.mrb[0].mxu0
        %v3282 = vpop.f32.mrb[0].mxu0
        %3283 = vdwg.mxu0
        %3284 = vmatprep.subr.bf16.mxu0 %v3128
        %3285 = vmatpush1.bf16.msra.mxu0 %v3127
        %3286 = vmatprep.subr.bf16.mxu0 %v3138
        %3287 = vmatpush1.bf16.msra.mxu0 %v3137
        %3288 = vmatprep.subr.bf16.mxu0 0
        %3289 = vmatpush1.bf16.msra.mxu0 0
        %3290 = vmatprep.subr.bf16.mxu0 0
        %3291 = vmatpush1.bf16.msra.mxu0 0
        %3292 = vmatprep.subr.bf16.mxu0 0
        %3293 = vmatpush1.bf16.msra.mxu0 0
        %3294 = vmatprep.subr.bf16.mxu0 0
        %3295 = vmatpush1.bf16.msra.mxu0 0
        %3296 = vmatprep.subr.bf16.mxu0 0
        %3297 = vmatpush1.bf16.msra.mxu0 0
        %3298 = vmatprep.subr.bf16.mxu0 0
        %3299 = vmatpush1.bf16.msra.mxu0 0
        %3300 = vmatprep.subr.bf16.mxu0 0
        %3301 = vmatpush1.bf16.msra.mxu0 0
        %3302 = vmatprep.subr.bf16.mxu0 0
        %3303 = vmatpush1.bf16.msra.mxu0 0
        %3304 = vmatprep.subr.bf16.mxu0 0
        %3305 = vmatpush1.bf16.msra.mxu0 0
        %3306 = vmatprep.subr.bf16.mxu0 0
        %3307 = vmatpush1.bf16.msra.mxu0 0
        %3308 = vmatprep.subr.bf16.mxu0 0
        %3309 = vmatpush1.bf16.msra.mxu0 0
        %3310 = vmatprep.subr.bf16.mxu0 0
        %3311 = vmatpush1.bf16.msra.mxu0 0
        %3312 = vmatprep.subr.bf16.mxu0 0
        %3313 = vmatpush1.bf16.msra.mxu0 0
        %3314 = vmatprep.subr.bf16.mxu0 0
        %3315 = vmatpush1.bf16.msra.mxu0 0
        %3316 = vmatprep.mubr.bf16.mxu0 0
        %3317 = vmatmul.mubr.bf16.gmra.mrb[0].mxu0 %v1792
        %v3318 = vpop.f32.mrb[0].mxu0
        %v3319 = vadd.f32 %v3038, %v3318
        %v3320 = vpop.f32.mrb[0].mxu0
        %v3321 = vadd.f32 %v3042, %v3320
        %v3322 = vpop.f32.mrb[0].mxu0
        %v3323 = vpop.f32.mrb[0].mxu0
        %3324 = vdwg.mxu0
        %3325 = vmatprep.subr.bf16.mxu0 %v3130
        %3326 = vmatpush1.bf16.msra.mxu0 %v3129
        %3327 = vmatprep.subr.bf16.mxu0 %v3140
        %3328 = vmatpush1.bf16.msra.mxu0 %v3139
        %3329 = vmatprep.subr.bf16.mxu0 0
        %3330 = vmatpush1.bf16.msra.mxu0 0
        %3331 = vmatprep.subr.bf16.mxu0 0
        %3332 = vmatpush1.bf16.msra.mxu0 0
        %3333 = vmatprep.subr.bf16.mxu0 0
        %3334 = vmatpush1.bf16.msra.mxu0 0
        %3335 = vmatprep.subr.bf16.mxu0 0
        %3336 = vmatpush1.bf16.msra.mxu0 0
        %3337 = vmatprep.subr.bf16.mxu0 0
        %3338 = vmatpush1.bf16.msra.mxu0 0
        %3339 = vmatprep.subr.bf16.mxu0 0
        %3340 = vmatpush1.bf16.msra.mxu0 0
        %3341 = vmatprep.subr.bf16.mxu0 0
        %3342 = vmatpush1.bf16.msra.mxu0 0
        %3343 = vmatprep.subr.bf16.mxu0 0
        %3344 = vmatpush1.bf16.msra.mxu0 0
        %3345 = vmatprep.subr.bf16.mxu0 0
        %3346 = vmatpush1.bf16.msra.mxu0 0
        %3347 = vmatprep.subr.bf16.mxu0 0
        %3348 = vmatpush1.bf16.msra.mxu0 0
        %3349 = vmatprep.subr.bf16.mxu0 0
        %3350 = vmatpush1.bf16.msra.mxu0 0
        %3351 = vmatprep.subr.bf16.mxu0 0
        %3352 = vmatpush1.bf16.msra.mxu0 0
        %3353 = vmatprep.subr.bf16.mxu0 0
        %3354 = vmatpush1.bf16.msra.mxu0 0
        %3355 = vmatprep.subr.bf16.mxu0 0
        %3356 = vmatpush1.bf16.msra.mxu0 0
        %3357 = vmatprep.mubr.bf16.mxu0 0
        %3358 = vmatmul.mubr.bf16.gmra.mrb[0].mxu0 %v1792
        %v3359 = vpop.f32.mrb[0].mxu0
        %v3360 = vadd.f32 %v3046, %v3359
        %v3361 = vpop.f32.mrb[0].mxu0
        %v3362 = vadd.f32 %v3050, %v3361
        %v3363 = vpop.f32.mrb[0].mxu0
        %v3364 = vpop.f32.mrb[0].mxu0
        %3365 = vdwg.mxu0
        %3366 = vst [vmem:[%s568 + $0xf0] sm:$0xff] %v3196
        %3367 = vst [vmem:[%s568 + $0xf8] sm:$0xff] %v3198
        %3368 = vst [vmem:[%s568 + $0x100] sm:$0xff] %v3237
        %3369 = vst [vmem:[%s568 + $0x108] sm:$0xff] %v3239
        %3370 = vst [vmem:[%s568 + $0x110] sm:$0xff] %v3278
        %3371 = vst [vmem:[%s568 + $0x118] sm:$0xff] %v3280
        %3372 = vst [vmem:[%s568 + $0x120] sm:$0xff] %v3319
        %3373 = vst [vmem:[%s568 + $0x128] sm:$0xff] %v3321
        %3374 = vst [vmem:[%s568 + $0x130] sm:$0xff] %v3360
        %3375 = vst [vmem:[%s568 + $0x138] sm:$0xff] %v3362
        %v3376 = vmax.f32 %v3196, %v3278
        %v3377 = vmax.f32 %v3198, %v3280
        %v3378 = vmax.f32 %v3237, %v3319
        %v3379 = vmax.f32 %v3239, %v3321
        %v3380 = vmax.f32 %v3376, %v3360
        %v3381 = vmax.f32 %v3377, %v3362
        %v3382 = vmax.f32 %v3380, %v3381
        %v3383 = vmax.f32 %v3378, %v3379
        %v3384 = vmax.f32 %v3382, %v3383
        %3385 = vmax.xlane.f32.xlu0 %v3384
        %v3386 = vpop.xlane.xlu0 %3385
        %vm3387 = vcmp.eq.f32.partialorder %v3196, %v3386
        %vm3388 = vcmp.eq.f32.partialorder %v3198, %v3386
        %vm3389 = vcmp.eq.f32.partialorder %v3237, %v3386
        %vm3390 = vcmp.eq.f32.partialorder %v3239, %v3386
        %vm3391 = vcmp.eq.f32.partialorder %v3278, %v3386
        %vm3392 = vcmp.eq.f32.partialorder %v3280, %v3386
        %vm3393 = vcmp.eq.f32.partialorder %v3319, %v3386
        %vm3394 = vcmp.eq.f32.partialorder %v3321, %v3386
        %vm3395 = vcmp.eq.f32.partialorder %v3360, %v3386
        %vm3396 = vcmp.eq.f32.partialorder %v3362, %v3386
        %v3397 = vsel %vm3387, %v915, 1280
        %v3398 = vsel %vm3388, %v1608, 1280
        %v3399 = vsel %vm3389, %v1609, 1280
        %v3400 = vsel %vm3390, %v1610, 1280
        %v3401 = vsel %vm3391, %v1611, 1280
        %v3402 = vsel %vm3392, %v1612, 1280
        %v3403 = vsel %vm3393, %v1613, 1280
        %v3404 = vsel %vm3394, %v1614, 1280
        %v3405 = vsel %vm3395, %v1615, 1280
        %v3406 = vsel %vm3396, %v1616, 1280
        %vm3407 = vcmp.lt.s32.totalorder %v3397, %v3401
        %v3408 = vsel %vm3407, %v3397, %v3401
        %vm3409 = vcmp.lt.s32.totalorder %v3398, %v3402
        %v3410 = vsel %vm3409, %v3398, %v3402
        %vm3411 = vcmp.lt.s32.totalorder %v3399, %v3403
        %v3412 = vsel %vm3411, %v3399, %v3403
        %vm3413 = vcmp.lt.s32.totalorder %v3400, %v3404
        %v3414 = vsel %vm3413, %v3400, %v3404
        %vm3415 = vcmp.lt.s32.totalorder %v3408, %v3405
        %v3416 = vsel %vm3415, %v3408, %v3405
        %vm3417 = vcmp.lt.s32.totalorder %v3410, %v3406
        %v3418 = vsel %vm3417, %v3410, %v3406
        %vm3419 = vcmp.lt.s32.totalorder %v3416, %v3418
        %v3420 = vsel %vm3419, %v3416, %v3418
        %vm3421 = vcmp.lt.s32.totalorder %v3412, %v3414
        %v3422 = vsel %vm3421, %v3412, %v3414
        %vm3423 = vcmp.lt.s32.totalorder %v3420, %v3422
        %v3424 = vsel %vm3423, %v3420, %v3422
        %v3425 = vand.u32 %v3424, 65535
        %v3426 = vshra.s32 %v3424, 16
        %v3427 = vcvt.s32.f32 %v3425
        %v3428 = vcvt.s32.f32 %v3426
        %3429 = vmin.xlane.f32.xlu0 %v3428
        %v3430 = vpop.xlane.xlu0 %3429
        %vm3431 = vcmp.eq.f32.partialorder %v3428, %v3430
        %v3432 = vsel %vm3431, %v3427, inf
        %3433 = vmin.xlane.f32.xlu0 %v3432
        %v3434 = vpop.xlane.xlu0 %3433
        %v3435 = vcvt.f32.s32 %v3434
        %v3436 = vcvt.f32.s32 %v3430
        %v3437 = vshll.u32 %v3436, 16
        %v3438 = vadd.s32 %v3437, %v3435
        %v3439 = vadd.s32 %v3438, 3840
        %vm3440 = vcmp.gt.f32.partialorder %v3386, %v2986
        %v3441 = vsel %vm3440, %v3439, %v2985
        %v3442 = vsel %vm3440, %v3386, %v2986
        %v3443 = vld [vmem:[#allocation20 + $0xa0] sm:$0xff]
        %v3444 = vld [vmem:[#allocation20 + $0xa8] sm:$0xff]
        %v3445 = vld [vmem:[#allocation20 + $0xb0] sm:$0xff]
        %v3446 = vld [vmem:[#allocation20 + $0xb8] sm:$0xff]
        %v3447 = vld [vmem:[#allocation20 + $0xc0] sm:$0xff]
        %v3448 = vld [vmem:[#allocation20 + $0x168] sm:$0xff]
        %v3449 = vld [vmem:[#allocation20 + $0x170] sm:$0xff]
        %v3450 = vld [vmem:[#allocation20 + $0x178] sm:$0xff]
        %v3451 = vld [vmem:[#allocation20 + $0x180] sm:$0xff]
        %v3452 = vld [vmem:[#allocation20 + $0x188] sm:$0xff]
        %v3453 = vld [vmem:[#allocation20 + $0x230] sm:$0xff]
        %v3454 = vld [vmem:[#allocation20 + $0x238] sm:$0xff]
        %v3455 = vld [vmem:[#allocation20 + $0x240] sm:$0xff]
        %v3456 = vld [vmem:[#allocation20 + $0x248] sm:$0xff]
        %v3457 = vld [vmem:[#allocation20 + $0x250] sm:$0xff]
        %v3458 = vld [vmem:[#allocation20 + $0x2f8] sm:$0xff]
        %v3459 = vld [vmem:[#allocation20 + $0x300] sm:$0xff]
        %v3460 = vld [vmem:[#allocation20 + $0x308] sm:$0xff]
        %v3461 = vld [vmem:[#allocation20 + $0x310] sm:$0xff]
        %v3462 = vld [vmem:[#allocation20 + $0x318] sm:$0xff]
        %v3463 = vld [vmem:[#allocation22 + $0x28] sm:$0xff]
        %v3464 = vld [vmem:[#allocation22 + $0x30] sm:$0x3]
        %v3467 = vlaneseq
        %v3468 = vshrl.u32 %v3467, 7
        %v3469 = vsub.s32 0, %v3468
        %v3470 = vrot.slane %v3463, %v3469
        %v3471 = vlaneseq
        %v3472 = vshrl.u32 %v3471, 7
        %v3473 = vsub.s32 1, %v3472
        %v3474 = vrot.slane %v3463, %v3473
        %v3475 = vlaneseq
        %v3476 = vshrl.u32 %v3475, 7
        %v3477 = vsub.s32 2, %v3476
        %v3478 = vrot.slane %v3463, %v3477
        %v3479 = vlaneseq
        %v3480 = vshrl.u32 %v3479, 7
        %v3481 = vsub.s32 3, %v3480
        %v3482 = vrot.slane %v3463, %v3481
        %v3483 = vlaneseq
        %v3484 = vshrl.u32 %v3483, 7
        %v3485 = vsub.s32 4, %v3484
        %v3486 = vrot.slane %v3463, %v3485
        %v3487 = vlaneseq
        %v3488 = vshrl.u32 %v3487, 7
        %v3489 = vsub.s32 5, %v3488
        %v3490 = vrot.slane %v3463, %v3489
        %v3491 = vlaneseq
        %v3492 = vshrl.u32 %v3491, 7
        %v3493 = vsub.s32 6, %v3492
        %v3494 = vrot.slane %v3463, %v3493
        %v3495 = vlaneseq
        %v3496 = vshrl.u32 %v3495, 7
        %v3497 = vsub.s32 7, %v3496
        %v3498 = vrot.slane %v3463, %v3497
        %v3499 = vlaneseq
        %v3500 = vshrl.u32 %v3499, 7
        %v3501 = vsub.s32 0, %v3500
        %v3502 = vrot.slane %v3464, %v3501
        %v3503 = vlaneseq
        %v3504 = vshrl.u32 %v3503, 7
        %v3505 = vsub.s32 1, %v3504
        %v3506 = vrot.slane %v3464, %v3505
        %v3537 = vunpack.c.l.b16 %v3443
        %v3538 = vunpack.c.h.b16 %v3443
        %v3539 = vunpack.c.l.b16 %v3444
        %v3540 = vunpack.c.h.b16 %v3444
        %v3541 = vunpack.c.l.b16 %v3445
        %v3542 = vunpack.c.h.b16 %v3445
        %v3543 = vunpack.c.l.b16 %v3446
        %v3544 = vunpack.c.h.b16 %v3446
        %v3545 = vunpack.c.l.b16 %v3447
        %v3546 = vunpack.c.h.b16 %v3447
        %v3547 = vunpack.c.l.b16 %v3448
        %v3548 = vunpack.c.h.b16 %v3448
        %v3549 = vunpack.c.l.b16 %v3449
        %v3550 = vunpack.c.h.b16 %v3449
        %v3551 = vunpack.c.l.b16 %v3450
        %v3552 = vunpack.c.h.b16 %v3450
        %v3553 = vunpack.c.l.b16 %v3451
        %v3554 = vunpack.c.h.b16 %v3451
        %v3555 = vunpack.c.l.b16 %v3452
        %v3556 = vunpack.c.h.b16 %v3452
        %v3557 = vunpack.c.l.b16 %v3453
        %v3558 = vunpack.c.h.b16 %v3453
        %v3559 = vunpack.c.l.b16 %v3454
        %v3560 = vunpack.c.h.b16 %v3454
        %v3561 = vunpack.c.l.b16 %v3455
        %v3562 = vunpack.c.h.b16 %v3455
        %v3563 = vunpack.c.l.b16 %v3456
        %v3564 = vunpack.c.h.b16 %v3456
        %v3565 = vunpack.c.l.b16 %v3457
        %v3566 = vunpack.c.h.b16 %v3457
        %v3567 = vunpack.c.l.b16 %v3458
        %v3568 = vunpack.c.h.b16 %v3458
        %v3569 = vunpack.c.l.b16 %v3459
        %v3570 = vunpack.c.h.b16 %v3459
        %v3571 = vunpack.c.l.b16 %v3460
        %v3572 = vunpack.c.h.b16 %v3460
        %v3573 = vunpack.c.l.b16 %v3461
        %v3574 = vunpack.c.h.b16 %v3461
        %v3575 = vunpack.c.l.b16 %v3462
        %v3576 = vunpack.c.h.b16 %v3462
        %v3577 = vpack.c.b16 %v3547, %v3537
        %v3578 = vpack.c.b16 %v3548, %v3538
        %v3579 = vpack.c.b16 %v3549, %v3539
        %v3580 = vpack.c.b16 %v3550, %v3540
        %v3581 = vpack.c.b16 %v3551, %v3541
        %v3582 = vpack.c.b16 %v3552, %v3542
        %v3583 = vpack.c.b16 %v3553, %v3543
        %v3584 = vpack.c.b16 %v3554, %v3544
        %v3585 = vpack.c.b16 %v3555, %v3545
        %v3586 = vpack.c.b16 %v3556, %v3546
        %v3587 = vpack.c.b16 %v3567, %v3557
        %v3588 = vpack.c.b16 %v3568, %v3558
        %v3589 = vpack.c.b16 %v3569, %v3559
        %v3590 = vpack.c.b16 %v3570, %v3560
        %v3591 = vpack.c.b16 %v3571, %v3561
        %v3592 = vpack.c.b16 %v3572, %v3562
        %v3593 = vpack.c.b16 %v3573, %v3563
        %v3594 = vpack.c.b16 %v3574, %v3564
        %v3595 = vpack.c.b16 %v3575, %v3565
        %v3596 = vpack.c.b16 %v3576, %v3566
        %3617 = vmatprep.subr.bf16.mxu0 %v3578
        %3618 = vmatpush1.bf16.msra.mxu0 %v3577
        %3619 = vmatprep.subr.bf16.mxu0 %v3588
        %3620 = vmatpush1.bf16.msra.mxu0 %v3587
        %3621 = vmatprep.subr.bf16.mxu0 0
        %3622 = vmatpush1.bf16.msra.mxu0 0
        %3623 = vmatprep.subr.bf16.mxu0 0
        %3624 = vmatpush1.bf16.msra.mxu0 0
        %3625 = vmatprep.subr.bf16.mxu0 0
        %3626 = vmatpush1.bf16.msra.mxu0 0
        %3627 = vmatprep.subr.bf16.mxu0 0
        %3628 = vmatpush1.bf16.msra.mxu0 0
        %3629 = vmatprep.subr.bf16.mxu0 0
        %3630 = vmatpush1.bf16.msra.mxu0 0
        %3631 = vmatprep.subr.bf16.mxu0 0
        %3632 = vmatpush1.bf16.msra.mxu0 0
        %3633 = vmatprep.subr.bf16.mxu0 0
        %3634 = vmatpush1.bf16.msra.mxu0 0
        %3635 = vmatprep.subr.bf16.mxu0 0
        %3636 = vmatpush1.bf16.msra.mxu0 0
        %3637 = vmatprep.subr.bf16.mxu0 0
        %3638 = vmatpush1.bf16.msra.mxu0 0
        %3639 = vmatprep.subr.bf16.mxu0 0
        %3640 = vmatpush1.bf16.msra.mxu0 0
        %3641 = vmatprep.subr.bf16.mxu0 0
        %3642 = vmatpush1.bf16.msra.mxu0 0
        %3643 = vmatprep.subr.bf16.mxu0 0
        %3644 = vmatpush1.bf16.msra.mxu0 0
        %3645 = vmatprep.subr.bf16.mxu0 0
        %3646 = vmatpush1.bf16.msra.mxu0 0
        %3647 = vmatprep.subr.bf16.mxu0 0
        %3648 = vmatpush1.bf16.msra.mxu0 0
        %3649 = vmatprep.mubr.bf16.mxu0 0
        %3650 = vmatmul.mubr.bf16.gmra.mrb[0].mxu0 %v1792
        %v3651 = vpop.f32.mrb[0].mxu0
        %v3652 = vadd.f32 %v3470, %v3651
        %v3653 = vpop.f32.mrb[0].mxu0
        %v3654 = vadd.f32 %v3474, %v3653
        %v3655 = vpop.f32.mrb[0].mxu0
        %v3656 = vpop.f32.mrb[0].mxu0
        %3657 = vdwg.mxu0
        %3658 = vmatprep.subr.bf16.mxu0 %v3580
        %3659 = vmatpush1.bf16.msra.mxu0 %v3579
        %3660 = vmatprep.subr.bf16.mxu0 %v3590
        %3661 = vmatpush1.bf16.msra.mxu0 %v3589
        %3662 = vmatprep.subr.bf16.mxu0 0
        %3663 = vmatpush1.bf16.msra.mxu0 0
        %3664 = vmatprep.subr.bf16.mxu0 0
        %3665 = vmatpush1.bf16.msra.mxu0 0
        %3666 = vmatprep.subr.bf16.mxu0 0
        %3667 = vmatpush1.bf16.msra.mxu0 0
        %3668 = vmatprep.subr.bf16.mxu0 0
        %3669 = vmatpush1.bf16.msra.mxu0 0
        %3670 = vmatprep.subr.bf16.mxu0 0
        %3671 = vmatpush1.bf16.msra.mxu0 0
        %3672 = vmatprep.subr.bf16.mxu0 0
        %3673 = vmatpush1.bf16.msra.mxu0 0
        %3674 = vmatprep.subr.bf16.mxu0 0
        %3675 = vmatpush1.bf16.msra.mxu0 0
        %3676 = vmatprep.subr.bf16.mxu0 0
        %3677 = vmatpush1.bf16.msra.mxu0 0
        %3678 = vmatprep.subr.bf16.mxu0 0
        %3679 = vmatpush1.bf16.msra.mxu0 0
        %3680 = vmatprep.subr.bf16.mxu0 0
        %3681 = vmatpush1.bf16.msra.mxu0 0
        %3682 = vmatprep.subr.bf16.mxu0 0
        %3683 = vmatpush1.bf16.msra.mxu0 0
        %3684 = vmatprep.subr.bf16.mxu0 0
        %3685 = vmatpush1.bf16.msra.mxu0 0
        %3686 = vmatprep.subr.bf16.mxu0 0
        %3687 = vmatpush1.bf16.msra.mxu0 0
        %3688 = vmatprep.subr.bf16.mxu0 0
        %3689 = vmatpush1.bf16.msra.mxu0 0
        %3690 = vmatprep.mubr.bf16.mxu0 0
        %3691 = vmatmul.mubr.bf16.gmra.mrb[0].mxu0 %v1792
        %v3692 = vpop.f32.mrb[0].mxu0
        %v3693 = vadd.f32 %v3478, %v3692
        %v3694 = vpop.f32.mrb[0].mxu0
        %v3695 = vadd.f32 %v3482, %v3694
        %v3696 = vpop.f32.mrb[0].mxu0
        %v3697 = vpop.f32.mrb[0].mxu0
        %3698 = vdwg.mxu0
        %3699 = vmatprep.subr.bf16.mxu0 %v3582
        %3700 = vmatpush1.bf16.msra.mxu0 %v3581
        %3701 = vmatprep.subr.bf16.mxu0 %v3592
        %3702 = vmatpush1.bf16.msra.mxu0 %v3591
        %3703 = vmatprep.subr.bf16.mxu0 0
        %3704 = vmatpush1.bf16.msra.mxu0 0
        %3705 = vmatprep.subr.bf16.mxu0 0
        %3706 = vmatpush1.bf16.msra.mxu0 0
        %3707 = vmatprep.subr.bf16.mxu0 0
        %3708 = vmatpush1.bf16.msra.mxu0 0
        %3709 = vmatprep.subr.bf16.mxu0 0
        %3710 = vmatpush1.bf16.msra.mxu0 0
        %3711 = vmatprep.subr.bf16.mxu0 0
        %3712 = vmatpush1.bf16.msra.mxu0 0
        %3713 = vmatprep.subr.bf16.mxu0 0
        %3714 = vmatpush1.bf16.msra.mxu0 0
        %3715 = vmatprep.subr.bf16.mxu0 0
        %3716 = vmatpush1.bf16.msra.mxu0 0
        %3717 = vmatprep.subr.bf16.mxu0 0
        %3718 = vmatpush1.bf16.msra.mxu0 0
        %3719 = vmatprep.subr.bf16.mxu0 0
        %3720 = vmatpush1.bf16.msra.mxu0 0
        %3721 = vmatprep.subr.bf16.mxu0 0
        %3722 = vmatpush1.bf16.msra.mxu0 0
        %3723 = vmatprep.subr.bf16.mxu0 0
        %3724 = vmatpush1.bf16.msra.mxu0 0
        %3725 = vmatprep.subr.bf16.mxu0 0
        %3726 = vmatpush1.bf16.msra.mxu0 0
        %3727 = vmatprep.subr.bf16.mxu0 0
        %3728 = vmatpush1.bf16.msra.mxu0 0
        %3729 = vmatprep.subr.bf16.mxu0 0
        %3730 = vmatpush1.bf16.msra.mxu0 0
        %3731 = vmatprep.mubr.bf16.mxu0 0
        %3732 = vmatmul.mubr.bf16.gmra.mrb[0].mxu0 %v1792
        %v3733 = vpop.f32.mrb[0].mxu0
        %v3734 = vadd.f32 %v3486, %v3733
        %v3735 = vpop.f32.mrb[0].mxu0
        %v3736 = vadd.f32 %v3490, %v3735
        %v3737 = vpop.f32.mrb[0].mxu0
        %v3738 = vpop.f32.mrb[0].mxu0
        %3739 = vdwg.mxu0
        %3740 = vmatprep.subr.bf16.mxu0 %v3584
        %3741 = vmatpush1.bf16.msra.mxu0 %v3583
        %3742 = vmatprep.subr.bf16.mxu0 %v3594
        %3743 = vmatpush1.bf16.msra.mxu0 %v3593
        %3744 = vmatprep.subr.bf16.mxu0 0
        %3745 = vmatpush1.bf16.msra.mxu0 0
        %3746 = vmatprep.subr.bf16.mxu0 0
        %3747 = vmatpush1.bf16.msra.mxu0 0
        %3748 = vmatprep.subr.bf16.mxu0 0
        %3749 = vmatpush1.bf16.msra.mxu0 0
        %3750 = vmatprep.subr.bf16.mxu0 0
        %3751 = vmatpush1.bf16.msra.mxu0 0
        %3752 = vmatprep.subr.bf16.mxu0 0
        %3753 = vmatpush1.bf16.msra.mxu0 0
        %3754 = vmatprep.subr.bf16.mxu0 0
        %3755 = vmatpush1.bf16.msra.mxu0 0
        %3756 = vmatprep.subr.bf16.mxu0 0
        %3757 = vmatpush1.bf16.msra.mxu0 0
        %3758 = vmatprep.subr.bf16.mxu0 0
        %3759 = vmatpush1.bf16.msra.mxu0 0
        %3760 = vmatprep.subr.bf16.mxu0 0
        %3761 = vmatpush1.bf16.msra.mxu0 0
        %3762 = vmatprep.subr.bf16.mxu0 0
        %3763 = vmatpush1.bf16.msra.mxu0 0
        %3764 = vmatprep.subr.bf16.mxu0 0
        %3765 = vmatpush1.bf16.msra.mxu0 0
        %3766 = vmatprep.subr.bf16.mxu0 0
        %3767 = vmatpush1.bf16.msra.mxu0 0
        %3768 = vmatprep.subr.bf16.mxu0 0
        %3769 = vmatpush1.bf16.msra.mxu0 0
        %3770 = vmatprep.subr.bf16.mxu0 0
        %3771 = vmatpush1.bf16.msra.mxu0 0
        %3772 = vmatprep.mubr.bf16.mxu0 0
        %3773 = vmatmul.mubr.bf16.gmra.mrb[0].mxu0 %v1792
        %v3774 = vpop.f32.mrb[0].mxu0
        %v3775 = vadd.f32 %v3494, %v3774
        %v3776 = vpop.f32.mrb[0].mxu0
        %v3777 = vadd.f32 %v3498, %v3776
        %v3778 = vpop.f32.mrb[0].mxu0
        %v3779 = vpop.f32.mrb[0].mxu0
        %3780 = vdwg.mxu0
        %3781 = vmatprep.subr.bf16.mxu0 %v3586
        %3782 = vmatpush1.bf16.msra.mxu0 %v3585
        %3783 = vmatprep.subr.bf16.mxu0 %v3596
        %3784 = vmatpush1.bf16.msra.mxu0 %v3595
        %3785 = vmatprep.subr.bf16.mxu0 0
        %3786 = vmatpush1.bf16.msra.mxu0 0
        %3787 = vmatprep.subr.bf16.mxu0 0
        %3788 = vmatpush1.bf16.msra.mxu0 0
        %3789 = vmatprep.subr.bf16.mxu0 0
        %3790 = vmatpush1.bf16.msra.mxu0 0
        %3791 = vmatprep.subr.bf16.mxu0 0
        %3792 = vmatpush1.bf16.msra.mxu0 0
        %3793 = vmatprep.subr.bf16.mxu0 0
        %3794 = vmatpush1.bf16.msra.mxu0 0
        %3795 = vmatprep.subr.bf16.mxu0 0
        %3796 = vmatpush1.bf16.msra.mxu0 0
        %3797 = vmatprep.subr.bf16.mxu0 0
        %3798 = vmatpush1.bf16.msra.mxu0 0
        %3799 = vmatprep.subr.bf16.mxu0 0
        %3800 = vmatpush1.bf16.msra.mxu0 0
        %3801 = vmatprep.subr.bf16.mxu0 0
        %3802 = vmatpush1.bf16.msra.mxu0 0
        %3803 = vmatprep.subr.bf16.mxu0 0
        %3804 = vmatpush1.bf16.msra.mxu0 0
        %3805 = vmatprep.subr.bf16.mxu0 0
        %3806 = vmatpush1.bf16.msra.mxu0 0
        %3807 = vmatprep.subr.bf16.mxu0 0
        %3808 = vmatpush1.bf16.msra.mxu0 0
        %3809 = vmatprep.subr.bf16.mxu0 0
        %3810 = vmatpush1.bf16.msra.mxu0 0
        %3811 = vmatprep.subr.bf16.mxu0 0
        %3812 = vmatpush1.bf16.msra.mxu0 0
        %3813 = vmatprep.mubr.bf16.mxu0 0
        %3814 = vmatmul.mubr.bf16.gmra.mrb[0].mxu0 %v1792
        %v3815 = vpop.f32.mrb[0].mxu0
        %v3816 = vadd.f32 %v3502, %v3815
        %v3817 = vpop.f32.mrb[0].mxu0
        %v3818 = vadd.f32 %v3506, %v3817
        %v3819 = vpop.f32.mrb[0].mxu0
        %v3820 = vpop.f32.mrb[0].mxu0
        %3821 = vdwg.mxu0
        %3822 = vst [vmem:[%s568 + $0x140] sm:$0xff] %v3652
        %3823 = vst [vmem:[%s568 + $0x148] sm:$0xff] %v3654
        %3824 = vst [vmem:[%s568 + $0x150] sm:$0xff] %v3693
        %3825 = vst [vmem:[%s568 + $0x158] sm:$0xff] %v3695
        %3826 = vst [vmem:[%s568 + $0x160] sm:$0xff] %v3734
        %3827 = vst [vmem:[%s568 + $0x168] sm:$0xff] %v3736
        %3828 = vst [vmem:[%s568 + $0x170] sm:$0xff] %v3775
        %3829 = vst [vmem:[%s568 + $0x178] sm:$0xff] %v3777
        %3830 = vst [vmem:[%s568 + $0x180] sm:$0xff] %v3816
        %3831 = vst [vmem:[%s568 + $0x188] sm:$0xff] %v3818
        %v3832 = vmax.f32 %v3652, %v3734
        %v3833 = vmax.f32 %v3654, %v3736
        %v3834 = vmax.f32 %v3693, %v3775
        %v3835 = vmax.f32 %v3695, %v3777
        %v3836 = vmax.f32 %v3832, %v3816
        %v3837 = vmax.f32 %v3833, %v3818
        %v3838 = vmax.f32 %v3836, %v3837
        %v3839 = vmax.f32 %v3834, %v3835
        %v3840 = vmax.f32 %v3838, %v3839
        %3841 = vmax.xlane.f32.xlu0 %v3840
        %v3842 = vpop.xlane.xlu0 %3841
        %vm3843 = vcmp.eq.f32.partialorder %v3652, %v3842
        %vm3844 = vcmp.eq.f32.partialorder %v3654, %v3842
        %vm3845 = vcmp.eq.f32.partialorder %v3693, %v3842
        %vm3846 = vcmp.eq.f32.partialorder %v3695, %v3842
        %vm3847 = vcmp.eq.f32.partialorder %v3734, %v3842
        %vm3848 = vcmp.eq.f32.partialorder %v3736, %v3842
        %vm3849 = vcmp.eq.f32.partialorder %v3775, %v3842
        %vm3850 = vcmp.eq.f32.partialorder %v3777, %v3842
        %vm3851 = vcmp.eq.f32.partialorder %v3816, %v3842
        %vm3852 = vcmp.eq.f32.partialorder %v3818, %v3842
        %v3853 = vsel %vm3843, %v915, 1280
        %v3854 = vsel %vm3844, %v1608, 1280
        %v3855 = vsel %vm3845, %v1609, 1280
        %v3856 = vsel %vm3846, %v1610, 1280
        %v3857 = vsel %vm3847, %v1611, 1280
        %v3858 = vsel %vm3848, %v1612, 1280
        %v3859 = vsel %vm3849, %v1613, 1280
        %v3860 = vsel %vm3850, %v1614, 1280
        %v3861 = vsel %vm3851, %v1615, 1280
        %v3862 = vsel %vm3852, %v1616, 1280
        %vm3863 = vcmp.lt.s32.totalorder %v3853, %v3857
        %v3864 = vsel %vm3863, %v3853, %v3857
        %vm3865 = vcmp.lt.s32.totalorder %v3854, %v3858
        %v3866 = vsel %vm3865, %v3854, %v3858
        %vm3867 = vcmp.lt.s32.totalorder %v3855, %v3859
        %v3868 = vsel %vm3867, %v3855, %v3859
        %vm3869 = vcmp.lt.s32.totalorder %v3856, %v3860
        %v3870 = vsel %vm3869, %v3856, %v3860
        %vm3871 = vcmp.lt.s32.totalorder %v3864, %v3861
        %v3872 = vsel %vm3871, %v3864, %v3861
        %vm3873 = vcmp.lt.s32.totalorder %v3866, %v3862
        %v3874 = vsel %vm3873, %v3866, %v3862
        %vm3875 = vcmp.lt.s32.totalorder %v3872, %v3874
        %v3876 = vsel %vm3875, %v3872, %v3874
        %vm3877 = vcmp.lt.s32.totalorder %v3868, %v3870
        %v3878 = vsel %vm3877, %v3868, %v3870
        %vm3879 = vcmp.lt.s32.totalorder %v3876, %v3878
        %v3880 = vsel %vm3879, %v3876, %v3878
        %v3881 = vand.u32 %v3880, 65535
        %v3882 = vshra.s32 %v3880, 16
        %v3883 = vcvt.s32.f32 %v3881
        %v3884 = vcvt.s32.f32 %v3882
        %3885 = vmin.xlane.f32.xlu0 %v3884
        %v3886 = vpop.xlane.xlu0 %3885
        %vm3887 = vcmp.eq.f32.partialorder %v3884, %v3886
        %v3888 = vsel %vm3887, %v3883, inf
        %3889 = vmin.xlane.f32.xlu0 %v3888
        %v3890 = vpop.xlane.xlu0 %3889
        %v3891 = vcvt.f32.s32 %v3890
        %v3892 = vcvt.f32.s32 %v3886
        %v3893 = vshll.u32 %v3892, 16
        %v3894 = vadd.s32 %v3893, %v3891
        %v3895 = vadd.s32 %v3894, 5120
        %vm3896 = vcmp.gt.f32.partialorder %v3842, %v3442
        %v3897 = vsel %vm3896, %v3895, %v3441
        %v3898 = vcvt.s32.f32 %v3897
        %v3899 = vmul.f32 %v3898, 0.011494253
        %v3900 = vfloor.f32 %v3899
        %v3901 = vmul.f32 %v3900, 87.0
        %v3902 = vsub.f32 %v3898, %v3901
        %vm3903 = vcmp.ge.f32.partialorder %v3902, 87.0
        %v3904 = vadd.f32 %v3900, 1.0
        %v3905 = vsel %vm3903, %v3904, %v3900
        %v3906 = vsub.f32 %v3902, 87.0
        %v3907 = vsel %vm3903, %v3906, %v3902
        %vm3908 = vcmp.lt.f32.partialorder %v3907, 0.0
        %v3909 = vsub.f32 %v3905, 1.0
        %v3910 = vsel %vm3908, %v3909, %v3905
        %v3911 = vadd.f32 %v3907, 87.0
        %v3912 = vsel %vm3908, %v3911, %v3907
        %vm3913 = vcmask 7168
        %v3914 = vsel %vm3913, %v3910, %v3912
        %s3915 = sld [smem:[#allocation7 + %s42]]
        %p3916 = scmp.eq.s32.totalorder %s3915, 1
        %s3917 = scalar_select %p3916, 1, 0
        %s3918 = scvt.s32.f32 %s3917
        %s3919 = scalar_lea.vmem %s4, %s1268
        %v3920 = vld [vmem:[%s3919] sm:$0xff]
        %v3921 = vstv %s3918
        %v3922 = vmul.f32 %v3921, %v3920
        %s3923 = ssub.f32 1.0, %s3918
        %v3924 = vstv %s3923
        %v3925 = vmul.f32 %v3924, %v3914
        %v3926 = vadd.f32 %v3922, %v3925
        %s3927 = scalar_lea.vmem %s16, %s1268
        %3928 = vst.msk [vmem:[%s3927] sm:$0xff] %vm1350, %v3926
        %s3929 = sld [smem:[#allocation6 + %s42]]
        %p3930 = scmp.eq.s32.totalorder %s3929, 1
        %s3931 = scalar_select %p3930, 1, 0
        %s3932 = scvt.s32.f32 %s3931
        %3933 = vst.msk [vmem:[#allocation3] sm:$0xff] %vm1447, %v1606
        %s3934 = scalar_lea.vmem %s5, %s1268
        %v3935 = vld [vmem:[%s3934] sm:$0xff]
        %v3936 = vstv %s3932
        %v3937 = vmul.f32 %v3936, %v3935
        %s3938 = ssub.f32 1.0, %s3932
        %v3939 = vstv %s3938
        %v3940 = vmul.f32 %v3939, %v3926
        %v3941 = vadd.f32 %v3937, %v3940
        %3942 = vst.msk [vmem:[#allocation4] sm:$0xff] %vm1350, %v3941
        %s3943 = sand.u32 %s323, 1
        %s3944 = scalar_lea.sflag [#allocation10], %s3943
        %s3945 = sand.u32 %s323, 1
        %s3946 = smul.addr %s3945, 400
        %s3947 = scalar_lea.vmem [#allocation23], %s3946
        // Predicated region
        $region113: #{tpu_custom_call.1} parent=71 // pred_check
          %p3948 = pneg %p333
        $region114: #{tpu_custom_call.1} parent=71 // pred_check_branch
          %3950 = sbr.rel (%p3948) target = $region116
        $region115: #{tpu_custom_call.1} parent=71 // pred_region
          %s3952 = ssub.s32 6400, 6400
          %3953 = vsyncadd %s3944, %s3952
          %s3954 = smul.addr %s42, 50
          %s3955 = smul.addr %s3954, 128
          %s3956 = scalar_lea.hbm %s15, %s3955
          %s3958 = sshll.u32 %s3947, 4
          %s3959 = int_to_ptr.vmem [resolvable:$true] %s3958
          %3961 = dma.vmem_to_hbm [thread:$0]  %s3959, 6400, %s3956, %s3944
        $region116: #{tpu_custom_call.1} parent=71 // pred_fallthru
          _
        // Predicated region
        $region117: #{tpu_custom_call.1} parent=71 // pred_check
          %p3962 = pneg %p354
        $region118: #{tpu_custom_call.1} parent=71 // pred_check_branch
          %3964 = sbr.rel (%p3962) target = $region120
        $region119: #{tpu_custom_call.1} parent=71 // pred_region
          _
        $region120: #{tpu_custom_call.1} parent=71 // pred_fallthru
          _
        // Predicated region
        $region121: #{tpu_custom_call.1} parent=71 // pred_check
          %p3965 = pneg %p354
        $region122: #{tpu_custom_call.1} parent=71 // pred_check_branch
          %3967 = sbr.rel (%p3965) target = $region124
        $region123: #{tpu_custom_call.1} parent=71 // pred_region
          _
        $region124: #{tpu_custom_call.1} parent=71 // pred_fallthru
          _
      $region72: #{tpu_custom_call.1} parent=5 // pred_fallthru
        _
      %p3968 = scmp.le.s32.totalorder 2, %s37
      // Predicated region
      $region125: #{tpu_custom_call.1} parent=5 // pred_check
        %p3969 = pneg %p3968
      $region126: #{tpu_custom_call.1} parent=5 // pred_check_branch
        %3971 = sbr.rel (%p3969) target = $region128
      $region127: #{tpu_custom_call.1} parent=5 // pred_region
        %s3972 = ssub.s32 %s37, 2
        // Predicated region
        $region129: #{tpu_custom_call.1} parent=127 // pred_check
          %p3973 = pneg %p339
        $region130: #{tpu_custom_call.1} parent=127 // pred_check_branch
          %3975 = sbr.rel (%p3973) target = $region132
        $region131: #{tpu_custom_call.1} parent=127 // pred_region
          %s3976 = sand.u32 %s324, 1
          %s3977 = scalar_lea.sflag [#allocation10], %s3976
          %s3978 = sand.u32 %s324, 1
          %s3979 = smul.addr %s3978, 400
          %s3980 = scalar_lea.vmem [#allocation23], %s3979
          %3981 = dma.done %s3977, 6400
        $region132: #{tpu_custom_call.1} parent=127 // pred_fallthru
          _
      $region128: #{tpu_custom_call.1} parent=5 // pred_fallthru
        _
    $region6: #{tpu_custom_call.1} parent=1 // loop_footer
      %s41 = sadd.s32 1, %s37
    $region7: #{tpu_custom_call.1} parent=1 // loop_footer_branch
      %36 = sbr.rel target = $region3
    $region8: #{tpu_custom_call.1} parent=1 // loop_exit
      _
    %3982 = vsyncpa [#allocation9], 1
    %s3983 = scalar_lea.sflag [#allocation9], 1
    %3984 = vsyncpa %s3983, 1
    %3985 = vsyncpa [#allocation12], 1
    %3986 = vsyncpa [#allocation15], 1
    %3987 = vsyncpa [#allocation18], 1
    %3988 = vsyncpa [#allocation21], 1
    %3989 = vsyncpa [#allocation10], 1
    %s3990 = scalar_lea.sflag [#allocation10], 1
    %3991 = vsyncpa %s3990, 1

</llo_original>
